<compile_context>
chip_gen: v7x
topology: tpu7x:2x2x1
jax: 0.10.0
libtpu: 0.0.40
codegen_flags: <defaults>
</compile_context>

<pallas_src>
import math

import jax
import jax.numpy as jnp
from jax import lax
from jax.experimental import pallas as pl
from jax.experimental.pallas import tpu as pltpu

# ---------------- cfg.* constants ----------------
IMG_SIZE = 64                 # square image, clip range is [0, IMG_SIZE-1]
STRIDE = 16
RPN_PRE_NMS_TOP_N = 64
RPN_POST_NMS_TOP_N = 16
RPN_NMS_THRESHOLD = 0.7
BBOX_XFORM_CLIP = math.log(1000.0 / 16.0)   # clamp dw/dh before exp (standard Faster R-CNN)


# ---------------- fused Pallas kernel: transform + clip + exact greedy NMS ----------------
def _xform_clip(x1, y1, x2, y2, dx, dy, dw, dh):
    """bbox_transform + bbox_clip on broadcast-compatible coordinate slabs."""
    w = x2 - x1 + 1.0
    h = y2 - y1 + 1.0
    cx = x1 + 0.5 * w
    cy = y1 + 0.5 * h
    pcx = dx * w + cx
    pcy = dy * h + cy
    pw = jnp.exp(jnp.minimum(dw, BBOX_XFORM_CLIP)) * w      # EUP slot
    ph = jnp.exp(jnp.minimum(dh, BBOX_XFORM_CLIP)) * h
    hi = float(IMG_SIZE - 1)
    bx1 = jnp.clip(pcx - 0.5 * pw, 0.0, hi)
    by1 = jnp.clip(pcy - 0.5 * ph, 0.0, hi)
    bx2 = jnp.clip(pcx + 0.5 * pw, 0.0, hi)
    by2 = jnp.clip(pcy + 0.5 * ph, 0.0, hi)
    return bx1, by1, bx2, by2


def _proposal_kernel(a_cm_ref, c_cm_ref, a_am_ref, c_am_ref,
                     boxes_ref, keep_ref, sup_ref):
    n, _, k = a_cm_ref.shape

    # ---- transform + clip, column orientation (boxes along lanes) ----
    a = a_cm_ref[...]                                      # (N, 4, K)
    c = c_cm_ref[...]
    bx1c, by1c, bx2c, by2c = _xform_clip(
        a[:, 0:1, :], a[:, 1:2, :], a[:, 2:3, :], a[:, 3:4, :],
        c[:, 0:1, :], c[:, 1:2, :], c[:, 2:3, :], c[:, 3:4, :])       # (N, 1, K)
    # coords-major clipped boxes output (reused by the final RoI gather in JAX)
    boxes_ref[:, 0:1, :] = bx1c
    boxes_ref[:, 1:2, :] = by1c
    boxes_ref[:, 2:3, :] = bx2c
    boxes_ref[:, 3:4, :] = by2c

    # ---- transform + clip, row orientation (boxes along sublanes) ----
    # Recomputing the (tiny) transform from the anchor-major inputs avoids any
    # in-kernel transpose of odd-shaped tiles.
    a2 = a_am_ref[...]                                     # (N, K, 4)
    c2 = c_am_ref[...]
    bx1r, by1r, bx2r, by2r = _xform_clip(
        a2[:, :, 0:1], a2[:, :, 1:2], a2[:, :, 2:3], a2[:, :, 3:4],
        c2[:, :, 0:1], c2[:, :, 1:2], c2[:, :, 2:3], c2[:, :, 3:4])   # (N, K, 1)

    # ---- exact binary suppression matrix (no divide, no reciprocal) ----
    iw = jnp.maximum(jnp.minimum(bx2r, bx2c) - jnp.maximum(bx1r, bx1c) + 1.0, 0.0)
    ih = jnp.maximum(jnp.minimum(by2r, by2c) - jnp.maximum(by1r, by1c) + 1.0, 0.0)
    inter = iw * ih                                        # (N, K, K)
    area_r = (bx2r - bx1r + 1.0) * (by2r - by1r + 1.0)     # (N, K, 1)
    area_c = (bx2c - bx1c + 1.0) * (by2c - by1c + 1.0)     # (N, 1, K)
    union = area_r + area_c - inter
    row_ids = lax.broadcasted_iota(jnp.int32, (1, k, 1), 1)
    col_ids = lax.broadcasted_iota(jnp.int32, (1, 1, k), 2)
    sup = jnp.where((inter > RPN_NMS_THRESHOLD * union) & (col_ids > row_ids),
                    1.0, 0.0)                              # (N, K, K) in {0,1}
    sup_ref[...] = sup

    # ---- greedy NMS, fully unrolled (static trip count K) ----
    # Only loop-carried state is the (N,1,K) keep mask; per iteration: one static
    # sublane-row load from the VMEM scratch, one static lane extract, 3 VALU ops.
    keep = jnp.ones((n, 1, k), jnp.float32)
    for i in range(k):
        row = sup_ref[:, i:i + 1, :]                       # (N, 1, K) static slice
        ki = keep[:, :, i:i + 1]                           # (N, 1, 1) static lane extract
        keep = keep * (1.0 - row * ki)
    keep_ref[...] = keep


def _proposal_pallas(anchors_cm, coeff_cm, anchors_am, coeff_am):
    """Inputs: (N,4,K) coords-major and (N,K,4) anchor-major gathered anchors/coeffs.
    Returns clipped boxes (N,4,K) and keep mask (N,1,K)."""
    N, _, K = anchors_cm.shape
    return pl.pallas_call(
        _proposal_kernel,
        out_shape=(jax.ShapeDtypeStruct((N, 4, K), jnp.float32),
                   jax.ShapeDtypeStruct((N, 1, K), jnp.float32)),
        scratch_shapes=[pltpu.VMEM((N, K, K), jnp.float32)],
    )(anchors_cm, coeff_cm, anchors_am, coeff_am)


# ---------------- Proposal.forward ----------------
def proposal_forward(anchors, bbox_score, bbox_coeff):
    """
    anchors    : (A, 4)    f32
    bbox_score : (N, A, 2) f32  (channel 0 = foreground score)
    bbox_coeff : (N, A, 4) f32
    returns (roi_scores (N, M, 1), rois (N, M, 4)) with M = RPN_POST_NMS_TOP_N
    """
    N, A, _ = bbox_score.shape
    K = min(RPN_PRE_NMS_TOP_N, A)
    M = RPN_POST_NMS_TOP_N

    # 1) top-K by foreground score (plain JAX), then gather the tiny raw inputs.
    fg = bbox_score[:, :, 0]                                   # (N, A)
    _, top_idx = lax.top_k(fg, K)                              # (N, K) descending
    score_top = jnp.take_along_axis(bbox_score[:, :, 0:1],
                                    top_idx[:, :, None], axis=1)          # (N, K, 1)

    anchors_am = anchors.astype(jnp.float32)[top_idx]                      # (N, K, 4)
    coeff_am = jnp.take_along_axis(bbox_coeff.astype(jnp.float32),
                                   top_idx[:, :, None], axis=1)            # (N, K, 4)
    anchors_cm = jnp.swapaxes(anchors_am, 1, 2)                            # (N, 4, K)
    coeff_cm = jnp.swapaxes(coeff_am, 1, 2)                                # (N, 4, K)

    # 2) fused Pallas kernel: transform + clip + greedy NMS on the K selected boxes.
    boxes_cm, keep3 = _proposal_pallas(anchors_cm, coeff_cm, anchors_am, coeff_am)
    keep = keep3[:, 0, :]                                      # (N, K), 1.0 = kept

    # 3) select first M kept boxes (in score order), pad if fewer than M kept.
    # TODO(synk): torch pads the short keep list with randint-sampled kept indices;
    # here we pad deterministically by cycling the kept indices.
    order = jnp.argsort(1.0 - keep, axis=1, stable=True)       # kept first, score order
    num_kept = jnp.maximum(jnp.sum(keep, axis=1).astype(jnp.int32), 1)     # (N,)
    m = jnp.arange(M, dtype=jnp.int32)[None, :]                # (1, M)
    sel = jnp.where(m < num_kept[:, None], m, m % num_kept[:, None])       # (N, M)
    keep_idx = jnp.take_along_axis(order, sel, axis=1)         # (N, M)

    roi_scores = jnp.take_along_axis(score_top, keep_idx[:, :, None], axis=1)   # (N, M, 1)
    rois = jnp.swapaxes(
        jnp.take_along_axis(boxes_cm, keep_idx[:, None, :], axis=2), 1, 2)      # (N, M, 4)
    return roi_scores, rois


# ---------------- anchor generation (deterministic, in-script) ----------------
def generate_anchors(img_size=IMG_SIZE, stride=STRIDE,
                     scales=(8.0, 16.0, 32.0), ratios=(0.5, 1.0, 2.0)):
    fs = img_size // stride
    out = []
    for iy in range(fs):
        for ix in range(fs):
            cx = ix * stride + stride / 2.0
            cy = iy * stride + stride / 2.0
            for r in ratios:
                for s in scales:
                    w = s * (r ** 0.5)
                    h = s / (r ** 0.5)
                    out.append([cx - 0.5 * w, cy - 0.5 * h,
                                cx + 0.5 * w, cy + 0.5 * h])
    return jnp.asarray(out, dtype=jnp.float32)                 # (fs*fs*9, 4)


if __name__ == "__main__":
    key = jax.random.PRNGKey(0)
    k_score, k_coeff = jax.random.split(key)

    anchors = generate_anchors()          # (144, 4) for a 64x64 image, stride 16
    A = anchors.shape[0]
    N = 2

    logits = jax.random.normal(k_score, (N, A, 2), dtype=jnp.float32)
    bbox_score = jax.nn.softmax(logits, axis=-1)                    # (N, A, 2)
    bbox_coeff = 0.1 * jax.random.normal(k_coeff, (N, A, 4), dtype=jnp.float32)

    roi_scores, rois = jax.jit(proposal_forward)(anchors, bbox_score, bbox_coeff)
    jax.block_until_ready((roi_scores, rois))

    assert roi_scores.shape == (N, RPN_POST_NMS_TOP_N, 1)
    assert rois.shape == (N, RPN_POST_NMS_TOP_N, 4)
    assert bool(jnp.all(jnp.isfinite(roi_scores))) and bool(jnp.all(jnp.isfinite(rois)))
    assert bool(jnp.all(rois >= 0.0)) and bool(jnp.all(rois <= IMG_SIZE - 1))

    print("KERNEL_OK")
</pallas_src>

<mosaic_0001>
module attributes {stable_mosaic.version = 11 : i64} {
  func.func @_proposal_kernel(%arg0: memref<2x4x64xf32, #tpu.memory_space<vmem>>, %arg1: memref<2x4x64xf32, #tpu.memory_space<vmem>>, %arg2: memref<2x64x4xf32, #tpu.memory_space<vmem>>, %arg3: memref<2x64x4xf32, #tpu.memory_space<vmem>>, %arg4: memref<2x4x64xf32, #tpu.memory_space<vmem>>, %arg5: memref<2x1x64xf32, #tpu.memory_space<vmem>>, %arg6: memref<2x64x64xf32, #tpu.memory_space<vmem>>) attributes {dimension_semantics = [], scalar_prefetch = 0 : i64, scratch_operands = 1 : i64, tpu.core_type = #tpu.core_type<tc>} {
    %c0 = arith.constant 0 : index
    %c0_0 = arith.constant 0 : index
    %c0_1 = arith.constant 0 : index
    %0 = vector.load %arg0[%c0, %c0_0, %c0_1] : memref<2x4x64xf32, #tpu.memory_space<vmem>>, vector<2x4x64xf32>
    %c0_2 = arith.constant 0 : index
    %c0_3 = arith.constant 0 : index
    %c0_4 = arith.constant 0 : index
    %1 = vector.load %arg1[%c0_2, %c0_3, %c0_4] : memref<2x4x64xf32, #tpu.memory_space<vmem>>, vector<2x4x64xf32>
    %2 = vector.extract_strided_slice %0 {offsets = [0, 0, 0], sizes = [2, 1, 64], strides = [1, 1, 1]} : vector<2x4x64xf32> to vector<2x1x64xf32>
    %3 = vector.extract_strided_slice %0 {offsets = [0, 1, 0], sizes = [2, 1, 64], strides = [1, 1, 1]} : vector<2x4x64xf32> to vector<2x1x64xf32>
    %4 = vector.extract_strided_slice %0 {offsets = [0, 2, 0], sizes = [2, 1, 64], strides = [1, 1, 1]} : vector<2x4x64xf32> to vector<2x1x64xf32>
    %5 = vector.extract_strided_slice %0 {offsets = [0, 3, 0], sizes = [2, 1, 64], strides = [1, 1, 1]} : vector<2x4x64xf32> to vector<2x1x64xf32>
    %6 = vector.extract_strided_slice %1 {offsets = [0, 0, 0], sizes = [2, 1, 64], strides = [1, 1, 1]} : vector<2x4x64xf32> to vector<2x1x64xf32>
    %7 = vector.extract_strided_slice %1 {offsets = [0, 1, 0], sizes = [2, 1, 64], strides = [1, 1, 1]} : vector<2x4x64xf32> to vector<2x1x64xf32>
    %8 = vector.extract_strided_slice %1 {offsets = [0, 2, 0], sizes = [2, 1, 64], strides = [1, 1, 1]} : vector<2x4x64xf32> to vector<2x1x64xf32>
    %9 = vector.extract_strided_slice %1 {offsets = [0, 3, 0], sizes = [2, 1, 64], strides = [1, 1, 1]} : vector<2x4x64xf32> to vector<2x1x64xf32>
    %10 = arith.subf %4, %2 : vector<2x1x64xf32>
    %cst = arith.constant 1.000000e+00 : f32
    %11 = vector.broadcast %cst : f32 to vector<2x1x64xf32>
    %12 = arith.addf %10, %11 : vector<2x1x64xf32>
    %13 = arith.subf %5, %3 : vector<2x1x64xf32>
    %cst_5 = arith.constant 1.000000e+00 : f32
    %14 = vector.broadcast %cst_5 : f32 to vector<2x1x64xf32>
    %15 = arith.addf %13, %14 : vector<2x1x64xf32>
    %cst_6 = arith.constant 5.000000e-01 : f32
    %16 = vector.broadcast %cst_6 : f32 to vector<2x1x64xf32>
    %17 = arith.mulf %16, %12 : vector<2x1x64xf32>
    %18 = arith.addf %2, %17 : vector<2x1x64xf32>
    %cst_7 = arith.constant 5.000000e-01 : f32
    %19 = vector.broadcast %cst_7 : f32 to vector<2x1x64xf32>
    %20 = arith.mulf %19, %15 : vector<2x1x64xf32>
    %21 = arith.addf %3, %20 : vector<2x1x64xf32>
    %22 = arith.mulf %6, %12 : vector<2x1x64xf32>
    %23 = arith.addf %22, %18 : vector<2x1x64xf32>
    %24 = arith.mulf %7, %15 : vector<2x1x64xf32>
    %25 = arith.addf %24, %21 : vector<2x1x64xf32>
    %cst_8 = arith.constant 4.13516665 : f32
    %26 = vector.broadcast %cst_8 : f32 to vector<2x1x64xf32>
    %27 = arith.minimumf %8, %26 : vector<2x1x64xf32>
    %28 = math.exp %27 : vector<2x1x64xf32>
    %29 = arith.mulf %28, %12 : vector<2x1x64xf32>
    %cst_9 = arith.constant 4.13516665 : f32
    %30 = vector.broadcast %cst_9 : f32 to vector<2x1x64xf32>
    %31 = arith.minimumf %9, %30 : vector<2x1x64xf32>
    %32 = math.exp %31 : vector<2x1x64xf32>
    %33 = arith.mulf %32, %15 : vector<2x1x64xf32>
    %cst_10 = arith.constant 5.000000e-01 : f32
    %34 = vector.broadcast %cst_10 : f32 to vector<2x1x64xf32>
    %35 = arith.mulf %34, %29 : vector<2x1x64xf32>
    %36 = arith.subf %23, %35 : vector<2x1x64xf32>
    %cst_11 = arith.constant 0.000000e+00 : f32
    %cst_12 = arith.constant 6.300000e+01 : f32
    %37 = vector.broadcast %cst_11 : f32 to vector<2x1x64xf32>
    %38 = arith.maximumf %37, %36 : vector<2x1x64xf32>
    %39 = vector.broadcast %cst_12 : f32 to vector<2x1x64xf32>
    %40 = arith.minimumf %39, %38 : vector<2x1x64xf32>
    %cst_13 = arith.constant 5.000000e-01 : f32
    %41 = vector.broadcast %cst_13 : f32 to vector<2x1x64xf32>
    %42 = arith.mulf %41, %33 : vector<2x1x64xf32>
    %43 = arith.subf %25, %42 : vector<2x1x64xf32>
    %cst_14 = arith.constant 0.000000e+00 : f32
    %cst_15 = arith.constant 6.300000e+01 : f32
    %44 = vector.broadcast %cst_14 : f32 to vector<2x1x64xf32>
    %45 = arith.maximumf %44, %43 : vector<2x1x64xf32>
    %46 = vector.broadcast %cst_15 : f32 to vector<2x1x64xf32>
    %47 = arith.minimumf %46, %45 : vector<2x1x64xf32>
    %cst_16 = arith.constant 5.000000e-01 : f32
    %48 = vector.broadcast %cst_16 : f32 to vector<2x1x64xf32>
    %49 = arith.mulf %48, %29 : vector<2x1x64xf32>
    %50 = arith.addf %23, %49 : vector<2x1x64xf32>
    %cst_17 = arith.constant 0.000000e+00 : f32
    %cst_18 = arith.constant 6.300000e+01 : f32
    %51 = vector.broadcast %cst_17 : f32 to vector<2x1x64xf32>
    %52 = arith.maximumf %51, %50 : vector<2x1x64xf32>
    %53 = vector.broadcast %cst_18 : f32 to vector<2x1x64xf32>
    %54 = arith.minimumf %53, %52 : vector<2x1x64xf32>
    %cst_19 = arith.constant 5.000000e-01 : f32
    %55 = vector.broadcast %cst_19 : f32 to vector<2x1x64xf32>
    %56 = arith.mulf %55, %33 : vector<2x1x64xf32>
    %57 = arith.addf %25, %56 : vector<2x1x64xf32>
    %cst_20 = arith.constant 0.000000e+00 : f32
    %cst_21 = arith.constant 6.300000e+01 : f32
    %58 = vector.broadcast %cst_20 : f32 to vector<2x1x64xf32>
    %59 = arith.maximumf %58, %57 : vector<2x1x64xf32>
    %60 = vector.broadcast %cst_21 : f32 to vector<2x1x64xf32>
    %61 = arith.minimumf %60, %59 : vector<2x1x64xf32>
    %c0_22 = arith.constant 0 : index
    %c0_23 = arith.constant 0 : index
    %c0_24 = arith.constant 0 : index
    %62 = vector.load %arg4[%c0_22, %c0_23, %c0_24] : memref<2x4x64xf32, #tpu.memory_space<vmem>>, vector<2x1x64xf32>
    tpu.vector_store %arg4[%c0_22, %c0_23, %c0_24], %40 {strides = array<i32>} : memref<2x4x64xf32, #tpu.memory_space<vmem>>, vector<2x1x64xf32>,
    %c0_25 = arith.constant 0 : index
    %c1 = arith.constant 1 : index
    %c0_26 = arith.constant 0 : index
    %63 = vector.load %arg4[%c0_25, %c1, %c0_26] : memref<2x4x64xf32, #tpu.memory_space<vmem>>, vector<2x1x64xf32>
    tpu.vector_store %arg4[%c0_25, %c1, %c0_26], %47 {strides = array<i32>} : memref<2x4x64xf32, #tpu.memory_space<vmem>>, vector<2x1x64xf32>,
    %c0_27 = arith.constant 0 : index
    %c2 = arith.constant 2 : index
    %c0_28 = arith.constant 0 : index
    %64 = vector.load %arg4[%c0_27, %c2, %c0_28] : memref<2x4x64xf32, #tpu.memory_space<vmem>>, vector<2x1x64xf32>
    tpu.vector_store %arg4[%c0_27, %c2, %c0_28], %54 {strides = array<i32>} : memref<2x4x64xf32, #tpu.memory_space<vmem>>, vector<2x1x64xf32>,
    %c0_29 = arith.constant 0 : index
    %c3 = arith.constant 3 : index
    %c0_30 = arith.constant 0 : index
    %65 = vector.load %arg4[%c0_29, %c3, %c0_30] : memref<2x4x64xf32, #tpu.memory_space<vmem>>, vector<2x1x64xf32>
    tpu.vector_store %arg4[%c0_29, %c3, %c0_30], %61 {strides = array<i32>} : memref<2x4x64xf32, #tpu.memory_space<vmem>>, vector<2x1x64xf32>,
    %c0_31 = arith.constant 0 : index
    %c0_32 = arith.constant 0 : index
    %c0_33 = arith.constant 0 : index
    %66 = vector.load %arg2[%c0_31, %c0_32, %c0_33] : memref<2x64x4xf32, #tpu.memory_space<vmem>>, vector<2x64x4xf32>
    %c0_34 = arith.constant 0 : index
    %c0_35 = arith.constant 0 : index
    %c0_36 = arith.constant 0 : index
    %67 = vector.load %arg3[%c0_34, %c0_35, %c0_36] : memref<2x64x4xf32, #tpu.memory_space<vmem>>, vector<2x64x4xf32>
    %68 = vector.extract_strided_slice %66 {offsets = [0, 0, 0], sizes = [2, 64, 1], strides = [1, 1, 1]} : vector<2x64x4xf32> to vector<2x64x1xf32>
    %69 = vector.extract_strided_slice %66 {offsets = [0, 0, 1], sizes = [2, 64, 1], strides = [1, 1, 1]} : vector<2x64x4xf32> to vector<2x64x1xf32>
    %70 = vector.extract_strided_slice %66 {offsets = [0, 0, 2], sizes = [2, 64, 1], strides = [1, 1, 1]} : vector<2x64x4xf32> to vector<2x64x1xf32>
    %71 = vector.extract_strided_slice %66 {offsets = [0, 0, 3], sizes = [2, 64, 1], strides = [1, 1, 1]} : vector<2x64x4xf32> to vector<2x64x1xf32>
    %72 = vector.extract_strided_slice %67 {offsets = [0, 0, 0], sizes = [2, 64, 1], strides = [1, 1, 1]} : vector<2x64x4xf32> to vector<2x64x1xf32>
    %73 = vector.extract_strided_slice %67 {offsets = [0, 0, 1], sizes = [2, 64, 1], strides = [1, 1, 1]} : vector<2x64x4xf32> to vector<2x64x1xf32>
    %74 = vector.extract_strided_slice %67 {offsets = [0, 0, 2], sizes = [2, 64, 1], strides = [1, 1, 1]} : vector<2x64x4xf32> to vector<2x64x1xf32>
    %75 = vector.extract_strided_slice %67 {offsets = [0, 0, 3], sizes = [2, 64, 1], strides = [1, 1, 1]} : vector<2x64x4xf32> to vector<2x64x1xf32>
    %76 = arith.subf %70, %68 : vector<2x64x1xf32>
    %cst_37 = arith.constant 1.000000e+00 : f32
    %77 = vector.broadcast %cst_37 : f32 to vector<2x64x1xf32>
    %78 = arith.addf %76, %77 : vector<2x64x1xf32>
    %79 = arith.subf %71, %69 : vector<2x64x1xf32>
    %cst_38 = arith.constant 1.000000e+00 : f32
    %80 = vector.broadcast %cst_38 : f32 to vector<2x64x1xf32>
    %81 = arith.addf %79, %80 : vector<2x64x1xf32>
    %cst_39 = arith.constant 5.000000e-01 : f32
    %82 = vector.broadcast %cst_39 : f32 to vector<2x64x1xf32>
    %83 = arith.mulf %82, %78 : vector<2x64x1xf32>
    %84 = arith.addf %68, %83 : vector<2x64x1xf32>
    %cst_40 = arith.constant 5.000000e-01 : f32
    %85 = vector.broadcast %cst_40 : f32 to vector<2x64x1xf32>
    %86 = arith.mulf %85, %81 : vector<2x64x1xf32>
    %87 = arith.addf %69, %86 : vector<2x64x1xf32>
    %88 = arith.mulf %72, %78 : vector<2x64x1xf32>
    %89 = arith.addf %88, %84 : vector<2x64x1xf32>
    %90 = arith.mulf %73, %81 : vector<2x64x1xf32>
    %91 = arith.addf %90, %87 : vector<2x64x1xf32>
    %cst_41 = arith.constant 4.13516665 : f32
    %92 = vector.broadcast %cst_41 : f32 to vector<2x64x1xf32>
    %93 = arith.minimumf %74, %92 : vector<2x64x1xf32>
    %94 = math.exp %93 : vector<2x64x1xf32>
    %95 = arith.mulf %94, %78 : vector<2x64x1xf32>
    %cst_42 = arith.constant 4.13516665 : f32
    %96 = vector.broadcast %cst_42 : f32 to vector<2x64x1xf32>
    %97 = arith.minimumf %75, %96 : vector<2x64x1xf32>
    %98 = math.exp %97 : vector<2x64x1xf32>
    %99 = arith.mulf %98, %81 : vector<2x64x1xf32>
    %cst_43 = arith.constant 5.000000e-01 : f32
    %100 = vector.broadcast %cst_43 : f32 to vector<2x64x1xf32>
    %101 = arith.mulf %100, %95 : vector<2x64x1xf32>
    %102 = arith.subf %89, %101 : vector<2x64x1xf32>
    %cst_44 = arith.constant 0.000000e+00 : f32
    %cst_45 = arith.constant 6.300000e+01 : f32
    %103 = vector.broadcast %cst_44 : f32 to vector<2x64x1xf32>
    %104 = arith.maximumf %103, %102 : vector<2x64x1xf32>
    %105 = vector.broadcast %cst_45 : f32 to vector<2x64x1xf32>
    %106 = arith.minimumf %105, %104 : vector<2x64x1xf32>
    %cst_46 = arith.constant 5.000000e-01 : f32
    %107 = vector.broadcast %cst_46 : f32 to vector<2x64x1xf32>
    %108 = arith.mulf %107, %99 : vector<2x64x1xf32>
    %109 = arith.subf %91, %108 : vector<2x64x1xf32>
    %cst_47 = arith.constant 0.000000e+00 : f32
    %cst_48 = arith.constant 6.300000e+01 : f32
    %110 = vector.broadcast %cst_47 : f32 to vector<2x64x1xf32>
    %111 = arith.maximumf %110, %109 : vector<2x64x1xf32>
    %112 = vector.broadcast %cst_48 : f32 to vector<2x64x1xf32>
    %113 = arith.minimumf %112, %111 : vector<2x64x1xf32>
    %cst_49 = arith.constant 5.000000e-01 : f32
    %114 = vector.broadcast %cst_49 : f32 to vector<2x64x1xf32>
    %115 = arith.mulf %114, %95 : vector<2x64x1xf32>
    %116 = arith.addf %89, %115 : vector<2x64x1xf32>
    %cst_50 = arith.constant 0.000000e+00 : f32
    %cst_51 = arith.constant 6.300000e+01 : f32
    %117 = vector.broadcast %cst_50 : f32 to vector<2x64x1xf32>
    %118 = arith.maximumf %117, %116 : vector<2x64x1xf32>
    %119 = vector.broadcast %cst_51 : f32 to vector<2x64x1xf32>
    %120 = arith.minimumf %119, %118 : vector<2x64x1xf32>
    %cst_52 = arith.constant 5.000000e-01 : f32
    %121 = vector.broadcast %cst_52 : f32 to vector<2x64x1xf32>
    %122 = arith.mulf %121, %99 : vector<2x64x1xf32>
    %123 = arith.addf %91, %122 : vector<2x64x1xf32>
    %cst_53 = arith.constant 0.000000e+00 : f32
    %cst_54 = arith.constant 6.300000e+01 : f32
    %124 = vector.broadcast %cst_53 : f32 to vector<2x64x1xf32>
    %125 = arith.maximumf %124, %123 : vector<2x64x1xf32>
    %126 = vector.broadcast %cst_54 : f32 to vector<2x64x1xf32>
    %127 = arith.minimumf %126, %125 : vector<2x64x1xf32>
    %128 = vector.broadcast %120 : vector<2x64x1xf32> to vector<2x64x64xf32>
    %129 = vector.broadcast %54 : vector<2x1x64xf32> to vector<2x64x64xf32>
    %130 = arith.minimumf %128, %129 : vector<2x64x64xf32>
    %131 = vector.broadcast %106 : vector<2x64x1xf32> to vector<2x64x64xf32>
    %132 = vector.broadcast %40 : vector<2x1x64xf32> to vector<2x64x64xf32>
    %133 = arith.maximumf %131, %132 : vector<2x64x64xf32>
    %134 = arith.subf %130, %133 : vector<2x64x64xf32>
    %cst_55 = arith.constant 1.000000e+00 : f32
    %135 = vector.broadcast %cst_55 : f32 to vector<2x64x64xf32>
    %136 = arith.addf %134, %135 : vector<2x64x64xf32>
    %cst_56 = arith.constant 0.000000e+00 : f32
    %137 = vector.broadcast %cst_56 : f32 to vector<2x64x64xf32>
    %138 = arith.maximumf %136, %137 : vector<2x64x64xf32>
    %139 = vector.broadcast %127 : vector<2x64x1xf32> to vector<2x64x64xf32>
    %140 = vector.broadcast %61 : vector<2x1x64xf32> to vector<2x64x64xf32>
    %141 = arith.minimumf %139, %140 : vector<2x64x64xf32>
    %142 = vector.broadcast %113 : vector<2x64x1xf32> to vector<2x64x64xf32>
    %143 = vector.broadcast %47 : vector<2x1x64xf32> to vector<2x64x64xf32>
    %144 = arith.maximumf %142, %143 : vector<2x64x64xf32>
    %145 = arith.subf %141, %144 : vector<2x64x64xf32>
    %cst_57 = arith.constant 1.000000e+00 : f32
    %146 = vector.broadcast %cst_57 : f32 to vector<2x64x64xf32>
    %147 = arith.addf %145, %146 : vector<2x64x64xf32>
    %cst_58 = arith.constant 0.000000e+00 : f32
    %148 = vector.broadcast %cst_58 : f32 to vector<2x64x64xf32>
    %149 = arith.maximumf %147, %148 : vector<2x64x64xf32>
    %150 = arith.mulf %138, %149 : vector<2x64x64xf32>
    %151 = arith.subf %120, %106 : vector<2x64x1xf32>
    %cst_59 = arith.constant 1.000000e+00 : f32
    %152 = vector.broadcast %cst_59 : f32 to vector<2x64x1xf32>
    %153 = arith.addf %151, %152 : vector<2x64x1xf32>
    %154 = arith.subf %127, %113 : vector<2x64x1xf32>
    %cst_60 = arith.constant 1.000000e+00 : f32
    %155 = vector.broadcast %cst_60 : f32 to vector<2x64x1xf32>
    %156 = arith.addf %154, %155 : vector<2x64x1xf32>
    %157 = arith.mulf %153, %156 : vector<2x64x1xf32>
    %158 = arith.subf %54, %40 : vector<2x1x64xf32>
    %cst_61 = arith.constant 1.000000e+00 : f32
    %159 = vector.broadcast %cst_61 : f32 to vector<2x1x64xf32>
    %160 = arith.addf %158, %159 : vector<2x1x64xf32>
    %161 = arith.subf %61, %47 : vector<2x1x64xf32>
    %cst_62 = arith.constant 1.000000e+00 : f32
    %162 = vector.broadcast %cst_62 : f32 to vector<2x1x64xf32>
    %163 = arith.addf %161, %162 : vector<2x1x64xf32>
    %164 = arith.mulf %160, %163 : vector<2x1x64xf32>
    %165 = vector.broadcast %157 : vector<2x64x1xf32> to vector<2x64x64xf32>
    %166 = vector.broadcast %164 : vector<2x1x64xf32> to vector<2x64x64xf32>
    %167 = arith.addf %165, %166 : vector<2x64x64xf32>
    %168 = arith.subf %167, %150 : vector<2x64x64xf32>
    %169 = tpu.iota {dimensions = array<i32: 1>} : vector<1x64x1xi32>
    %170 = tpu.iota {dimensions = array<i32: 2>} : vector<1x1x64xi32>
    %cst_63 = arith.constant 0.699999988 : f32
    %171 = vector.broadcast %cst_63 : f32 to vector<2x64x64xf32>
    %172 = arith.mulf %171, %168 : vector<2x64x64xf32>
    %173 = arith.cmpf ogt, %150, %172 : vector<2x64x64xf32>
    %174 = vector.broadcast %170 : vector<1x1x64xi32> to vector<1x64x64xi32>
    %175 = vector.broadcast %169 : vector<1x64x1xi32> to vector<1x64x64xi32>
    %176 = arith.cmpi sgt, %174, %175 : vector<1x64x64xi32>
    %177 = vector.broadcast %176 : vector<1x64x64xi1> to vector<2x64x64xi1>
    %178 = arith.andi %173, %177 : vector<2x64x64xi1>
    %cst_64 = arith.constant 1.000000e+00 : f32
    %cst_65 = arith.constant 0.000000e+00 : f32
    %179 = vector.broadcast %cst_64 : f32 to vector<2x64x64xf32>
    %180 = vector.broadcast %cst_65 : f32 to vector<2x64x64xf32>
    %181 = arith.select %178, %179, %180 : vector<2x64x64xi1>, vector<2x64x64xf32>
    %c0_66 = arith.constant 0 : index
    %c0_67 = arith.constant 0 : index
    %c0_68 = arith.constant 0 : index
    %182 = vector.load %arg6[%c0_66, %c0_67, %c0_68] : memref<2x64x64xf32, #tpu.memory_space<vmem>>, vector<2x64x64xf32>
    tpu.vector_store %arg6[%c0_66, %c0_67, %c0_68], %181 {strides = array<i32>} : memref<2x64x64xf32, #tpu.memory_space<vmem>>, vector<2x64x64xf32>,
    %cst_69 = arith.constant 1.000000e+00 : f32
    %183 = vector.broadcast %cst_69 : f32 to vector<2x1x64xf32>
    %c0_70 = arith.constant 0 : index
    %c0_71 = arith.constant 0 : index
    %c0_72 = arith.constant 0 : index
    %184 = vector.load %arg6[%c0_70, %c0_71, %c0_72] : memref<2x64x64xf32, #tpu.memory_space<vmem>>, vector<2x1x64xf32>
    %185 = vector.extract_strided_slice %183 {offsets = [0, 0, 0], sizes = [2, 1, 1], strides = [1, 1, 1]} : vector<2x1x64xf32> to vector<2x1x1xf32>
    %186 = vector.broadcast %185 : vector<2x1x1xf32> to vector<2x1x64xf32>
    %187 = arith.mulf %184, %186 : vector<2x1x64xf32>
    %cst_73 = arith.constant 1.000000e+00 : f32
    %188 = vector.broadcast %cst_73 : f32 to vector<2x1x64xf32>
    %189 = arith.subf %188, %187 : vector<2x1x64xf32>
    %190 = arith.mulf %183, %189 : vector<2x1x64xf32>
    %c0_74 = arith.constant 0 : index
    %c1_75 = arith.constant 1 : index
    %c0_76 = arith.constant 0 : index
    %191 = vector.load %arg6[%c0_74, %c1_75, %c0_76] : memref<2x64x64xf32, #tpu.memory_space<vmem>>, vector<2x1x64xf32>
    %192 = vector.extract_strided_slice %190 {offsets = [0, 0, 1], sizes = [2, 1, 1], strides = [1, 1, 1]} : vector<2x1x64xf32> to vector<2x1x1xf32>
    %193 = vector.broadcast %192 : vector<2x1x1xf32> to vector<2x1x64xf32>
    %194 = arith.mulf %191, %193 : vector<2x1x64xf32>
    %cst_77 = arith.constant 1.000000e+00 : f32
    %195 = vector.broadcast %cst_77 : f32 to vector<2x1x64xf32>
    %196 = arith.subf %195, %194 : vector<2x1x64xf32>
    %197 = arith.mulf %190, %196 : vector<2x1x64xf32>
    %c0_78 = arith.constant 0 : index
    %c2_79 = arith.constant 2 : index
    %c0_80 = arith.constant 0 : index
    %198 = vector.load %arg6[%c0_78, %c2_79, %c0_80] : memref<2x64x64xf32, #tpu.memory_space<vmem>>, vector<2x1x64xf32>
    %199 = vector.extract_strided_slice %197 {offsets = [0, 0, 2], sizes = [2, 1, 1], strides = [1, 1, 1]} : vector<2x1x64xf32> to vector<2x1x1xf32>
    %200 = vector.broadcast %199 : vector<2x1x1xf32> to vector<2x1x64xf32>
    %201 = arith.mulf %198, %200 : vector<2x1x64xf32>
    %cst_81 = arith.constant 1.000000e+00 : f32
    %202 = vector.broadcast %cst_81 : f32 to vector<2x1x64xf32>
    %203 = arith.subf %202, %201 : vector<2x1x64xf32>
    %204 = arith.mulf %197, %203 : vector<2x1x64xf32>
    %c0_82 = arith.constant 0 : index
    %c3_83 = arith.constant 3 : index
    %c0_84 = arith.constant 0 : index
    %205 = vector.load %arg6[%c0_82, %c3_83, %c0_84] : memref<2x64x64xf32, #tpu.memory_space<vmem>>, vector<2x1x64xf32>
    %206 = vector.extract_strided_slice %204 {offsets = [0, 0, 3], sizes = [2, 1, 1], strides = [1, 1, 1]} : vector<2x1x64xf32> to vector<2x1x1xf32>
    %207 = vector.broadcast %206 : vector<2x1x1xf32> to vector<2x1x64xf32>
    %208 = arith.mulf %205, %207 : vector<2x1x64xf32>
    %cst_85 = arith.constant 1.000000e+00 : f32
    %209 = vector.broadcast %cst_85 : f32 to vector<2x1x64xf32>
    %210 = arith.subf %209, %208 : vector<2x1x64xf32>
    %211 = arith.mulf %204, %210 : vector<2x1x64xf32>
    %c0_86 = arith.constant 0 : index
    %c4 = arith.constant 4 : index
    %c0_87 = arith.constant 0 : index
    %212 = vector.load %arg6[%c0_86, %c4, %c0_87] : memref<2x64x64xf32, #tpu.memory_space<vmem>>, vector<2x1x64xf32>
    %213 = vector.extract_strided_slice %211 {offsets = [0, 0, 4], sizes = [2, 1, 1], strides = [1, 1, 1]} : vector<2x1x64xf32> to vector<2x1x1xf32>
    %214 = vector.broadcast %213 : vector<2x1x1xf32> to vector<2x1x64xf32>
    %215 = arith.mulf %212, %214 : vector<2x1x64xf32>
    %cst_88 = arith.constant 1.000000e+00 : f32
    %216 = vector.broadcast %cst_88 : f32 to vector<2x1x64xf32>
    %217 = arith.subf %216, %215 : vector<2x1x64xf32>
    %218 = arith.mulf %211, %217 : vector<2x1x64xf32>
    %c0_89 = arith.constant 0 : index
    %c5 = arith.constant 5 : index
    %c0_90 = arith.constant 0 : index
    %219 = vector.load %arg6[%c0_89, %c5, %c0_90] : memref<2x64x64xf32, #tpu.memory_space<vmem>>, vector<2x1x64xf32>
    %220 = vector.extract_strided_slice %218 {offsets = [0, 0, 5], sizes = [2, 1, 1], strides = [1, 1, 1]} : vector<2x1x64xf32> to vector<2x1x1xf32>
    %221 = vector.broadcast %220 : vector<2x1x1xf32> to vector<2x1x64xf32>
    %222 = arith.mulf %219, %221 : vector<2x1x64xf32>
    %cst_91 = arith.constant 1.000000e+00 : f32
    %223 = vector.broadcast %cst_91 : f32 to vector<2x1x64xf32>
    %224 = arith.subf %223, %222 : vector<2x1x64xf32>
    %225 = arith.mulf %218, %224 : vector<2x1x64xf32>
    %c0_92 = arith.constant 0 : index
    %c6 = arith.constant 6 : index
    %c0_93 = arith.constant 0 : index
    %226 = vector.load %arg6[%c0_92, %c6, %c0_93] : memref<2x64x64xf32, #tpu.memory_space<vmem>>, vector<2x1x64xf32>
    %227 = vector.extract_strided_slice %225 {offsets = [0, 0, 6], sizes = [2, 1, 1], strides = [1, 1, 1]} : vector<2x1x64xf32> to vector<2x1x1xf32>
    %228 = vector.broadcast %227 : vector<2x1x1xf32> to vector<2x1x64xf32>
    %229 = arith.mulf %226, %228 : vector<2x1x64xf32>
    %cst_94 = arith.constant 1.000000e+00 : f32
    %230 = vector.broadcast %cst_94 : f32 to vector<2x1x64xf32>
    %231 = arith.subf %230, %229 : vector<2x1x64xf32>
    %232 = arith.mulf %225, %231 : vector<2x1x64xf32>
    %c0_95 = arith.constant 0 : index
    %c7 = arith.constant 7 : index
    %c0_96 = arith.constant 0 : index
    %233 = vector.load %arg6[%c0_95, %c7, %c0_96] : memref<2x64x64xf32, #tpu.memory_space<vmem>>, vector<2x1x64xf32>
    %234 = vector.extract_strided_slice %232 {offsets = [0, 0, 7], sizes = [2, 1, 1], strides = [1, 1, 1]} : vector<2x1x64xf32> to vector<2x1x1xf32>
    %235 = vector.broadcast %234 : vector<2x1x1xf32> to vector<2x1x64xf32>
    %236 = arith.mulf %233, %235 : vector<2x1x64xf32>
    %cst_97 = arith.constant 1.000000e+00 : f32
    %237 = vector.broadcast %cst_97 : f32 to vector<2x1x64xf32>
    %238 = arith.subf %237, %236 : vector<2x1x64xf32>
    %239 = arith.mulf %232, %238 : vector<2x1x64xf32>
    %c0_98 = arith.constant 0 : index
    %c8 = arith.constant 8 : index
    %c0_99 = arith.constant 0 : index
    %240 = vector.load %arg6[%c0_98, %c8, %c0_99] : memref<2x64x64xf32, #tpu.memory_space<vmem>>, vector<2x1x64xf32>
    %241 = vector.extract_strided_slice %239 {offsets = [0, 0, 8], sizes = [2, 1, 1], strides = [1, 1, 1]} : vector<2x1x64xf32> to vector<2x1x1xf32>
    %242 = vector.broadcast %241 : vector<2x1x1xf32> to vector<2x1x64xf32>
    %243 = arith.mulf %240, %242 : vector<2x1x64xf32>
    %cst_100 = arith.constant 1.000000e+00 : f32
    %244 = vector.broadcast %cst_100 : f32 to vector<2x1x64xf32>
    %245 = arith.subf %244, %243 : vector<2x1x64xf32>
    %246 = arith.mulf %239, %245 : vector<2x1x64xf32>
    %c0_101 = arith.constant 0 : index
    %c9 = arith.constant 9 : index
    %c0_102 = arith.constant 0 : index
    %247 = vector.load %arg6[%c0_101, %c9, %c0_102] : memref<2x64x64xf32, #tpu.memory_space<vmem>>, vector<2x1x64xf32>
    %248 = vector.extract_strided_slice %246 {offsets = [0, 0, 9], sizes = [2, 1, 1], strides = [1, 1, 1]} : vector<2x1x64xf32> to vector<2x1x1xf32>
    %249 = vector.broadcast %248 : vector<2x1x1xf32> to vector<2x1x64xf32>
    %250 = arith.mulf %247, %249 : vector<2x1x64xf32>
    %cst_103 = arith.constant 1.000000e+00 : f32
    %251 = vector.broadcast %cst_103 : f32 to vector<2x1x64xf32>
    %252 = arith.subf %251, %250 : vector<2x1x64xf32>
    %253 = arith.mulf %246, %252 : vector<2x1x64xf32>
    %c0_104 = arith.constant 0 : index
    %c10 = arith.constant 10 : index
    %c0_105 = arith.constant 0 : index
    %254 = vector.load %arg6[%c0_104, %c10, %c0_105] : memref<2x64x64xf32, #tpu.memory_space<vmem>>, vector<2x1x64xf32>
    %255 = vector.extract_strided_slice %253 {offsets = [0, 0, 10], sizes = [2, 1, 1], strides = [1, 1, 1]} : vector<2x1x64xf32> to vector<2x1x1xf32>
    %256 = vector.broadcast %255 : vector<2x1x1xf32> to vector<2x1x64xf32>
    %257 = arith.mulf %254, %256 : vector<2x1x64xf32>
    %cst_106 = arith.constant 1.000000e+00 : f32
    %258 = vector.broadcast %cst_106 : f32 to vector<2x1x64xf32>
    %259 = arith.subf %258, %257 : vector<2x1x64xf32>
    %260 = arith.mulf %253, %259 : vector<2x1x64xf32>
    %c0_107 = arith.constant 0 : index
    %c11 = arith.constant 11 : index
    %c0_108 = arith.constant 0 : index
    %261 = vector.load %arg6[%c0_107, %c11, %c0_108] : memref<2x64x64xf32, #tpu.memory_space<vmem>>, vector<2x1x64xf32>
    %262 = vector.extract_strided_slice %260 {offsets = [0, 0, 11], sizes = [2, 1, 1], strides = [1, 1, 1]} : vector<2x1x64xf32> to vector<2x1x1xf32>
    %263 = vector.broadcast %262 : vector<2x1x1xf32> to vector<2x1x64xf32>
    %264 = arith.mulf %261, %263 : vector<2x1x64xf32>
    %cst_109 = arith.constant 1.000000e+00 : f32
    %265 = vector.broadcast %cst_109 : f32 to vector<2x1x64xf32>
    %266 = arith.subf %265, %264 : vector<2x1x64xf32>
    %267 = arith.mulf %260, %266 : vector<2x1x64xf32>
    %c0_110 = arith.constant 0 : index
    %c12 = arith.constant 12 : index
    %c0_111 = arith.constant 0 : index
    %268 = vector.load %arg6[%c0_110, %c12, %c0_111] : memref<2x64x64xf32, #tpu.memory_space<vmem>>, vector<2x1x64xf32>
    %269 = vector.extract_strided_slice %267 {offsets = [0, 0, 12], sizes = [2, 1, 1], strides = [1, 1, 1]} : vector<2x1x64xf32> to vector<2x1x1xf32>
    %270 = vector.broadcast %269 : vector<2x1x1xf32> to vector<2x1x64xf32>
    %271 = arith.mulf %268, %270 : vector<2x1x64xf32>
    %cst_112 = arith.constant 1.000000e+00 : f32
    %272 = vector.broadcast %cst_112 : f32 to vector<2x1x64xf32>
    %273 = arith.subf %272, %271 : vector<2x1x64xf32>
    %274 = arith.mulf %267, %273 : vector<2x1x64xf32>
    %c0_113 = arith.constant 0 : index
    %c13 = arith.constant 13 : index
    %c0_114 = arith.constant 0 : index
    %275 = vector.load %arg6[%c0_113, %c13, %c0_114] : memref<2x64x64xf32, #tpu.memory_space<vmem>>, vector<2x1x64xf32>
    %276 = vector.extract_strided_slice %274 {offsets = [0, 0, 13], sizes = [2, 1, 1], strides = [1, 1, 1]} : vector<2x1x64xf32> to vector<2x1x1xf32>
    %277 = vector.broadcast %276 : vector<2x1x1xf32> to vector<2x1x64xf32>
    %278 = arith.mulf %275, %277 : vector<2x1x64xf32>
    %cst_115 = arith.constant 1.000000e+00 : f32
    %279 = vector.broadcast %cst_115 : f32 to vector<2x1x64xf32>
    %280 = arith.subf %279, %278 : vector<2x1x64xf32>
    %281 = arith.mulf %274, %280 : vector<2x1x64xf32>
    %c0_116 = arith.constant 0 : index
    %c14 = arith.constant 14 : index
    %c0_117 = arith.constant 0 : index
    %282 = vector.load %arg6[%c0_116, %c14, %c0_117] : memref<2x64x64xf32, #tpu.memory_space<vmem>>, vector<2x1x64xf32>
    %283 = vector.extract_strided_slice %281 {offsets = [0, 0, 14], sizes = [2, 1, 1], strides = [1, 1, 1]} : vector<2x1x64xf32> to vector<2x1x1xf32>
    %284 = vector.broadcast %283 : vector<2x1x1xf32> to vector<2x1x64xf32>
    %285 = arith.mulf %282, %284 : vector<2x1x64xf32>
    %cst_118 = arith.constant 1.000000e+00 : f32
    %286 = vector.broadcast %cst_118 : f32 to vector<2x1x64xf32>
    %287 = arith.subf %286, %285 : vector<2x1x64xf32>
    %288 = arith.mulf %281, %287 : vector<2x1x64xf32>
    %c0_119 = arith.constant 0 : index
    %c15 = arith.constant 15 : index
    %c0_120 = arith.constant 0 : index
    %289 = vector.load %arg6[%c0_119, %c15, %c0_120] : memref<2x64x64xf32, #tpu.memory_space<vmem>>, vector<2x1x64xf32>
    %290 = vector.extract_strided_slice %288 {offsets = [0, 0, 15], sizes = [2, 1, 1], strides = [1, 1, 1]} : vector<2x1x64xf32> to vector<2x1x1xf32>
    %291 = vector.broadcast %290 : vector<2x1x1xf32> to vector<2x1x64xf32>
    %292 = arith.mulf %289, %291 : vector<2x1x64xf32>
    %cst_121 = arith.constant 1.000000e+00 : f32
    %293 = vector.broadcast %cst_121 : f32 to vector<2x1x64xf32>
    %294 = arith.subf %293, %292 : vector<2x1x64xf32>
    %295 = arith.mulf %288, %294 : vector<2x1x64xf32>
    %c0_122 = arith.constant 0 : index
    %c16 = arith.constant 16 : index
    %c0_123 = arith.constant 0 : index
    %296 = vector.load %arg6[%c0_122, %c16, %c0_123] : memref<2x64x64xf32, #tpu.memory_space<vmem>>, vector<2x1x64xf32>
    %297 = vector.extract_strided_slice %295 {offsets = [0, 0, 16], sizes = [2, 1, 1], strides = [1, 1, 1]} : vector<2x1x64xf32> to vector<2x1x1xf32>
    %298 = vector.broadcast %297 : vector<2x1x1xf32> to vector<2x1x64xf32>
    %299 = arith.mulf %296, %298 : vector<2x1x64xf32>
    %cst_124 = arith.constant 1.000000e+00 : f32
    %300 = vector.broadcast %cst_124 : f32 to vector<2x1x64xf32>
    %301 = arith.subf %300, %299 : vector<2x1x64xf32>
    %302 = arith.mulf %295, %301 : vector<2x1x64xf32>
    %c0_125 = arith.constant 0 : index
    %c17 = arith.constant 17 : index
    %c0_126 = arith.constant 0 : index
    %303 = vector.load %arg6[%c0_125, %c17, %c0_126] : memref<2x64x64xf32, #tpu.memory_space<vmem>>, vector<2x1x64xf32>
    %304 = vector.extract_strided_slice %302 {offsets = [0, 0, 17], sizes = [2, 1, 1], strides = [1, 1, 1]} : vector<2x1x64xf32> to vector<2x1x1xf32>
    %305 = vector.broadcast %304 : vector<2x1x1xf32> to vector<2x1x64xf32>
    %306 = arith.mulf %303, %305 : vector<2x1x64xf32>
    %cst_127 = arith.constant 1.000000e+00 : f32
    %307 = vector.broadcast %cst_127 : f32 to vector<2x1x64xf32>
    %308 = arith.subf %307, %306 : vector<2x1x64xf32>
    %309 = arith.mulf %302, %308 : vector<2x1x64xf32>
    %c0_128 = arith.constant 0 : index
    %c18 = arith.constant 18 : index
    %c0_129 = arith.constant 0 : index
    %310 = vector.load %arg6[%c0_128, %c18, %c0_129] : memref<2x64x64xf32, #tpu.memory_space<vmem>>, vector<2x1x64xf32>
    %311 = vector.extract_strided_slice %309 {offsets = [0, 0, 18], sizes = [2, 1, 1], strides = [1, 1, 1]} : vector<2x1x64xf32> to vector<2x1x1xf32>
    %312 = vector.broadcast %311 : vector<2x1x1xf32> to vector<2x1x64xf32>
    %313 = arith.mulf %310, %312 : vector<2x1x64xf32>
    %cst_130 = arith.constant 1.000000e+00 : f32
    %314 = vector.broadcast %cst_130 : f32 to vector<2x1x64xf32>
    %315 = arith.subf %314, %313 : vector<2x1x64xf32>
    %316 = arith.mulf %309, %315 : vector<2x1x64xf32>
    %c0_131 = arith.constant 0 : index
    %c19 = arith.constant 19 : index
    %c0_132 = arith.constant 0 : index
    %317 = vector.load %arg6[%c0_131, %c19, %c0_132] : memref<2x64x64xf32, #tpu.memory_space<vmem>>, vector<2x1x64xf32>
    %318 = vector.extract_strided_slice %316 {offsets = [0, 0, 19], sizes = [2, 1, 1], strides = [1, 1, 1]} : vector<2x1x64xf32> to vector<2x1x1xf32>
    %319 = vector.broadcast %318 : vector<2x1x1xf32> to vector<2x1x64xf32>
    %320 = arith.mulf %317, %319 : vector<2x1x64xf32>
    %cst_133 = arith.constant 1.000000e+00 : f32
    %321 = vector.broadcast %cst_133 : f32 to vector<2x1x64xf32>
    %322 = arith.subf %321, %320 : vector<2x1x64xf32>
    %323 = arith.mulf %316, %322 : vector<2x1x64xf32>
    %c0_134 = arith.constant 0 : index
    %c20 = arith.constant 20 : index
    %c0_135 = arith.constant 0 : index
    %324 = vector.load %arg6[%c0_134, %c20, %c0_135] : memref<2x64x64xf32, #tpu.memory_space<vmem>>, vector<2x1x64xf32>
    %325 = vector.extract_strided_slice %323 {offsets = [0, 0, 20], sizes = [2, 1, 1], strides = [1, 1, 1]} : vector<2x1x64xf32> to vector<2x1x1xf32>
    %326 = vector.broadcast %325 : vector<2x1x1xf32> to vector<2x1x64xf32>
    %327 = arith.mulf %324, %326 : vector<2x1x64xf32>
    %cst_136 = arith.constant 1.000000e+00 : f32
    %328 = vector.broadcast %cst_136 : f32 to vector<2x1x64xf32>
    %329 = arith.subf %328, %327 : vector<2x1x64xf32>
    %330 = arith.mulf %323, %329 : vector<2x1x64xf32>
    %c0_137 = arith.constant 0 : index
    %c21 = arith.constant 21 : index
    %c0_138 = arith.constant 0 : index
    %331 = vector.load %arg6[%c0_137, %c21, %c0_138] : memref<2x64x64xf32, #tpu.memory_space<vmem>>, vector<2x1x64xf32>
    %332 = vector.extract_strided_slice %330 {offsets = [0, 0, 21], sizes = [2, 1, 1], strides = [1, 1, 1]} : vector<2x1x64xf32> to vector<2x1x1xf32>
    %333 = vector.broadcast %332 : vector<2x1x1xf32> to vector<2x1x64xf32>
    %334 = arith.mulf %331, %333 : vector<2x1x64xf32>
    %cst_139 = arith.constant 1.000000e+00 : f32
    %335 = vector.broadcast %cst_139 : f32 to vector<2x1x64xf32>
    %336 = arith.subf %335, %334 : vector<2x1x64xf32>
    %337 = arith.mulf %330, %336 : vector<2x1x64xf32>
    %c0_140 = arith.constant 0 : index
    %c22 = arith.constant 22 : index
    %c0_141 = arith.constant 0 : index
    %338 = vector.load %arg6[%c0_140, %c22, %c0_141] : memref<2x64x64xf32, #tpu.memory_space<vmem>>, vector<2x1x64xf32>
    %339 = vector.extract_strided_slice %337 {offsets = [0, 0, 22], sizes = [2, 1, 1], strides = [1, 1, 1]} : vector<2x1x64xf32> to vector<2x1x1xf32>
    %340 = vector.broadcast %339 : vector<2x1x1xf32> to vector<2x1x64xf32>
    %341 = arith.mulf %338, %340 : vector<2x1x64xf32>
    %cst_142 = arith.constant 1.000000e+00 : f32
    %342 = vector.broadcast %cst_142 : f32 to vector<2x1x64xf32>
    %343 = arith.subf %342, %341 : vector<2x1x64xf32>
    %344 = arith.mulf %337, %343 : vector<2x1x64xf32>
    %c0_143 = arith.constant 0 : index
    %c23 = arith.constant 23 : index
    %c0_144 = arith.constant 0 : index
    %345 = vector.load %arg6[%c0_143, %c23, %c0_144] : memref<2x64x64xf32, #tpu.memory_space<vmem>>, vector<2x1x64xf32>
    %346 = vector.extract_strided_slice %344 {offsets = [0, 0, 23], sizes = [2, 1, 1], strides = [1, 1, 1]} : vector<2x1x64xf32> to vector<2x1x1xf32>
    %347 = vector.broadcast %346 : vector<2x1x1xf32> to vector<2x1x64xf32>
    %348 = arith.mulf %345, %347 : vector<2x1x64xf32>
    %cst_145 = arith.constant 1.000000e+00 : f32
    %349 = vector.broadcast %cst_145 : f32 to vector<2x1x64xf32>
    %350 = arith.subf %349, %348 : vector<2x1x64xf32>
    %351 = arith.mulf %344, %350 : vector<2x1x64xf32>
    %c0_146 = arith.constant 0 : index
    %c24 = arith.constant 24 : index
    %c0_147 = arith.constant 0 : index
    %352 = vector.load %arg6[%c0_146, %c24, %c0_147] : memref<2x64x64xf32, #tpu.memory_space<vmem>>, vector<2x1x64xf32>
    %353 = vector.extract_strided_slice %351 {offsets = [0, 0, 24], sizes = [2, 1, 1], strides = [1, 1, 1]} : vector<2x1x64xf32> to vector<2x1x1xf32>
    %354 = vector.broadcast %353 : vector<2x1x1xf32> to vector<2x1x64xf32>
    %355 = arith.mulf %352, %354 : vector<2x1x64xf32>
    %cst_148 = arith.constant 1.000000e+00 : f32
    %356 = vector.broadcast %cst_148 : f32 to vector<2x1x64xf32>
    %357 = arith.subf %356, %355 : vector<2x1x64xf32>
    %358 = arith.mulf %351, %357 : vector<2x1x64xf32>
    %c0_149 = arith.constant 0 : index
    %c25 = arith.constant 25 : index
    %c0_150 = arith.constant 0 : index
    %359 = vector.load %arg6[%c0_149, %c25, %c0_150] : memref<2x64x64xf32, #tpu.memory_space<vmem>>, vector<2x1x64xf32>
    %360 = vector.extract_strided_slice %358 {offsets = [0, 0, 25], sizes = [2, 1, 1], strides = [1, 1, 1]} : vector<2x1x64xf32> to vector<2x1x1xf32>
    %361 = vector.broadcast %360 : vector<2x1x1xf32> to vector<2x1x64xf32>
    %362 = arith.mulf %359, %361 : vector<2x1x64xf32>
    %cst_151 = arith.constant 1.000000e+00 : f32
    %363 = vector.broadcast %cst_151 : f32 to vector<2x1x64xf32>
    %364 = arith.subf %363, %362 : vector<2x1x64xf32>
    %365 = arith.mulf %358, %364 : vector<2x1x64xf32>
    %c0_152 = arith.constant 0 : index
    %c26 = arith.constant 26 : index
    %c0_153 = arith.constant 0 : index
    %366 = vector.load %arg6[%c0_152, %c26, %c0_153] : memref<2x64x64xf32, #tpu.memory_space<vmem>>, vector<2x1x64xf32>
    %367 = vector.extract_strided_slice %365 {offsets = [0, 0, 26], sizes = [2, 1, 1], strides = [1, 1, 1]} : vector<2x1x64xf32> to vector<2x1x1xf32>
    %368 = vector.broadcast %367 : vector<2x1x1xf32> to vector<2x1x64xf32>
    %369 = arith.mulf %366, %368 : vector<2x1x64xf32>
    %cst_154 = arith.constant 1.000000e+00 : f32
    %370 = vector.broadcast %cst_154 : f32 to vector<2x1x64xf32>
    %371 = arith.subf %370, %369 : vector<2x1x64xf32>
    %372 = arith.mulf %365, %371 : vector<2x1x64xf32>
    %c0_155 = arith.constant 0 : index
    %c27 = arith.constant 27 : index
    %c0_156 = arith.constant 0 : index
    %373 = vector.load %arg6[%c0_155, %c27, %c0_156] : memref<2x64x64xf32, #tpu.memory_space<vmem>>, vector<2x1x64xf32>
    %374 = vector.extract_strided_slice %372 {offsets = [0, 0, 27], sizes = [2, 1, 1], strides = [1, 1, 1]} : vector<2x1x64xf32> to vector<2x1x1xf32>
    %375 = vector.broadcast %374 : vector<2x1x1xf32> to vector<2x1x64xf32>
    %376 = arith.mulf %373, %375 : vector<2x1x64xf32>
    %cst_157 = arith.constant 1.000000e+00 : f32
    %377 = vector.broadcast %cst_157 : f32 to vector<2x1x64xf32>
    %378 = arith.subf %377, %376 : vector<2x1x64xf32>
    %379 = arith.mulf %372, %378 : vector<2x1x64xf32>
    %c0_158 = arith.constant 0 : index
    %c28 = arith.constant 28 : index
    %c0_159 = arith.constant 0 : index
    %380 = vector.load %arg6[%c0_158, %c28, %c0_159] : memref<2x64x64xf32, #tpu.memory_space<vmem>>, vector<2x1x64xf32>
    %381 = vector.extract_strided_slice %379 {offsets = [0, 0, 28], sizes = [2, 1, 1], strides = [1, 1, 1]} : vector<2x1x64xf32> to vector<2x1x1xf32>
    %382 = vector.broadcast %381 : vector<2x1x1xf32> to vector<2x1x64xf32>
    %383 = arith.mulf %380, %382 : vector<2x1x64xf32>
    %cst_160 = arith.constant 1.000000e+00 : f32
    %384 = vector.broadcast %cst_160 : f32 to vector<2x1x64xf32>
    %385 = arith.subf %384, %383 : vector<2x1x64xf32>
    %386 = arith.mulf %379, %385 : vector<2x1x64xf32>
    %c0_161 = arith.constant 0 : index
    %c29 = arith.constant 29 : index
    %c0_162 = arith.constant 0 : index
    %387 = vector.load %arg6[%c0_161, %c29, %c0_162] : memref<2x64x64xf32, #tpu.memory_space<vmem>>, vector<2x1x64xf32>
    %388 = vector.extract_strided_slice %386 {offsets = [0, 0, 29], sizes = [2, 1, 1], strides = [1, 1, 1]} : vector<2x1x64xf32> to vector<2x1x1xf32>
    %389 = vector.broadcast %388 : vector<2x1x1xf32> to vector<2x1x64xf32>
    %390 = arith.mulf %387, %389 : vector<2x1x64xf32>
    %cst_163 = arith.constant 1.000000e+00 : f32
    %391 = vector.broadcast %cst_163 : f32 to vector<2x1x64xf32>
    %392 = arith.subf %391, %390 : vector<2x1x64xf32>
    %393 = arith.mulf %386, %392 : vector<2x1x64xf32>
    %c0_164 = arith.constant 0 : index
    %c30 = arith.constant 30 : index
    %c0_165 = arith.constant 0 : index
    %394 = vector.load %arg6[%c0_164, %c30, %c0_165] : memref<2x64x64xf32, #tpu.memory_space<vmem>>, vector<2x1x64xf32>
    %395 = vector.extract_strided_slice %393 {offsets = [0, 0, 30], sizes = [2, 1, 1], strides = [1, 1, 1]} : vector<2x1x64xf32> to vector<2x1x1xf32>
    %396 = vector.broadcast %395 : vector<2x1x1xf32> to vector<2x1x64xf32>
    %397 = arith.mulf %394, %396 : vector<2x1x64xf32>
    %cst_166 = arith.constant 1.000000e+00 : f32
    %398 = vector.broadcast %cst_166 : f32 to vector<2x1x64xf32>
    %399 = arith.subf %398, %397 : vector<2x1x64xf32>
    %400 = arith.mulf %393, %399 : vector<2x1x64xf32>
    %c0_167 = arith.constant 0 : index
    %c31 = arith.constant 31 : index
    %c0_168 = arith.constant 0 : index
    %401 = vector.load %arg6[%c0_167, %c31, %c0_168] : memref<2x64x64xf32, #tpu.memory_space<vmem>>, vector<2x1x64xf32>
    %402 = vector.extract_strided_slice %400 {offsets = [0, 0, 31], sizes = [2, 1, 1], strides = [1, 1, 1]} : vector<2x1x64xf32> to vector<2x1x1xf32>
    %403 = vector.broadcast %402 : vector<2x1x1xf32> to vector<2x1x64xf32>
    %404 = arith.mulf %401, %403 : vector<2x1x64xf32>
    %cst_169 = arith.constant 1.000000e+00 : f32
    %405 = vector.broadcast %cst_169 : f32 to vector<2x1x64xf32>
    %406 = arith.subf %405, %404 : vector<2x1x64xf32>
    %407 = arith.mulf %400, %406 : vector<2x1x64xf32>
    %c0_170 = arith.constant 0 : index
    %c32 = arith.constant 32 : index
    %c0_171 = arith.constant 0 : index
    %408 = vector.load %arg6[%c0_170, %c32, %c0_171] : memref<2x64x64xf32, #tpu.memory_space<vmem>>, vector<2x1x64xf32>
    %409 = vector.extract_strided_slice %407 {offsets = [0, 0, 32], sizes = [2, 1, 1], strides = [1, 1, 1]} : vector<2x1x64xf32> to vector<2x1x1xf32>
    %410 = vector.broadcast %409 : vector<2x1x1xf32> to vector<2x1x64xf32>
    %411 = arith.mulf %408, %410 : vector<2x1x64xf32>
    %cst_172 = arith.constant 1.000000e+00 : f32
    %412 = vector.broadcast %cst_172 : f32 to vector<2x1x64xf32>
    %413 = arith.subf %412, %411 : vector<2x1x64xf32>
    %414 = arith.mulf %407, %413 : vector<2x1x64xf32>
    %c0_173 = arith.constant 0 : index
    %c33 = arith.constant 33 : index
    %c0_174 = arith.constant 0 : index
    %415 = vector.load %arg6[%c0_173, %c33, %c0_174] : memref<2x64x64xf32, #tpu.memory_space<vmem>>, vector<2x1x64xf32>
    %416 = vector.extract_strided_slice %414 {offsets = [0, 0, 33], sizes = [2, 1, 1], strides = [1, 1, 1]} : vector<2x1x64xf32> to vector<2x1x1xf32>
    %417 = vector.broadcast %416 : vector<2x1x1xf32> to vector<2x1x64xf32>
    %418 = arith.mulf %415, %417 : vector<2x1x64xf32>
    %cst_175 = arith.constant 1.000000e+00 : f32
    %419 = vector.broadcast %cst_175 : f32 to vector<2x1x64xf32>
    %420 = arith.subf %419, %418 : vector<2x1x64xf32>
    %421 = arith.mulf %414, %420 : vector<2x1x64xf32>
    %c0_176 = arith.constant 0 : index
    %c34 = arith.constant 34 : index
    %c0_177 = arith.constant 0 : index
    %422 = vector.load %arg6[%c0_176, %c34, %c0_177] : memref<2x64x64xf32, #tpu.memory_space<vmem>>, vector<2x1x64xf32>
    %423 = vector.extract_strided_slice %421 {offsets = [0, 0, 34], sizes = [2, 1, 1], strides = [1, 1, 1]} : vector<2x1x64xf32> to vector<2x1x1xf32>
    %424 = vector.broadcast %423 : vector<2x1x1xf32> to vector<2x1x64xf32>
    %425 = arith.mulf %422, %424 : vector<2x1x64xf32>
    %cst_178 = arith.constant 1.000000e+00 : f32
    %426 = vector.broadcast %cst_178 : f32 to vector<2x1x64xf32>
    %427 = arith.subf %426, %425 : vector<2x1x64xf32>
    %428 = arith.mulf %421, %427 : vector<2x1x64xf32>
    %c0_179 = arith.constant 0 : index
    %c35 = arith.constant 35 : index
    %c0_180 = arith.constant 0 : index
    %429 = vector.load %arg6[%c0_179, %c35, %c0_180] : memref<2x64x64xf32, #tpu.memory_space<vmem>>, vector<2x1x64xf32>
    %430 = vector.extract_strided_slice %428 {offsets = [0, 0, 35], sizes = [2, 1, 1], strides = [1, 1, 1]} : vector<2x1x64xf32> to vector<2x1x1xf32>
    %431 = vector.broadcast %430 : vector<2x1x1xf32> to vector<2x1x64xf32>
    %432 = arith.mulf %429, %431 : vector<2x1x64xf32>
    %cst_181 = arith.constant 1.000000e+00 : f32
    %433 = vector.broadcast %cst_181 : f32 to vector<2x1x64xf32>
    %434 = arith.subf %433, %432 : vector<2x1x64xf32>
    %435 = arith.mulf %428, %434 : vector<2x1x64xf32>
    %c0_182 = arith.constant 0 : index
    %c36 = arith.constant 36 : index
    %c0_183 = arith.constant 0 : index
    %436 = vector.load %arg6[%c0_182, %c36, %c0_183] : memref<2x64x64xf32, #tpu.memory_space<vmem>>, vector<2x1x64xf32>
    %437 = vector.extract_strided_slice %435 {offsets = [0, 0, 36], sizes = [2, 1, 1], strides = [1, 1, 1]} : vector<2x1x64xf32> to vector<2x1x1xf32>
    %438 = vector.broadcast %437 : vector<2x1x1xf32> to vector<2x1x64xf32>
    %439 = arith.mulf %436, %438 : vector<2x1x64xf32>
    %cst_184 = arith.constant 1.000000e+00 : f32
    %440 = vector.broadcast %cst_184 : f32 to vector<2x1x64xf32>
    %441 = arith.subf %440, %439 : vector<2x1x64xf32>
    %442 = arith.mulf %435, %441 : vector<2x1x64xf32>
    %c0_185 = arith.constant 0 : index
    %c37 = arith.constant 37 : index
    %c0_186 = arith.constant 0 : index
    %443 = vector.load %arg6[%c0_185, %c37, %c0_186] : memref<2x64x64xf32, #tpu.memory_space<vmem>>, vector<2x1x64xf32>
    %444 = vector.extract_strided_slice %442 {offsets = [0, 0, 37], sizes = [2, 1, 1], strides = [1, 1, 1]} : vector<2x1x64xf32> to vector<2x1x1xf32>
    %445 = vector.broadcast %444 : vector<2x1x1xf32> to vector<2x1x64xf32>
    %446 = arith.mulf %443, %445 : vector<2x1x64xf32>
    %cst_187 = arith.constant 1.000000e+00 : f32
    %447 = vector.broadcast %cst_187 : f32 to vector<2x1x64xf32>
    %448 = arith.subf %447, %446 : vector<2x1x64xf32>
    %449 = arith.mulf %442, %448 : vector<2x1x64xf32>
    %c0_188 = arith.constant 0 : index
    %c38 = arith.constant 38 : index
    %c0_189 = arith.constant 0 : index
    %450 = vector.load %arg6[%c0_188, %c38, %c0_189] : memref<2x64x64xf32, #tpu.memory_space<vmem>>, vector<2x1x64xf32>
    %451 = vector.extract_strided_slice %449 {offsets = [0, 0, 38], sizes = [2, 1, 1], strides = [1, 1, 1]} : vector<2x1x64xf32> to vector<2x1x1xf32>
    %452 = vector.broadcast %451 : vector<2x1x1xf32> to vector<2x1x64xf32>
    %453 = arith.mulf %450, %452 : vector<2x1x64xf32>
    %cst_190 = arith.constant 1.000000e+00 : f32
    %454 = vector.broadcast %cst_190 : f32 to vector<2x1x64xf32>
    %455 = arith.subf %454, %453 : vector<2x1x64xf32>
    %456 = arith.mulf %449, %455 : vector<2x1x64xf32>
    %c0_191 = arith.constant 0 : index
    %c39 = arith.constant 39 : index
    %c0_192 = arith.constant 0 : index
    %457 = vector.load %arg6[%c0_191, %c39, %c0_192] : memref<2x64x64xf32, #tpu.memory_space<vmem>>, vector<2x1x64xf32>
    %458 = vector.extract_strided_slice %456 {offsets = [0, 0, 39], sizes = [2, 1, 1], strides = [1, 1, 1]} : vector<2x1x64xf32> to vector<2x1x1xf32>
    %459 = vector.broadcast %458 : vector<2x1x1xf32> to vector<2x1x64xf32>
    %460 = arith.mulf %457, %459 : vector<2x1x64xf32>
    %cst_193 = arith.constant 1.000000e+00 : f32
    %461 = vector.broadcast %cst_193 : f32 to vector<2x1x64xf32>
    %462 = arith.subf %461, %460 : vector<2x1x64xf32>
    %463 = arith.mulf %456, %462 : vector<2x1x64xf32>
    %c0_194 = arith.constant 0 : index
    %c40 = arith.constant 40 : index
    %c0_195 = arith.constant 0 : index
    %464 = vector.load %arg6[%c0_194, %c40, %c0_195] : memref<2x64x64xf32, #tpu.memory_space<vmem>>, vector<2x1x64xf32>
    %465 = vector.extract_strided_slice %463 {offsets = [0, 0, 40], sizes = [2, 1, 1], strides = [1, 1, 1]} : vector<2x1x64xf32> to vector<2x1x1xf32>
    %466 = vector.broadcast %465 : vector<2x1x1xf32> to vector<2x1x64xf32>
    %467 = arith.mulf %464, %466 : vector<2x1x64xf32>
    %cst_196 = arith.constant 1.000000e+00 : f32
    %468 = vector.broadcast %cst_196 : f32 to vector<2x1x64xf32>
    %469 = arith.subf %468, %467 : vector<2x1x64xf32>
    %470 = arith.mulf %463, %469 : vector<2x1x64xf32>
    %c0_197 = arith.constant 0 : index
    %c41 = arith.constant 41 : index
    %c0_198 = arith.constant 0 : index
    %471 = vector.load %arg6[%c0_197, %c41, %c0_198] : memref<2x64x64xf32, #tpu.memory_space<vmem>>, vector<2x1x64xf32>
    %472 = vector.extract_strided_slice %470 {offsets = [0, 0, 41], sizes = [2, 1, 1], strides = [1, 1, 1]} : vector<2x1x64xf32> to vector<2x1x1xf32>
    %473 = vector.broadcast %472 : vector<2x1x1xf32> to vector<2x1x64xf32>
    %474 = arith.mulf %471, %473 : vector<2x1x64xf32>
    %cst_199 = arith.constant 1.000000e+00 : f32
    %475 = vector.broadcast %cst_199 : f32 to vector<2x1x64xf32>
    %476 = arith.subf %475, %474 : vector<2x1x64xf32>
    %477 = arith.mulf %470, %476 : vector<2x1x64xf32>
    %c0_200 = arith.constant 0 : index
    %c42 = arith.constant 42 : index
    %c0_201 = arith.constant 0 : index
    %478 = vector.load %arg6[%c0_200, %c42, %c0_201] : memref<2x64x64xf32, #tpu.memory_space<vmem>>, vector<2x1x64xf32>
    %479 = vector.extract_strided_slice %477 {offsets = [0, 0, 42], sizes = [2, 1, 1], strides = [1, 1, 1]} : vector<2x1x64xf32> to vector<2x1x1xf32>
    %480 = vector.broadcast %479 : vector<2x1x1xf32> to vector<2x1x64xf32>
    %481 = arith.mulf %478, %480 : vector<2x1x64xf32>
    %cst_202 = arith.constant 1.000000e+00 : f32
    %482 = vector.broadcast %cst_202 : f32 to vector<2x1x64xf32>
    %483 = arith.subf %482, %481 : vector<2x1x64xf32>
    %484 = arith.mulf %477, %483 : vector<2x1x64xf32>
    %c0_203 = arith.constant 0 : index
    %c43 = arith.constant 43 : index
    %c0_204 = arith.constant 0 : index
    %485 = vector.load %arg6[%c0_203, %c43, %c0_204] : memref<2x64x64xf32, #tpu.memory_space<vmem>>, vector<2x1x64xf32>
    %486 = vector.extract_strided_slice %484 {offsets = [0, 0, 43], sizes = [2, 1, 1], strides = [1, 1, 1]} : vector<2x1x64xf32> to vector<2x1x1xf32>
    %487 = vector.broadcast %486 : vector<2x1x1xf32> to vector<2x1x64xf32>
    %488 = arith.mulf %485, %487 : vector<2x1x64xf32>
    %cst_205 = arith.constant 1.000000e+00 : f32
    %489 = vector.broadcast %cst_205 : f32 to vector<2x1x64xf32>
    %490 = arith.subf %489, %488 : vector<2x1x64xf32>
    %491 = arith.mulf %484, %490 : vector<2x1x64xf32>
    %c0_206 = arith.constant 0 : index
    %c44 = arith.constant 44 : index
    %c0_207 = arith.constant 0 : index
    %492 = vector.load %arg6[%c0_206, %c44, %c0_207] : memref<2x64x64xf32, #tpu.memory_space<vmem>>, vector<2x1x64xf32>
    %493 = vector.extract_strided_slice %491 {offsets = [0, 0, 44], sizes = [2, 1, 1], strides = [1, 1, 1]} : vector<2x1x64xf32> to vector<2x1x1xf32>
    %494 = vector.broadcast %493 : vector<2x1x1xf32> to vector<2x1x64xf32>
    %495 = arith.mulf %492, %494 : vector<2x1x64xf32>
    %cst_208 = arith.constant 1.000000e+00 : f32
    %496 = vector.broadcast %cst_208 : f32 to vector<2x1x64xf32>
    %497 = arith.subf %496, %495 : vector<2x1x64xf32>
    %498 = arith.mulf %491, %497 : vector<2x1x64xf32>
    %c0_209 = arith.constant 0 : index
    %c45 = arith.constant 45 : index
    %c0_210 = arith.constant 0 : index
    %499 = vector.load %arg6[%c0_209, %c45, %c0_210] : memref<2x64x64xf32, #tpu.memory_space<vmem>>, vector<2x1x64xf32>
    %500 = vector.extract_strided_slice %498 {offsets = [0, 0, 45], sizes = [2, 1, 1], strides = [1, 1, 1]} : vector<2x1x64xf32> to vector<2x1x1xf32>
    %501 = vector.broadcast %500 : vector<2x1x1xf32> to vector<2x1x64xf32>
    %502 = arith.mulf %499, %501 : vector<2x1x64xf32>
    %cst_211 = arith.constant 1.000000e+00 : f32
    %503 = vector.broadcast %cst_211 : f32 to vector<2x1x64xf32>
    %504 = arith.subf %503, %502 : vector<2x1x64xf32>
    %505 = arith.mulf %498, %504 : vector<2x1x64xf32>
    %c0_212 = arith.constant 0 : index
    %c46 = arith.constant 46 : index
    %c0_213 = arith.constant 0 : index
    %506 = vector.load %arg6[%c0_212, %c46, %c0_213] : memref<2x64x64xf32, #tpu.memory_space<vmem>>, vector<2x1x64xf32>
    %507 = vector.extract_strided_slice %505 {offsets = [0, 0, 46], sizes = [2, 1, 1], strides = [1, 1, 1]} : vector<2x1x64xf32> to vector<2x1x1xf32>
    %508 = vector.broadcast %507 : vector<2x1x1xf32> to vector<2x1x64xf32>
    %509 = arith.mulf %506, %508 : vector<2x1x64xf32>
    %cst_214 = arith.constant 1.000000e+00 : f32
    %510 = vector.broadcast %cst_214 : f32 to vector<2x1x64xf32>
    %511 = arith.subf %510, %509 : vector<2x1x64xf32>
    %512 = arith.mulf %505, %511 : vector<2x1x64xf32>
    %c0_215 = arith.constant 0 : index
    %c47 = arith.constant 47 : index
    %c0_216 = arith.constant 0 : index
    %513 = vector.load %arg6[%c0_215, %c47, %c0_216] : memref<2x64x64xf32, #tpu.memory_space<vmem>>, vector<2x1x64xf32>
    %514 = vector.extract_strided_slice %512 {offsets = [0, 0, 47], sizes = [2, 1, 1], strides = [1, 1, 1]} : vector<2x1x64xf32> to vector<2x1x1xf32>
    %515 = vector.broadcast %514 : vector<2x1x1xf32> to vector<2x1x64xf32>
    %516 = arith.mulf %513, %515 : vector<2x1x64xf32>
    %cst_217 = arith.constant 1.000000e+00 : f32
    %517 = vector.broadcast %cst_217 : f32 to vector<2x1x64xf32>
    %518 = arith.subf %517, %516 : vector<2x1x64xf32>
    %519 = arith.mulf %512, %518 : vector<2x1x64xf32>
    %c0_218 = arith.constant 0 : index
    %c48 = arith.constant 48 : index
    %c0_219 = arith.constant 0 : index
    %520 = vector.load %arg6[%c0_218, %c48, %c0_219] : memref<2x64x64xf32, #tpu.memory_space<vmem>>, vector<2x1x64xf32>
    %521 = vector.extract_strided_slice %519 {offsets = [0, 0, 48], sizes = [2, 1, 1], strides = [1, 1, 1]} : vector<2x1x64xf32> to vector<2x1x1xf32>
    %522 = vector.broadcast %521 : vector<2x1x1xf32> to vector<2x1x64xf32>
    %523 = arith.mulf %520, %522 : vector<2x1x64xf32>
    %cst_220 = arith.constant 1.000000e+00 : f32
    %524 = vector.broadcast %cst_220 : f32 to vector<2x1x64xf32>
    %525 = arith.subf %524, %523 : vector<2x1x64xf32>
    %526 = arith.mulf %519, %525 : vector<2x1x64xf32>
    %c0_221 = arith.constant 0 : index
    %c49 = arith.constant 49 : index
    %c0_222 = arith.constant 0 : index
    %527 = vector.load %arg6[%c0_221, %c49, %c0_222] : memref<2x64x64xf32, #tpu.memory_space<vmem>>, vector<2x1x64xf32>
    %528 = vector.extract_strided_slice %526 {offsets = [0, 0, 49], sizes = [2, 1, 1], strides = [1, 1, 1]} : vector<2x1x64xf32> to vector<2x1x1xf32>
    %529 = vector.broadcast %528 : vector<2x1x1xf32> to vector<2x1x64xf32>
    %530 = arith.mulf %527, %529 : vector<2x1x64xf32>
    %cst_223 = arith.constant 1.000000e+00 : f32
    %531 = vector.broadcast %cst_223 : f32 to vector<2x1x64xf32>
    %532 = arith.subf %531, %530 : vector<2x1x64xf32>
    %533 = arith.mulf %526, %532 : vector<2x1x64xf32>
    %c0_224 = arith.constant 0 : index
    %c50 = arith.constant 50 : index
    %c0_225 = arith.constant 0 : index
    %534 = vector.load %arg6[%c0_224, %c50, %c0_225] : memref<2x64x64xf32, #tpu.memory_space<vmem>>, vector<2x1x64xf32>
    %535 = vector.extract_strided_slice %533 {offsets = [0, 0, 50], sizes = [2, 1, 1], strides = [1, 1, 1]} : vector<2x1x64xf32> to vector<2x1x1xf32>
    %536 = vector.broadcast %535 : vector<2x1x1xf32> to vector<2x1x64xf32>
    %537 = arith.mulf %534, %536 : vector<2x1x64xf32>
    %cst_226 = arith.constant 1.000000e+00 : f32
    %538 = vector.broadcast %cst_226 : f32 to vector<2x1x64xf32>
    %539 = arith.subf %538, %537 : vector<2x1x64xf32>
    %540 = arith.mulf %533, %539 : vector<2x1x64xf32>
    %c0_227 = arith.constant 0 : index
    %c51 = arith.constant 51 : index
    %c0_228 = arith.constant 0 : index
    %541 = vector.load %arg6[%c0_227, %c51, %c0_228] : memref<2x64x64xf32, #tpu.memory_space<vmem>>, vector<2x1x64xf32>
    %542 = vector.extract_strided_slice %540 {offsets = [0, 0, 51], sizes = [2, 1, 1], strides = [1, 1, 1]} : vector<2x1x64xf32> to vector<2x1x1xf32>
    %543 = vector.broadcast %542 : vector<2x1x1xf32> to vector<2x1x64xf32>
    %544 = arith.mulf %541, %543 : vector<2x1x64xf32>
    %cst_229 = arith.constant 1.000000e+00 : f32
    %545 = vector.broadcast %cst_229 : f32 to vector<2x1x64xf32>
    %546 = arith.subf %545, %544 : vector<2x1x64xf32>
    %547 = arith.mulf %540, %546 : vector<2x1x64xf32>
    %c0_230 = arith.constant 0 : index
    %c52 = arith.constant 52 : index
    %c0_231 = arith.constant 0 : index
    %548 = vector.load %arg6[%c0_230, %c52, %c0_231] : memref<2x64x64xf32, #tpu.memory_space<vmem>>, vector<2x1x64xf32>
    %549 = vector.extract_strided_slice %547 {offsets = [0, 0, 52], sizes = [2, 1, 1], strides = [1, 1, 1]} : vector<2x1x64xf32> to vector<2x1x1xf32>
    %550 = vector.broadcast %549 : vector<2x1x1xf32> to vector<2x1x64xf32>
    %551 = arith.mulf %548, %550 : vector<2x1x64xf32>
    %cst_232 = arith.constant 1.000000e+00 : f32
    %552 = vector.broadcast %cst_232 : f32 to vector<2x1x64xf32>
    %553 = arith.subf %552, %551 : vector<2x1x64xf32>
    %554 = arith.mulf %547, %553 : vector<2x1x64xf32>
    %c0_233 = arith.constant 0 : index
    %c53 = arith.constant 53 : index
    %c0_234 = arith.constant 0 : index
    %555 = vector.load %arg6[%c0_233, %c53, %c0_234] : memref<2x64x64xf32, #tpu.memory_space<vmem>>, vector<2x1x64xf32>
    %556 = vector.extract_strided_slice %554 {offsets = [0, 0, 53], sizes = [2, 1, 1], strides = [1, 1, 1]} : vector<2x1x64xf32> to vector<2x1x1xf32>
    %557 = vector.broadcast %556 : vector<2x1x1xf32> to vector<2x1x64xf32>
    %558 = arith.mulf %555, %557 : vector<2x1x64xf32>
    %cst_235 = arith.constant 1.000000e+00 : f32
    %559 = vector.broadcast %cst_235 : f32 to vector<2x1x64xf32>
    %560 = arith.subf %559, %558 : vector<2x1x64xf32>
    %561 = arith.mulf %554, %560 : vector<2x1x64xf32>
    %c0_236 = arith.constant 0 : index
    %c54 = arith.constant 54 : index
    %c0_237 = arith.constant 0 : index
    %562 = vector.load %arg6[%c0_236, %c54, %c0_237] : memref<2x64x64xf32, #tpu.memory_space<vmem>>, vector<2x1x64xf32>
    %563 = vector.extract_strided_slice %561 {offsets = [0, 0, 54], sizes = [2, 1, 1], strides = [1, 1, 1]} : vector<2x1x64xf32> to vector<2x1x1xf32>
    %564 = vector.broadcast %563 : vector<2x1x1xf32> to vector<2x1x64xf32>
    %565 = arith.mulf %562, %564 : vector<2x1x64xf32>
    %cst_238 = arith.constant 1.000000e+00 : f32
    %566 = vector.broadcast %cst_238 : f32 to vector<2x1x64xf32>
    %567 = arith.subf %566, %565 : vector<2x1x64xf32>
    %568 = arith.mulf %561, %567 : vector<2x1x64xf32>
    %c0_239 = arith.constant 0 : index
    %c55 = arith.constant 55 : index
    %c0_240 = arith.constant 0 : index
    %569 = vector.load %arg6[%c0_239, %c55, %c0_240] : memref<2x64x64xf32, #tpu.memory_space<vmem>>, vector<2x1x64xf32>
    %570 = vector.extract_strided_slice %568 {offsets = [0, 0, 55], sizes = [2, 1, 1], strides = [1, 1, 1]} : vector<2x1x64xf32> to vector<2x1x1xf32>
    %571 = vector.broadcast %570 : vector<2x1x1xf32> to vector<2x1x64xf32>
    %572 = arith.mulf %569, %571 : vector<2x1x64xf32>
    %cst_241 = arith.constant 1.000000e+00 : f32
    %573 = vector.broadcast %cst_241 : f32 to vector<2x1x64xf32>
    %574 = arith.subf %573, %572 : vector<2x1x64xf32>
    %575 = arith.mulf %568, %574 : vector<2x1x64xf32>
    %c0_242 = arith.constant 0 : index
    %c56 = arith.constant 56 : index
    %c0_243 = arith.constant 0 : index
    %576 = vector.load %arg6[%c0_242, %c56, %c0_243] : memref<2x64x64xf32, #tpu.memory_space<vmem>>, vector<2x1x64xf32>
    %577 = vector.extract_strided_slice %575 {offsets = [0, 0, 56], sizes = [2, 1, 1], strides = [1, 1, 1]} : vector<2x1x64xf32> to vector<2x1x1xf32>
    %578 = vector.broadcast %577 : vector<2x1x1xf32> to vector<2x1x64xf32>
    %579 = arith.mulf %576, %578 : vector<2x1x64xf32>
    %cst_244 = arith.constant 1.000000e+00 : f32
    %580 = vector.broadcast %cst_244 : f32 to vector<2x1x64xf32>
    %581 = arith.subf %580, %579 : vector<2x1x64xf32>
    %582 = arith.mulf %575, %581 : vector<2x1x64xf32>
    %c0_245 = arith.constant 0 : index
    %c57 = arith.constant 57 : index
    %c0_246 = arith.constant 0 : index
    %583 = vector.load %arg6[%c0_245, %c57, %c0_246] : memref<2x64x64xf32, #tpu.memory_space<vmem>>, vector<2x1x64xf32>
    %584 = vector.extract_strided_slice %582 {offsets = [0, 0, 57], sizes = [2, 1, 1], strides = [1, 1, 1]} : vector<2x1x64xf32> to vector<2x1x1xf32>
    %585 = vector.broadcast %584 : vector<2x1x1xf32> to vector<2x1x64xf32>
    %586 = arith.mulf %583, %585 : vector<2x1x64xf32>
    %cst_247 = arith.constant 1.000000e+00 : f32
    %587 = vector.broadcast %cst_247 : f32 to vector<2x1x64xf32>
    %588 = arith.subf %587, %586 : vector<2x1x64xf32>
    %589 = arith.mulf %582, %588 : vector<2x1x64xf32>
    %c0_248 = arith.constant 0 : index
    %c58 = arith.constant 58 : index
    %c0_249 = arith.constant 0 : index
    %590 = vector.load %arg6[%c0_248, %c58, %c0_249] : memref<2x64x64xf32, #tpu.memory_space<vmem>>, vector<2x1x64xf32>
    %591 = vector.extract_strided_slice %589 {offsets = [0, 0, 58], sizes = [2, 1, 1], strides = [1, 1, 1]} : vector<2x1x64xf32> to vector<2x1x1xf32>
    %592 = vector.broadcast %591 : vector<2x1x1xf32> to vector<2x1x64xf32>
    %593 = arith.mulf %590, %592 : vector<2x1x64xf32>
    %cst_250 = arith.constant 1.000000e+00 : f32
    %594 = vector.broadcast %cst_250 : f32 to vector<2x1x64xf32>
    %595 = arith.subf %594, %593 : vector<2x1x64xf32>
    %596 = arith.mulf %589, %595 : vector<2x1x64xf32>
    %c0_251 = arith.constant 0 : index
    %c59 = arith.constant 59 : index
    %c0_252 = arith.constant 0 : index
    %597 = vector.load %arg6[%c0_251, %c59, %c0_252] : memref<2x64x64xf32, #tpu.memory_space<vmem>>, vector<2x1x64xf32>
    %598 = vector.extract_strided_slice %596 {offsets = [0, 0, 59], sizes = [2, 1, 1], strides = [1, 1, 1]} : vector<2x1x64xf32> to vector<2x1x1xf32>
    %599 = vector.broadcast %598 : vector<2x1x1xf32> to vector<2x1x64xf32>
    %600 = arith.mulf %597, %599 : vector<2x1x64xf32>
    %cst_253 = arith.constant 1.000000e+00 : f32
    %601 = vector.broadcast %cst_253 : f32 to vector<2x1x64xf32>
    %602 = arith.subf %601, %600 : vector<2x1x64xf32>
    %603 = arith.mulf %596, %602 : vector<2x1x64xf32>
    %c0_254 = arith.constant 0 : index
    %c60 = arith.constant 60 : index
    %c0_255 = arith.constant 0 : index
    %604 = vector.load %arg6[%c0_254, %c60, %c0_255] : memref<2x64x64xf32, #tpu.memory_space<vmem>>, vector<2x1x64xf32>
    %605 = vector.extract_strided_slice %603 {offsets = [0, 0, 60], sizes = [2, 1, 1], strides = [1, 1, 1]} : vector<2x1x64xf32> to vector<2x1x1xf32>
    %606 = vector.broadcast %605 : vector<2x1x1xf32> to vector<2x1x64xf32>
    %607 = arith.mulf %604, %606 : vector<2x1x64xf32>
    %cst_256 = arith.constant 1.000000e+00 : f32
    %608 = vector.broadcast %cst_256 : f32 to vector<2x1x64xf32>
    %609 = arith.subf %608, %607 : vector<2x1x64xf32>
    %610 = arith.mulf %603, %609 : vector<2x1x64xf32>
    %c0_257 = arith.constant 0 : index
    %c61 = arith.constant 61 : index
    %c0_258 = arith.constant 0 : index
    %611 = vector.load %arg6[%c0_257, %c61, %c0_258] : memref<2x64x64xf32, #tpu.memory_space<vmem>>, vector<2x1x64xf32>
    %612 = vector.extract_strided_slice %610 {offsets = [0, 0, 61], sizes = [2, 1, 1], strides = [1, 1, 1]} : vector<2x1x64xf32> to vector<2x1x1xf32>
    %613 = vector.broadcast %612 : vector<2x1x1xf32> to vector<2x1x64xf32>
    %614 = arith.mulf %611, %613 : vector<2x1x64xf32>
    %cst_259 = arith.constant 1.000000e+00 : f32
    %615 = vector.broadcast %cst_259 : f32 to vector<2x1x64xf32>
    %616 = arith.subf %615, %614 : vector<2x1x64xf32>
    %617 = arith.mulf %610, %616 : vector<2x1x64xf32>
    %c0_260 = arith.constant 0 : index
    %c62 = arith.constant 62 : index
    %c0_261 = arith.constant 0 : index
    %618 = vector.load %arg6[%c0_260, %c62, %c0_261] : memref<2x64x64xf32, #tpu.memory_space<vmem>>, vector<2x1x64xf32>
    %619 = vector.extract_strided_slice %617 {offsets = [0, 0, 62], sizes = [2, 1, 1], strides = [1, 1, 1]} : vector<2x1x64xf32> to vector<2x1x1xf32>
    %620 = vector.broadcast %619 : vector<2x1x1xf32> to vector<2x1x64xf32>
    %621 = arith.mulf %618, %620 : vector<2x1x64xf32>
    %cst_262 = arith.constant 1.000000e+00 : f32
    %622 = vector.broadcast %cst_262 : f32 to vector<2x1x64xf32>
    %623 = arith.subf %622, %621 : vector<2x1x64xf32>
    %624 = arith.mulf %617, %623 : vector<2x1x64xf32>
    %c0_263 = arith.constant 0 : index
    %c63 = arith.constant 63 : index
    %c0_264 = arith.constant 0 : index
    %625 = vector.load %arg6[%c0_263, %c63, %c0_264] : memref<2x64x64xf32, #tpu.memory_space<vmem>>, vector<2x1x64xf32>
    %626 = vector.extract_strided_slice %624 {offsets = [0, 0, 63], sizes = [2, 1, 1], strides = [1, 1, 1]} : vector<2x1x64xf32> to vector<2x1x1xf32>
    %627 = vector.broadcast %626 : vector<2x1x1xf32> to vector<2x1x64xf32>
    %628 = arith.mulf %625, %627 : vector<2x1x64xf32>
    %cst_265 = arith.constant 1.000000e+00 : f32
    %629 = vector.broadcast %cst_265 : f32 to vector<2x1x64xf32>
    %630 = arith.subf %629, %628 : vector<2x1x64xf32>
    %631 = arith.mulf %624, %630 : vector<2x1x64xf32>
    %c0_266 = arith.constant 0 : index
    %c0_267 = arith.constant 0 : index
    %c0_268 = arith.constant 0 : index
    %632 = vector.load %arg5[%c0_266, %c0_267, %c0_268] : memref<2x1x64xf32, #tpu.memory_space<vmem>>, vector<2x1x64xf32>
    tpu.vector_store %arg5[%c0_266, %c0_267, %c0_268], %631 {strides = array<i32>} : memref<2x1x64xf32, #tpu.memory_space<vmem>>, vector<2x1x64xf32>,
    return
  }
}

</mosaic_0001>

<llo_original>
// kernel: proposal_forward.1
$region0: #{proposal_forward.1}
  #allocation0 [shape = 'u32[]', space=smem, size = 0x4, offset = 0x4, fixed_abs, tag = 'smem constant byte address 0x4 - core index']
  #allocation1 [shape = 'u32[144,128]{1,0:T(1,128)}', space=vmem, size = 0x12000, scoped, tag = 'internal scratch']
  #allocation2 [shape = 'f32[2,64,64]{2,1,0:T(8,128)}', space=vmem, size = 0x10000, scoped, tag = 'scratch operand']
  %s0 = inlined_call_operand.vmem [shape: f32[2,4,64], index: 0, kind: input, shape index: {}]
  %s1 = inlined_call_operand.vmem [shape: f32[2,4,64], index: 1, kind: input, shape index: {}]
  %s2 = inlined_call_operand.vmem [shape: f32[2,64,4], index: 2, kind: input, shape index: {}]
  %s3 = inlined_call_operand.vmem [shape: f32[2,64,4], index: 3, kind: input, shape index: {}]
  %s4 = inlined_call_operand.vmem [shape: f32[2,4,64], index: 4, kind: output, shape index: {0}]
  %s5 = inlined_call_operand.vmem [shape: f32[2,1,64], index: 5, kind: output, shape index: {1}]
  %6 = xla_tuple %s4, %s5
  %s7 = sld [smem:[#allocation0]]
  $region34: #{proposal_forward.1} parent=0
    _
  %s9 = ssub.s32 1, %s7
  %s10 = scalar_select 0, %s9, %s7
  // Predicated region
  $region2: #{proposal_forward.1} parent=0 // pred_check
    _
  $region3: #{proposal_forward.1} parent=0 // pred_check_branch
    %12 = sbr.rel (0) target = $region5
  $region4: #{proposal_forward.1} parent=0 // pred_region
    _
  $region5: #{proposal_forward.1} parent=0 // pred_fallthru
    _
  // Predicated region
  $region6: #{proposal_forward.1} parent=0 // pred_check
    _
  $region7: #{proposal_forward.1} parent=0 // pred_check_branch
    %14 = sbr.rel (0) target = $region9
  $region8: #{proposal_forward.1} parent=0 // pred_region
    _
  $region9: #{proposal_forward.1} parent=0 // pred_fallthru
    _
  // Predicated region
  $region10: #{proposal_forward.1} parent=0 // pred_check
    _
  $region11: #{proposal_forward.1} parent=0 // pred_check_branch
    %16 = sbr.rel (0) target = $region13
  $region12: #{proposal_forward.1} parent=0 // pred_region
    _
  $region13: #{proposal_forward.1} parent=0 // pred_fallthru
    _
  // Predicated region
  $region14: #{proposal_forward.1} parent=0 // pred_check
    _
  $region15: #{proposal_forward.1} parent=0 // pred_check_branch
    %18 = sbr.rel (0) target = $region17
  $region16: #{proposal_forward.1} parent=0 // pred_region
    _
  $region17: #{proposal_forward.1} parent=0 // pred_fallthru
    _
  %v19 = vld [vmem:[%s0] sm:$0xf]
  %v20 = vld [vmem:[%s0 + $0x4] sm:$0xf]
  %v21 = vld [vmem:[%s1] sm:$0xf]
  %v22 = vld [vmem:[%s1 + $0x4] sm:$0xf]
  %v25 = vrot.slane %v19, 6
  %v26 = vrot.slane %v20, 6
  %v29 = vsub.f32 %v19, %v25
  %v30 = vsub.f32 %v20, %v26
  %v31 = vadd.f32 %v29, 1.0
  %v32 = vadd.f32 %v30, 1.0
  %v33 = vmul.f32 %v31, 0.5
  %v34 = vmul.f32 %v32, 0.5
  %v37 = vrot.slane %v33, 2
  %v38 = vrot.slane %v34, 2
  %v41 = vadd.f32 %v19, %v37
  %v42 = vadd.f32 %v20, %v38
  %v45 = vrot.slane %v31, 2
  %v46 = vrot.slane %v32, 2
  %v49 = vmul.f32 %v21, %v45
  %v50 = vmul.f32 %v22, %v46
  %v51 = vadd.f32 %v49, %v41
  %v52 = vadd.f32 %v50, %v42
  %v53 = vmin.f32 %v21, 4.1351666
  %v54 = vmin.f32 %v22, 4.1351666
  %v55 = vmul.f32 %v53, 1.442695
  %v56 = vpow.pop %v55
  %v57 = vmul.f32 %v54, 1.442695
  %v58 = vpow.pop %v57
  %v59 = vmul.f32 %v56, %v31
  %v60 = vmul.f32 %v58, %v32
  %v61 = vmul.f32 %v59, 0.5
  %v62 = vmul.f32 %v60, 0.5
  %v65 = vrot.slane %v61, 2
  %v66 = vrot.slane %v62, 2
  %v69 = vsub.f32 %v51, %v65
  %v70 = vsub.f32 %v52, %v66
  %v71 = vmax.f32 %v69, 0.0
  %v72 = vmax.f32 %v70, 0.0
  %v73 = vmin.f32 %v71, 63.0
  %v74 = vmin.f32 %v72, 63.0
  %v75 = vadd.f32 %v51, %v65
  %v76 = vadd.f32 %v52, %v66
  %v77 = vmax.f32 %v75, 0.0
  %v78 = vmax.f32 %v76, 0.0
  %v79 = vmin.f32 %v77, 63.0
  %v80 = vmin.f32 %v78, 63.0
  %vm81 = vcmask 516096
  %82 = vst.msk [vmem:[%s4] sm:$0x1] %vm81, %v73
  %83 = vst.msk [vmem:[%s4 + $0x4] sm:$0x1] %vm81, %v74
  %vm84 = vcmask 517121
  %85 = vst.msk [vmem:[%s4] sm:$0x2] %vm84, %v73
  %86 = vst.msk [vmem:[%s4 + $0x4] sm:$0x2] %vm84, %v74
  %87 = vst.msk [vmem:[%s4 + $0x2] sm:$0x1] %vm81, %v79
  %88 = vst.msk [vmem:[%s4 + $0x6] sm:$0x1] %vm81, %v80
  %89 = vst.msk [vmem:[%s4 + $0x2] sm:$0x2] %vm84, %v79
  %90 = vst.msk [vmem:[%s4 + $0x6] sm:$0x2] %vm84, %v80
  %v91 = vld [vmem:[%s2] sm:$0xff]
  %v92 = vld [vmem:[%s2 + $0x8] sm:$0xff]
  %v93 = vld [vmem:[%s2 + $0x10] sm:$0xff]
  %v94 = vld [vmem:[%s2 + $0x18] sm:$0xff]
  %v95 = vld [vmem:[%s2 + $0x20] sm:$0xff]
  %v96 = vld [vmem:[%s2 + $0x28] sm:$0xff]
  %v97 = vld [vmem:[%s2 + $0x30] sm:$0xff]
  %v98 = vld [vmem:[%s2 + $0x38] sm:$0xff]
  %v99 = vld [vmem:[%s2 + $0x40] sm:$0xff]
  %v100 = vld [vmem:[%s2 + $0x48] sm:$0xff]
  %v101 = vld [vmem:[%s2 + $0x50] sm:$0xff]
  %v102 = vld [vmem:[%s2 + $0x58] sm:$0xff]
  %v103 = vld [vmem:[%s2 + $0x60] sm:$0xff]
  %v104 = vld [vmem:[%s2 + $0x68] sm:$0xff]
  %v105 = vld [vmem:[%s2 + $0x70] sm:$0xff]
  %v106 = vld [vmem:[%s2 + $0x78] sm:$0xff]
  %v107 = vld [vmem:[%s3] sm:$0xff]
  %v108 = vld [vmem:[%s3 + $0x8] sm:$0xff]
  %v109 = vld [vmem:[%s3 + $0x10] sm:$0xff]
  %v110 = vld [vmem:[%s3 + $0x18] sm:$0xff]
  %v111 = vld [vmem:[%s3 + $0x20] sm:$0xff]
  %v112 = vld [vmem:[%s3 + $0x28] sm:$0xff]
  %v113 = vld [vmem:[%s3 + $0x30] sm:$0xff]
  %v114 = vld [vmem:[%s3 + $0x38] sm:$0xff]
  %v115 = vld [vmem:[%s3 + $0x40] sm:$0xff]
  %v116 = vld [vmem:[%s3 + $0x48] sm:$0xff]
  %v117 = vld [vmem:[%s3 + $0x50] sm:$0xff]
  %v118 = vld [vmem:[%s3 + $0x58] sm:$0xff]
  %v119 = vld [vmem:[%s3 + $0x60] sm:$0xff]
  %v120 = vld [vmem:[%s3 + $0x68] sm:$0xff]
  %v121 = vld [vmem:[%s3 + $0x70] sm:$0xff]
  %v122 = vld [vmem:[%s3 + $0x78] sm:$0xff]
  %139 = vrot.lane.b32.xlu0 %v91, 2
  %v140 = vpop.permute.xlu0 %139
  %141 = vrot.lane.b32.xlu0 %v92, 2
  %v142 = vpop.permute.xlu0 %141
  %143 = vrot.lane.b32.xlu0 %v93, 2
  %v144 = vpop.permute.xlu0 %143
  %145 = vrot.lane.b32.xlu0 %v94, 2
  %v146 = vpop.permute.xlu0 %145
  %147 = vrot.lane.b32.xlu0 %v95, 2
  %v148 = vpop.permute.xlu0 %147
  %149 = vrot.lane.b32.xlu0 %v96, 2
  %v150 = vpop.permute.xlu0 %149
  %151 = vrot.lane.b32.xlu0 %v97, 2
  %v152 = vpop.permute.xlu0 %151
  %153 = vrot.lane.b32.xlu0 %v98, 2
  %v154 = vpop.permute.xlu0 %153
  %155 = vrot.lane.b32.xlu0 %v99, 2
  %v156 = vpop.permute.xlu0 %155
  %157 = vrot.lane.b32.xlu0 %v100, 2
  %v158 = vpop.permute.xlu0 %157
  %159 = vrot.lane.b32.xlu0 %v101, 2
  %v160 = vpop.permute.xlu0 %159
  %161 = vrot.lane.b32.xlu0 %v102, 2
  %v162 = vpop.permute.xlu0 %161
  %163 = vrot.lane.b32.xlu0 %v103, 2
  %v164 = vpop.permute.xlu0 %163
  %165 = vrot.lane.b32.xlu0 %v104, 2
  %v166 = vpop.permute.xlu0 %165
  %167 = vrot.lane.b32.xlu0 %v105, 2
  %v168 = vpop.permute.xlu0 %167
  %169 = vrot.lane.b32.xlu0 %v106, 2
  %v170 = vpop.permute.xlu0 %169
  %v187 = vsub.f32 %v91, %v140
  %v188 = vsub.f32 %v92, %v142
  %v189 = vsub.f32 %v93, %v144
  %v190 = vsub.f32 %v94, %v146
  %v191 = vsub.f32 %v95, %v148
  %v192 = vsub.f32 %v96, %v150
  %v193 = vsub.f32 %v97, %v152
  %v194 = vsub.f32 %v98, %v154
  %v195 = vsub.f32 %v99, %v156
  %v196 = vsub.f32 %v100, %v158
  %v197 = vsub.f32 %v101, %v160
  %v198 = vsub.f32 %v102, %v162
  %v199 = vsub.f32 %v103, %v164
  %v200 = vsub.f32 %v104, %v166
  %v201 = vsub.f32 %v105, %v168
  %v202 = vsub.f32 %v106, %v170
  %v203 = vadd.f32 %v187, 1.0
  %v204 = vadd.f32 %v188, 1.0
  %v205 = vadd.f32 %v189, 1.0
  %v206 = vadd.f32 %v190, 1.0
  %v207 = vadd.f32 %v191, 1.0
  %v208 = vadd.f32 %v192, 1.0
  %v209 = vadd.f32 %v193, 1.0
  %v210 = vadd.f32 %v194, 1.0
  %v211 = vadd.f32 %v195, 1.0
  %v212 = vadd.f32 %v196, 1.0
  %v213 = vadd.f32 %v197, 1.0
  %v214 = vadd.f32 %v198, 1.0
  %v215 = vadd.f32 %v199, 1.0
  %v216 = vadd.f32 %v200, 1.0
  %v217 = vadd.f32 %v201, 1.0
  %v218 = vadd.f32 %v202, 1.0
  %v219 = vmul.f32 %v203, 0.5
  %v220 = vmul.f32 %v204, 0.5
  %v221 = vmul.f32 %v205, 0.5
  %v222 = vmul.f32 %v206, 0.5
  %v223 = vmul.f32 %v207, 0.5
  %v224 = vmul.f32 %v208, 0.5
  %v225 = vmul.f32 %v209, 0.5
  %v226 = vmul.f32 %v210, 0.5
  %v227 = vmul.f32 %v211, 0.5
  %v228 = vmul.f32 %v212, 0.5
  %v229 = vmul.f32 %v213, 0.5
  %v230 = vmul.f32 %v214, 0.5
  %v231 = vmul.f32 %v215, 0.5
  %v232 = vmul.f32 %v216, 0.5
  %v233 = vmul.f32 %v217, 0.5
  %v234 = vmul.f32 %v218, 0.5
  %251 = vrot.lane.b32.xlu0 %v219, 126
  %v252 = vpop.permute.xlu0 %251
  %253 = vrot.lane.b32.xlu0 %v220, 126
  %v254 = vpop.permute.xlu0 %253
  %255 = vrot.lane.b32.xlu0 %v221, 126
  %v256 = vpop.permute.xlu0 %255
  %257 = vrot.lane.b32.xlu0 %v222, 126
  %v258 = vpop.permute.xlu0 %257
  %259 = vrot.lane.b32.xlu0 %v223, 126
  %v260 = vpop.permute.xlu0 %259
  %261 = vrot.lane.b32.xlu0 %v224, 126
  %v262 = vpop.permute.xlu0 %261
  %263 = vrot.lane.b32.xlu0 %v225, 126
  %v264 = vpop.permute.xlu0 %263
  %265 = vrot.lane.b32.xlu0 %v226, 126
  %v266 = vpop.permute.xlu0 %265
  %267 = vrot.lane.b32.xlu0 %v227, 126
  %v268 = vpop.permute.xlu0 %267
  %269 = vrot.lane.b32.xlu0 %v228, 126
  %v270 = vpop.permute.xlu0 %269
  %271 = vrot.lane.b32.xlu0 %v229, 126
  %v272 = vpop.permute.xlu0 %271
  %273 = vrot.lane.b32.xlu0 %v230, 126
  %v274 = vpop.permute.xlu0 %273
  %275 = vrot.lane.b32.xlu0 %v231, 126
  %v276 = vpop.permute.xlu0 %275
  %277 = vrot.lane.b32.xlu0 %v232, 126
  %v278 = vpop.permute.xlu0 %277
  %279 = vrot.lane.b32.xlu0 %v233, 126
  %v280 = vpop.permute.xlu0 %279
  %281 = vrot.lane.b32.xlu0 %v234, 126
  %v282 = vpop.permute.xlu0 %281
  %v299 = vadd.f32 %v91, %v252
  %v300 = vadd.f32 %v92, %v254
  %v301 = vadd.f32 %v93, %v256
  %v302 = vadd.f32 %v94, %v258
  %v303 = vadd.f32 %v95, %v260
  %v304 = vadd.f32 %v96, %v262
  %v305 = vadd.f32 %v97, %v264
  %v306 = vadd.f32 %v98, %v266
  %v307 = vadd.f32 %v99, %v268
  %v308 = vadd.f32 %v100, %v270
  %v309 = vadd.f32 %v101, %v272
  %v310 = vadd.f32 %v102, %v274
  %v311 = vadd.f32 %v103, %v276
  %v312 = vadd.f32 %v104, %v278
  %v313 = vadd.f32 %v105, %v280
  %v314 = vadd.f32 %v106, %v282
  %331 = vrot.lane.b32.xlu0 %v203, 126
  %v332 = vpop.permute.xlu0 %331
  %333 = vrot.lane.b32.xlu0 %v204, 126
  %v334 = vpop.permute.xlu0 %333
  %335 = vrot.lane.b32.xlu0 %v205, 126
  %v336 = vpop.permute.xlu0 %335
  %337 = vrot.lane.b32.xlu0 %v206, 126
  %v338 = vpop.permute.xlu0 %337
  %339 = vrot.lane.b32.xlu0 %v207, 126
  %v340 = vpop.permute.xlu0 %339
  %341 = vrot.lane.b32.xlu0 %v208, 126
  %v342 = vpop.permute.xlu0 %341
  %343 = vrot.lane.b32.xlu0 %v209, 126
  %v344 = vpop.permute.xlu0 %343
  %345 = vrot.lane.b32.xlu0 %v210, 126
  %v346 = vpop.permute.xlu0 %345
  %347 = vrot.lane.b32.xlu0 %v211, 126
  %v348 = vpop.permute.xlu0 %347
  %349 = vrot.lane.b32.xlu0 %v212, 126
  %v350 = vpop.permute.xlu0 %349
  %351 = vrot.lane.b32.xlu0 %v213, 126
  %v352 = vpop.permute.xlu0 %351
  %353 = vrot.lane.b32.xlu0 %v214, 126
  %v354 = vpop.permute.xlu0 %353
  %355 = vrot.lane.b32.xlu0 %v215, 126
  %v356 = vpop.permute.xlu0 %355
  %357 = vrot.lane.b32.xlu0 %v216, 126
  %v358 = vpop.permute.xlu0 %357
  %359 = vrot.lane.b32.xlu0 %v217, 126
  %v360 = vpop.permute.xlu0 %359
  %361 = vrot.lane.b32.xlu0 %v218, 126
  %v362 = vpop.permute.xlu0 %361
  %v379 = vmul.f32 %v107, %v332
  %v380 = vmul.f32 %v108, %v334
  %v381 = vmul.f32 %v109, %v336
  %v382 = vmul.f32 %v110, %v338
  %v383 = vmul.f32 %v111, %v340
  %v384 = vmul.f32 %v112, %v342
  %v385 = vmul.f32 %v113, %v344
  %v386 = vmul.f32 %v114, %v346
  %v387 = vmul.f32 %v115, %v348
  %v388 = vmul.f32 %v116, %v350
  %v389 = vmul.f32 %v117, %v352
  %v390 = vmul.f32 %v118, %v354
  %v391 = vmul.f32 %v119, %v356
  %v392 = vmul.f32 %v120, %v358
  %v393 = vmul.f32 %v121, %v360
  %v394 = vmul.f32 %v122, %v362
  %v395 = vadd.f32 %v379, %v299
  %v396 = vadd.f32 %v380, %v300
  %v397 = vadd.f32 %v381, %v301
  %v398 = vadd.f32 %v382, %v302
  %v399 = vadd.f32 %v383, %v303
  %v400 = vadd.f32 %v384, %v304
  %v401 = vadd.f32 %v385, %v305
  %v402 = vadd.f32 %v386, %v306
  %v403 = vadd.f32 %v387, %v307
  %v404 = vadd.f32 %v388, %v308
  %v405 = vadd.f32 %v389, %v309
  %v406 = vadd.f32 %v390, %v310
  %v407 = vadd.f32 %v391, %v311
  %v408 = vadd.f32 %v392, %v312
  %v409 = vadd.f32 %v393, %v313
  %v410 = vadd.f32 %v394, %v314
  %v411 = vmin.f32 %v107, 4.1351666
  %v412 = vmin.f32 %v108, 4.1351666
  %v413 = vmin.f32 %v109, 4.1351666
  %v414 = vmin.f32 %v110, 4.1351666
  %v415 = vmin.f32 %v111, 4.1351666
  %v416 = vmin.f32 %v112, 4.1351666
  %v417 = vmin.f32 %v113, 4.1351666
  %v418 = vmin.f32 %v114, 4.1351666
  %v419 = vmin.f32 %v115, 4.1351666
  %v420 = vmin.f32 %v116, 4.1351666
  %v421 = vmin.f32 %v117, 4.1351666
  %v422 = vmin.f32 %v118, 4.1351666
  %v423 = vmin.f32 %v119, 4.1351666
  %v424 = vmin.f32 %v120, 4.1351666
  %v425 = vmin.f32 %v121, 4.1351666
  %v426 = vmin.f32 %v122, 4.1351666
  %v427 = vmul.f32 %v411, 1.442695
  %v428 = vpow.pop %v427
  %v429 = vmul.f32 %v412, 1.442695
  %v430 = vpow.pop %v429
  %v431 = vmul.f32 %v413, 1.442695
  %v432 = vpow.pop %v431
  %v433 = vmul.f32 %v414, 1.442695
  %v434 = vpow.pop %v433
  %v435 = vmul.f32 %v415, 1.442695
  %v436 = vpow.pop %v435
  %v437 = vmul.f32 %v416, 1.442695
  %v438 = vpow.pop %v437
  %v439 = vmul.f32 %v417, 1.442695
  %v440 = vpow.pop %v439
  %v441 = vmul.f32 %v418, 1.442695
  %v442 = vpow.pop %v441
  %v443 = vmul.f32 %v419, 1.442695
  %v444 = vpow.pop %v443
  %v445 = vmul.f32 %v420, 1.442695
  %v446 = vpow.pop %v445
  %v447 = vmul.f32 %v421, 1.442695
  %v448 = vpow.pop %v447
  %v449 = vmul.f32 %v422, 1.442695
  %v450 = vpow.pop %v449
  %v451 = vmul.f32 %v423, 1.442695
  %v452 = vpow.pop %v451
  %v453 = vmul.f32 %v424, 1.442695
  %v454 = vpow.pop %v453
  %v455 = vmul.f32 %v425, 1.442695
  %v456 = vpow.pop %v455
  %v457 = vmul.f32 %v426, 1.442695
  %v458 = vpow.pop %v457
  %v459 = vmul.f32 %v428, %v203
  %v460 = vmul.f32 %v430, %v204
  %v461 = vmul.f32 %v432, %v205
  %v462 = vmul.f32 %v434, %v206
  %v463 = vmul.f32 %v436, %v207
  %v464 = vmul.f32 %v438, %v208
  %v465 = vmul.f32 %v440, %v209
  %v466 = vmul.f32 %v442, %v210
  %v467 = vmul.f32 %v444, %v211
  %v468 = vmul.f32 %v446, %v212
  %v469 = vmul.f32 %v448, %v213
  %v470 = vmul.f32 %v450, %v214
  %v471 = vmul.f32 %v452, %v215
  %v472 = vmul.f32 %v454, %v216
  %v473 = vmul.f32 %v456, %v217
  %v474 = vmul.f32 %v458, %v218
  %v475 = vmul.f32 %v459, 0.5
  %v476 = vmul.f32 %v460, 0.5
  %v477 = vmul.f32 %v461, 0.5
  %v478 = vmul.f32 %v462, 0.5
  %v479 = vmul.f32 %v463, 0.5
  %v480 = vmul.f32 %v464, 0.5
  %v481 = vmul.f32 %v465, 0.5
  %v482 = vmul.f32 %v466, 0.5
  %v483 = vmul.f32 %v467, 0.5
  %v484 = vmul.f32 %v468, 0.5
  %v485 = vmul.f32 %v469, 0.5
  %v486 = vmul.f32 %v470, 0.5
  %v487 = vmul.f32 %v471, 0.5
  %v488 = vmul.f32 %v472, 0.5
  %v489 = vmul.f32 %v473, 0.5
  %v490 = vmul.f32 %v474, 0.5
  %507 = vrot.lane.b32.xlu0 %v475, 126
  %v508 = vpop.permute.xlu0 %507
  %509 = vrot.lane.b32.xlu0 %v476, 126
  %v510 = vpop.permute.xlu0 %509
  %511 = vrot.lane.b32.xlu0 %v477, 126
  %v512 = vpop.permute.xlu0 %511
  %513 = vrot.lane.b32.xlu0 %v478, 126
  %v514 = vpop.permute.xlu0 %513
  %515 = vrot.lane.b32.xlu0 %v479, 126
  %v516 = vpop.permute.xlu0 %515
  %517 = vrot.lane.b32.xlu0 %v480, 126
  %v518 = vpop.permute.xlu0 %517
  %519 = vrot.lane.b32.xlu0 %v481, 126
  %v520 = vpop.permute.xlu0 %519
  %521 = vrot.lane.b32.xlu0 %v482, 126
  %v522 = vpop.permute.xlu0 %521
  %523 = vrot.lane.b32.xlu0 %v483, 126
  %v524 = vpop.permute.xlu0 %523
  %525 = vrot.lane.b32.xlu0 %v484, 126
  %v526 = vpop.permute.xlu0 %525
  %527 = vrot.lane.b32.xlu0 %v485, 126
  %v528 = vpop.permute.xlu0 %527
  %529 = vrot.lane.b32.xlu0 %v486, 126
  %v530 = vpop.permute.xlu0 %529
  %531 = vrot.lane.b32.xlu0 %v487, 126
  %v532 = vpop.permute.xlu0 %531
  %533 = vrot.lane.b32.xlu0 %v488, 126
  %v534 = vpop.permute.xlu0 %533
  %535 = vrot.lane.b32.xlu0 %v489, 126
  %v536 = vpop.permute.xlu0 %535
  %537 = vrot.lane.b32.xlu0 %v490, 126
  %v538 = vpop.permute.xlu0 %537
  %v555 = vsub.f32 %v395, %v508
  %v556 = vsub.f32 %v396, %v510
  %v557 = vsub.f32 %v397, %v512
  %v558 = vsub.f32 %v398, %v514
  %v559 = vsub.f32 %v399, %v516
  %v560 = vsub.f32 %v400, %v518
  %v561 = vsub.f32 %v401, %v520
  %v562 = vsub.f32 %v402, %v522
  %v563 = vsub.f32 %v403, %v524
  %v564 = vsub.f32 %v404, %v526
  %v565 = vsub.f32 %v405, %v528
  %v566 = vsub.f32 %v406, %v530
  %v567 = vsub.f32 %v407, %v532
  %v568 = vsub.f32 %v408, %v534
  %v569 = vsub.f32 %v409, %v536
  %v570 = vsub.f32 %v410, %v538
  %v571 = vmax.f32 %v555, 0.0
  %v572 = vmax.f32 %v556, 0.0
  %v573 = vmax.f32 %v557, 0.0
  %v574 = vmax.f32 %v558, 0.0
  %v575 = vmax.f32 %v559, 0.0
  %v576 = vmax.f32 %v560, 0.0
  %v577 = vmax.f32 %v561, 0.0
  %v578 = vmax.f32 %v562, 0.0
  %v579 = vmax.f32 %v563, 0.0
  %v580 = vmax.f32 %v564, 0.0
  %v581 = vmax.f32 %v565, 0.0
  %v582 = vmax.f32 %v566, 0.0
  %v583 = vmax.f32 %v567, 0.0
  %v584 = vmax.f32 %v568, 0.0
  %v585 = vmax.f32 %v569, 0.0
  %v586 = vmax.f32 %v570, 0.0
  %v587 = vmin.f32 %v571, 63.0
  %v588 = vmin.f32 %v572, 63.0
  %v589 = vmin.f32 %v573, 63.0
  %v590 = vmin.f32 %v574, 63.0
  %v591 = vmin.f32 %v575, 63.0
  %v592 = vmin.f32 %v576, 63.0
  %v593 = vmin.f32 %v577, 63.0
  %v594 = vmin.f32 %v578, 63.0
  %v595 = vmin.f32 %v579, 63.0
  %v596 = vmin.f32 %v580, 63.0
  %v597 = vmin.f32 %v581, 63.0
  %v598 = vmin.f32 %v582, 63.0
  %v599 = vmin.f32 %v583, 63.0
  %v600 = vmin.f32 %v584, 63.0
  %v601 = vmin.f32 %v585, 63.0
  %v602 = vmin.f32 %v586, 63.0
  %v603 = vadd.f32 %v395, %v508
  %v604 = vadd.f32 %v396, %v510
  %v605 = vadd.f32 %v397, %v512
  %v606 = vadd.f32 %v398, %v514
  %v607 = vadd.f32 %v399, %v516
  %v608 = vadd.f32 %v400, %v518
  %v609 = vadd.f32 %v401, %v520
  %v610 = vadd.f32 %v402, %v522
  %v611 = vadd.f32 %v403, %v524
  %v612 = vadd.f32 %v404, %v526
  %v613 = vadd.f32 %v405, %v528
  %v614 = vadd.f32 %v406, %v530
  %v615 = vadd.f32 %v407, %v532
  %v616 = vadd.f32 %v408, %v534
  %v617 = vadd.f32 %v409, %v536
  %v618 = vadd.f32 %v410, %v538
  %v619 = vmax.f32 %v603, 0.0
  %v620 = vmax.f32 %v604, 0.0
  %v621 = vmax.f32 %v605, 0.0
  %v622 = vmax.f32 %v606, 0.0
  %v623 = vmax.f32 %v607, 0.0
  %v624 = vmax.f32 %v608, 0.0
  %v625 = vmax.f32 %v609, 0.0
  %v626 = vmax.f32 %v610, 0.0
  %v627 = vmax.f32 %v611, 0.0
  %v628 = vmax.f32 %v612, 0.0
  %v629 = vmax.f32 %v613, 0.0
  %v630 = vmax.f32 %v614, 0.0
  %v631 = vmax.f32 %v615, 0.0
  %v632 = vmax.f32 %v616, 0.0
  %v633 = vmax.f32 %v617, 0.0
  %v634 = vmax.f32 %v618, 0.0
  %v635 = vmin.f32 %v619, 63.0
  %v636 = vmin.f32 %v620, 63.0
  %v637 = vmin.f32 %v621, 63.0
  %v638 = vmin.f32 %v622, 63.0
  %v639 = vmin.f32 %v623, 63.0
  %v640 = vmin.f32 %v624, 63.0
  %v641 = vmin.f32 %v625, 63.0
  %v642 = vmin.f32 %v626, 63.0
  %v643 = vmin.f32 %v627, 63.0
  %v644 = vmin.f32 %v628, 63.0
  %v645 = vmin.f32 %v629, 63.0
  %v646 = vmin.f32 %v630, 63.0
  %v647 = vmin.f32 %v631, 63.0
  %v648 = vmin.f32 %v632, 63.0
  %v649 = vmin.f32 %v633, 63.0
  %v650 = vmin.f32 %v634, 63.0
  %652 = vset.pattern.permute.xlu0 0
  %653 = vperm.xlu0 %652, %v635
  %v654 = vpop.permute.xlu0 %653
  %657 = vset.pattern.permute.xlu0 0
  %658 = vperm.xlu0 %657, %v636
  %v659 = vpop.permute.xlu0 %658
  %662 = vset.pattern.permute.xlu0 0
  %663 = vperm.xlu0 %662, %v637
  %v664 = vpop.permute.xlu0 %663
  %667 = vset.pattern.permute.xlu0 0
  %668 = vperm.xlu0 %667, %v638
  %v669 = vpop.permute.xlu0 %668
  %672 = vset.pattern.permute.xlu0 0
  %673 = vperm.xlu0 %672, %v639
  %v674 = vpop.permute.xlu0 %673
  %677 = vset.pattern.permute.xlu0 0
  %678 = vperm.xlu0 %677, %v640
  %v679 = vpop.permute.xlu0 %678
  %682 = vset.pattern.permute.xlu0 0
  %683 = vperm.xlu0 %682, %v641
  %v684 = vpop.permute.xlu0 %683
  %687 = vset.pattern.permute.xlu0 0
  %688 = vperm.xlu0 %687, %v642
  %v689 = vpop.permute.xlu0 %688
  %692 = vset.pattern.permute.xlu0 0
  %693 = vperm.xlu0 %692, %v643
  %v694 = vpop.permute.xlu0 %693
  %697 = vset.pattern.permute.xlu0 0
  %698 = vperm.xlu0 %697, %v644
  %v699 = vpop.permute.xlu0 %698
  %702 = vset.pattern.permute.xlu0 0
  %703 = vperm.xlu0 %702, %v645
  %v704 = vpop.permute.xlu0 %703
  %707 = vset.pattern.permute.xlu0 0
  %708 = vperm.xlu0 %707, %v646
  %v709 = vpop.permute.xlu0 %708
  %712 = vset.pattern.permute.xlu0 0
  %713 = vperm.xlu0 %712, %v647
  %v714 = vpop.permute.xlu0 %713
  %717 = vset.pattern.permute.xlu0 0
  %718 = vperm.xlu0 %717, %v648
  %v719 = vpop.permute.xlu0 %718
  %722 = vset.pattern.permute.xlu0 0
  %723 = vperm.xlu0 %722, %v649
  %v724 = vpop.permute.xlu0 %723
  %727 = vset.pattern.permute.xlu0 0
  %728 = vperm.xlu0 %727, %v650
  %v729 = vpop.permute.xlu0 %728
  %v731 = vlaneseq
  %v732 = vshrl.u32 %v731, 7
  %v733 = vsub.s32 0, %v732
  %v734 = vrot.slane %v79, %v733
  %v735 = vlaneseq
  %v736 = vshrl.u32 %v735, 7
  %v737 = vsub.s32 0, %v736
  %v738 = vrot.slane %v80, %v737
  %v739 = vmin.f32 %v654, %v734
  %v740 = vmin.f32 %v659, %v734
  %v741 = vmin.f32 %v664, %v734
  %v742 = vmin.f32 %v669, %v734
  %v743 = vmin.f32 %v674, %v734
  %v744 = vmin.f32 %v679, %v734
  %v745 = vmin.f32 %v684, %v734
  %v746 = vmin.f32 %v689, %v734
  %v747 = vmin.f32 %v694, %v738
  %v748 = vmin.f32 %v699, %v738
  %v749 = vmin.f32 %v704, %v738
  %v750 = vmin.f32 %v709, %v738
  %v751 = vmin.f32 %v714, %v738
  %v752 = vmin.f32 %v719, %v738
  %v753 = vmin.f32 %v724, %v738
  %v754 = vmin.f32 %v729, %v738
  %756 = vset.pattern.permute.xlu0 0
  %757 = vperm.xlu0 %756, %v587
  %v758 = vpop.permute.xlu0 %757
  %761 = vset.pattern.permute.xlu0 0
  %762 = vperm.xlu0 %761, %v588
  %v763 = vpop.permute.xlu0 %762
  %766 = vset.pattern.permute.xlu0 0
  %767 = vperm.xlu0 %766, %v589
  %v768 = vpop.permute.xlu0 %767
  %771 = vset.pattern.permute.xlu0 0
  %772 = vperm.xlu0 %771, %v590
  %v773 = vpop.permute.xlu0 %772
  %776 = vset.pattern.permute.xlu0 0
  %777 = vperm.xlu0 %776, %v591
  %v778 = vpop.permute.xlu0 %777
  %781 = vset.pattern.permute.xlu0 0
  %782 = vperm.xlu0 %781, %v592
  %v783 = vpop.permute.xlu0 %782
  %786 = vset.pattern.permute.xlu0 0
  %787 = vperm.xlu0 %786, %v593
  %v788 = vpop.permute.xlu0 %787
  %791 = vset.pattern.permute.xlu0 0
  %792 = vperm.xlu0 %791, %v594
  %v793 = vpop.permute.xlu0 %792
  %796 = vset.pattern.permute.xlu0 0
  %797 = vperm.xlu0 %796, %v595
  %v798 = vpop.permute.xlu0 %797
  %801 = vset.pattern.permute.xlu0 0
  %802 = vperm.xlu0 %801, %v596
  %v803 = vpop.permute.xlu0 %802
  %806 = vset.pattern.permute.xlu0 0
  %807 = vperm.xlu0 %806, %v597
  %v808 = vpop.permute.xlu0 %807
  %811 = vset.pattern.permute.xlu0 0
  %812 = vperm.xlu0 %811, %v598
  %v813 = vpop.permute.xlu0 %812
  %816 = vset.pattern.permute.xlu0 0
  %817 = vperm.xlu0 %816, %v599
  %v818 = vpop.permute.xlu0 %817
  %821 = vset.pattern.permute.xlu0 0
  %822 = vperm.xlu0 %821, %v600
  %v823 = vpop.permute.xlu0 %822
  %826 = vset.pattern.permute.xlu0 0
  %827 = vperm.xlu0 %826, %v601
  %v828 = vpop.permute.xlu0 %827
  %831 = vset.pattern.permute.xlu0 0
  %832 = vperm.xlu0 %831, %v602
  %v833 = vpop.permute.xlu0 %832
  %v835 = vlaneseq
  %v836 = vshrl.u32 %v835, 7
  %v837 = vsub.s32 0, %v836
  %v838 = vrot.slane %v73, %v837
  %v839 = vlaneseq
  %v840 = vshrl.u32 %v839, 7
  %v841 = vsub.s32 0, %v840
  %v842 = vrot.slane %v74, %v841
  %v843 = vmax.f32 %v758, %v838
  %v844 = vmax.f32 %v763, %v838
  %v845 = vmax.f32 %v768, %v838
  %v846 = vmax.f32 %v773, %v838
  %v847 = vmax.f32 %v778, %v838
  %v848 = vmax.f32 %v783, %v838
  %v849 = vmax.f32 %v788, %v838
  %v850 = vmax.f32 %v793, %v838
  %v851 = vmax.f32 %v798, %v842
  %v852 = vmax.f32 %v803, %v842
  %v853 = vmax.f32 %v808, %v842
  %v854 = vmax.f32 %v813, %v842
  %v855 = vmax.f32 %v818, %v842
  %v856 = vmax.f32 %v823, %v842
  %v857 = vmax.f32 %v828, %v842
  %v858 = vmax.f32 %v833, %v842
  %v859 = vsub.f32 %v739, %v843
  %v860 = vsub.f32 %v740, %v844
  %v861 = vsub.f32 %v741, %v845
  %v862 = vsub.f32 %v742, %v846
  %v863 = vsub.f32 %v743, %v847
  %v864 = vsub.f32 %v744, %v848
  %v865 = vsub.f32 %v745, %v849
  %v866 = vsub.f32 %v746, %v850
  %v867 = vsub.f32 %v747, %v851
  %v868 = vsub.f32 %v748, %v852
  %v869 = vsub.f32 %v749, %v853
  %v870 = vsub.f32 %v750, %v854
  %v871 = vsub.f32 %v751, %v855
  %v872 = vsub.f32 %v752, %v856
  %v873 = vsub.f32 %v753, %v857
  %v874 = vsub.f32 %v754, %v858
  %v875 = vadd.f32 %v859, 1.0
  %v876 = vadd.f32 %v860, 1.0
  %v877 = vadd.f32 %v861, 1.0
  %v878 = vadd.f32 %v862, 1.0
  %v879 = vadd.f32 %v863, 1.0
  %v880 = vadd.f32 %v864, 1.0
  %v881 = vadd.f32 %v865, 1.0
  %v882 = vadd.f32 %v866, 1.0
  %v883 = vadd.f32 %v867, 1.0
  %v884 = vadd.f32 %v868, 1.0
  %v885 = vadd.f32 %v869, 1.0
  %v886 = vadd.f32 %v870, 1.0
  %v887 = vadd.f32 %v871, 1.0
  %v888 = vadd.f32 %v872, 1.0
  %v889 = vadd.f32 %v873, 1.0
  %v890 = vadd.f32 %v874, 1.0
  %v891 = vmax.f32 %v875, 0.0
  %v892 = vmax.f32 %v876, 0.0
  %v893 = vmax.f32 %v877, 0.0
  %v894 = vmax.f32 %v878, 0.0
  %v895 = vmax.f32 %v879, 0.0
  %v896 = vmax.f32 %v880, 0.0
  %v897 = vmax.f32 %v881, 0.0
  %v898 = vmax.f32 %v882, 0.0
  %v899 = vmax.f32 %v883, 0.0
  %v900 = vmax.f32 %v884, 0.0
  %v901 = vmax.f32 %v885, 0.0
  %v902 = vmax.f32 %v886, 0.0
  %v903 = vmax.f32 %v887, 0.0
  %v904 = vmax.f32 %v888, 0.0
  %v905 = vmax.f32 %v889, 0.0
  %v906 = vmax.f32 %v890, 0.0
  %907 = vset.pattern.permute.xlu0 1
  %908 = vperm.xlu0 %907, %v635
  %v909 = vpop.permute.xlu0 %908
  %911 = vset.pattern.permute.xlu0 1
  %912 = vperm.xlu0 %911, %v636
  %v913 = vpop.permute.xlu0 %912
  %915 = vset.pattern.permute.xlu0 1
  %916 = vperm.xlu0 %915, %v637
  %v917 = vpop.permute.xlu0 %916
  %919 = vset.pattern.permute.xlu0 1
  %920 = vperm.xlu0 %919, %v638
  %v921 = vpop.permute.xlu0 %920
  %923 = vset.pattern.permute.xlu0 1
  %924 = vperm.xlu0 %923, %v639
  %v925 = vpop.permute.xlu0 %924
  %927 = vset.pattern.permute.xlu0 1
  %928 = vperm.xlu0 %927, %v640
  %v929 = vpop.permute.xlu0 %928
  %931 = vset.pattern.permute.xlu0 1
  %932 = vperm.xlu0 %931, %v641
  %v933 = vpop.permute.xlu0 %932
  %935 = vset.pattern.permute.xlu0 1
  %936 = vperm.xlu0 %935, %v642
  %v937 = vpop.permute.xlu0 %936
  %939 = vset.pattern.permute.xlu0 1
  %940 = vperm.xlu0 %939, %v643
  %v941 = vpop.permute.xlu0 %940
  %943 = vset.pattern.permute.xlu0 1
  %944 = vperm.xlu0 %943, %v644
  %v945 = vpop.permute.xlu0 %944
  %947 = vset.pattern.permute.xlu0 1
  %948 = vperm.xlu0 %947, %v645
  %v949 = vpop.permute.xlu0 %948
  %951 = vset.pattern.permute.xlu0 1
  %952 = vperm.xlu0 %951, %v646
  %v953 = vpop.permute.xlu0 %952
  %955 = vset.pattern.permute.xlu0 1
  %956 = vperm.xlu0 %955, %v647
  %v957 = vpop.permute.xlu0 %956
  %959 = vset.pattern.permute.xlu0 1
  %960 = vperm.xlu0 %959, %v648
  %v961 = vpop.permute.xlu0 %960
  %963 = vset.pattern.permute.xlu0 1
  %964 = vperm.xlu0 %963, %v649
  %v965 = vpop.permute.xlu0 %964
  %967 = vset.pattern.permute.xlu0 1
  %968 = vperm.xlu0 %967, %v650
  %v969 = vpop.permute.xlu0 %968
  %v971 = vlaneseq
  %v972 = vshrl.u32 %v971, 7
  %v973 = vsub.s32 1, %v972
  %v974 = vrot.slane %v79, %v973
  %v975 = vlaneseq
  %v976 = vshrl.u32 %v975, 7
  %v977 = vsub.s32 1, %v976
  %v978 = vrot.slane %v80, %v977
  %v979 = vmin.f32 %v909, %v974
  %v980 = vmin.f32 %v913, %v974
  %v981 = vmin.f32 %v917, %v974
  %v982 = vmin.f32 %v921, %v974
  %v983 = vmin.f32 %v925, %v974
  %v984 = vmin.f32 %v929, %v974
  %v985 = vmin.f32 %v933, %v974
  %v986 = vmin.f32 %v937, %v974
  %v987 = vmin.f32 %v941, %v978
  %v988 = vmin.f32 %v945, %v978
  %v989 = vmin.f32 %v949, %v978
  %v990 = vmin.f32 %v953, %v978
  %v991 = vmin.f32 %v957, %v978
  %v992 = vmin.f32 %v961, %v978
  %v993 = vmin.f32 %v965, %v978
  %v994 = vmin.f32 %v969, %v978
  %995 = vset.pattern.permute.xlu0 1
  %996 = vperm.xlu0 %995, %v587
  %v997 = vpop.permute.xlu0 %996
  %999 = vset.pattern.permute.xlu0 1
  %1000 = vperm.xlu0 %999, %v588
  %v1001 = vpop.permute.xlu0 %1000
  %1003 = vset.pattern.permute.xlu0 1
  %1004 = vperm.xlu0 %1003, %v589
  %v1005 = vpop.permute.xlu0 %1004
  %1007 = vset.pattern.permute.xlu0 1
  %1008 = vperm.xlu0 %1007, %v590
  %v1009 = vpop.permute.xlu0 %1008
  %1011 = vset.pattern.permute.xlu0 1
  %1012 = vperm.xlu0 %1011, %v591
  %v1013 = vpop.permute.xlu0 %1012
  %1015 = vset.pattern.permute.xlu0 1
  %1016 = vperm.xlu0 %1015, %v592
  %v1017 = vpop.permute.xlu0 %1016
  %1019 = vset.pattern.permute.xlu0 1
  %1020 = vperm.xlu0 %1019, %v593
  %v1021 = vpop.permute.xlu0 %1020
  %1023 = vset.pattern.permute.xlu0 1
  %1024 = vperm.xlu0 %1023, %v594
  %v1025 = vpop.permute.xlu0 %1024
  %1027 = vset.pattern.permute.xlu0 1
  %1028 = vperm.xlu0 %1027, %v595
  %v1029 = vpop.permute.xlu0 %1028
  %1031 = vset.pattern.permute.xlu0 1
  %1032 = vperm.xlu0 %1031, %v596
  %v1033 = vpop.permute.xlu0 %1032
  %1035 = vset.pattern.permute.xlu0 1
  %1036 = vperm.xlu0 %1035, %v597
  %v1037 = vpop.permute.xlu0 %1036
  %1039 = vset.pattern.permute.xlu0 1
  %1040 = vperm.xlu0 %1039, %v598
  %v1041 = vpop.permute.xlu0 %1040
  %1043 = vset.pattern.permute.xlu0 1
  %1044 = vperm.xlu0 %1043, %v599
  %v1045 = vpop.permute.xlu0 %1044
  %1047 = vset.pattern.permute.xlu0 1
  %1048 = vperm.xlu0 %1047, %v600
  %v1049 = vpop.permute.xlu0 %1048
  %1051 = vset.pattern.permute.xlu0 1
  %1052 = vperm.xlu0 %1051, %v601
  %v1053 = vpop.permute.xlu0 %1052
  %1055 = vset.pattern.permute.xlu0 1
  %1056 = vperm.xlu0 %1055, %v602
  %v1057 = vpop.permute.xlu0 %1056
  %v1059 = vlaneseq
  %v1060 = vshrl.u32 %v1059, 7
  %v1061 = vsub.s32 1, %v1060
  %v1062 = vrot.slane %v73, %v1061
  %v1063 = vlaneseq
  %v1064 = vshrl.u32 %v1063, 7
  %v1065 = vsub.s32 1, %v1064
  %v1066 = vrot.slane %v74, %v1065
  %v1067 = vmax.f32 %v997, %v1062
  %v1068 = vmax.f32 %v1001, %v1062
  %v1069 = vmax.f32 %v1005, %v1062
  %v1070 = vmax.f32 %v1009, %v1062
  %v1071 = vmax.f32 %v1013, %v1062
  %v1072 = vmax.f32 %v1017, %v1062
  %v1073 = vmax.f32 %v1021, %v1062
  %v1074 = vmax.f32 %v1025, %v1062
  %v1075 = vmax.f32 %v1029, %v1066
  %v1076 = vmax.f32 %v1033, %v1066
  %v1077 = vmax.f32 %v1037, %v1066
  %v1078 = vmax.f32 %v1041, %v1066
  %v1079 = vmax.f32 %v1045, %v1066
  %v1080 = vmax.f32 %v1049, %v1066
  %v1081 = vmax.f32 %v1053, %v1066
  %v1082 = vmax.f32 %v1057, %v1066
  %v1083 = vsub.f32 %v979, %v1067
  %v1084 = vsub.f32 %v980, %v1068
  %v1085 = vsub.f32 %v981, %v1069
  %v1086 = vsub.f32 %v982, %v1070
  %v1087 = vsub.f32 %v983, %v1071
  %v1088 = vsub.f32 %v984, %v1072
  %v1089 = vsub.f32 %v985, %v1073
  %v1090 = vsub.f32 %v986, %v1074
  %v1091 = vsub.f32 %v987, %v1075
  %v1092 = vsub.f32 %v988, %v1076
  %v1093 = vsub.f32 %v989, %v1077
  %v1094 = vsub.f32 %v990, %v1078
  %v1095 = vsub.f32 %v991, %v1079
  %v1096 = vsub.f32 %v992, %v1080
  %v1097 = vsub.f32 %v993, %v1081
  %v1098 = vsub.f32 %v994, %v1082
  %v1099 = vadd.f32 %v1083, 1.0
  %v1100 = vadd.f32 %v1084, 1.0
  %v1101 = vadd.f32 %v1085, 1.0
  %v1102 = vadd.f32 %v1086, 1.0
  %v1103 = vadd.f32 %v1087, 1.0
  %v1104 = vadd.f32 %v1088, 1.0
  %v1105 = vadd.f32 %v1089, 1.0
  %v1106 = vadd.f32 %v1090, 1.0
  %v1107 = vadd.f32 %v1091, 1.0
  %v1108 = vadd.f32 %v1092, 1.0
  %v1109 = vadd.f32 %v1093, 1.0
  %v1110 = vadd.f32 %v1094, 1.0
  %v1111 = vadd.f32 %v1095, 1.0
  %v1112 = vadd.f32 %v1096, 1.0
  %v1113 = vadd.f32 %v1097, 1.0
  %v1114 = vadd.f32 %v1098, 1.0
  %v1115 = vmax.f32 %v1099, 0.0
  %v1116 = vmax.f32 %v1100, 0.0
  %v1117 = vmax.f32 %v1101, 0.0
  %v1118 = vmax.f32 %v1102, 0.0
  %v1119 = vmax.f32 %v1103, 0.0
  %v1120 = vmax.f32 %v1104, 0.0
  %v1121 = vmax.f32 %v1105, 0.0
  %v1122 = vmax.f32 %v1106, 0.0
  %v1123 = vmax.f32 %v1107, 0.0
  %v1124 = vmax.f32 %v1108, 0.0
  %v1125 = vmax.f32 %v1109, 0.0
  %v1126 = vmax.f32 %v1110, 0.0
  %v1127 = vmax.f32 %v1111, 0.0
  %v1128 = vmax.f32 %v1112, 0.0
  %v1129 = vmax.f32 %v1113, 0.0
  %v1130 = vmax.f32 %v1114, 0.0
  %v1131 = vmul.f32 %v891, %v1115
  %v1132 = vmul.f32 %v892, %v1116
  %v1133 = vmul.f32 %v893, %v1117
  %v1134 = vmul.f32 %v894, %v1118
  %v1135 = vmul.f32 %v895, %v1119
  %v1136 = vmul.f32 %v896, %v1120
  %v1137 = vmul.f32 %v897, %v1121
  %v1138 = vmul.f32 %v898, %v1122
  %v1139 = vmul.f32 %v899, %v1123
  %v1140 = vmul.f32 %v900, %v1124
  %v1141 = vmul.f32 %v901, %v1125
  %v1142 = vmul.f32 %v902, %v1126
  %v1143 = vmul.f32 %v903, %v1127
  %v1144 = vmul.f32 %v904, %v1128
  %v1145 = vmul.f32 %v905, %v1129
  %v1146 = vmul.f32 %v906, %v1130
  %v1147 = vsub.f32 %v635, %v587
  %v1148 = vsub.f32 %v636, %v588
  %v1149 = vsub.f32 %v637, %v589
  %v1150 = vsub.f32 %v638, %v590
  %v1151 = vsub.f32 %v639, %v591
  %v1152 = vsub.f32 %v640, %v592
  %v1153 = vsub.f32 %v641, %v593
  %v1154 = vsub.f32 %v642, %v594
  %v1155 = vsub.f32 %v643, %v595
  %v1156 = vsub.f32 %v644, %v596
  %v1157 = vsub.f32 %v645, %v597
  %v1158 = vsub.f32 %v646, %v598
  %v1159 = vsub.f32 %v647, %v599
  %v1160 = vsub.f32 %v648, %v600
  %v1161 = vsub.f32 %v649, %v601
  %v1162 = vsub.f32 %v650, %v602
  %v1163 = vadd.f32 %v1147, 1.0
  %v1164 = vadd.f32 %v1148, 1.0
  %v1165 = vadd.f32 %v1149, 1.0
  %v1166 = vadd.f32 %v1150, 1.0
  %v1167 = vadd.f32 %v1151, 1.0
  %v1168 = vadd.f32 %v1152, 1.0
  %v1169 = vadd.f32 %v1153, 1.0
  %v1170 = vadd.f32 %v1154, 1.0
  %v1171 = vadd.f32 %v1155, 1.0
  %v1172 = vadd.f32 %v1156, 1.0
  %v1173 = vadd.f32 %v1157, 1.0
  %v1174 = vadd.f32 %v1158, 1.0
  %v1175 = vadd.f32 %v1159, 1.0
  %v1176 = vadd.f32 %v1160, 1.0
  %v1177 = vadd.f32 %v1161, 1.0
  %v1178 = vadd.f32 %v1162, 1.0
  %1195 = vrot.lane.b32.xlu0 %v1163, 127
  %v1196 = vpop.permute.xlu0 %1195
  %1197 = vrot.lane.b32.xlu0 %v1164, 127
  %v1198 = vpop.permute.xlu0 %1197
  %1199 = vrot.lane.b32.xlu0 %v1165, 127
  %v1200 = vpop.permute.xlu0 %1199
  %1201 = vrot.lane.b32.xlu0 %v1166, 127
  %v1202 = vpop.permute.xlu0 %1201
  %1203 = vrot.lane.b32.xlu0 %v1167, 127
  %v1204 = vpop.permute.xlu0 %1203
  %1205 = vrot.lane.b32.xlu0 %v1168, 127
  %v1206 = vpop.permute.xlu0 %1205
  %1207 = vrot.lane.b32.xlu0 %v1169, 127
  %v1208 = vpop.permute.xlu0 %1207
  %1209 = vrot.lane.b32.xlu0 %v1170, 127
  %v1210 = vpop.permute.xlu0 %1209
  %1211 = vrot.lane.b32.xlu0 %v1171, 127
  %v1212 = vpop.permute.xlu0 %1211
  %1213 = vrot.lane.b32.xlu0 %v1172, 127
  %v1214 = vpop.permute.xlu0 %1213
  %1215 = vrot.lane.b32.xlu0 %v1173, 127
  %v1216 = vpop.permute.xlu0 %1215
  %1217 = vrot.lane.b32.xlu0 %v1174, 127
  %v1218 = vpop.permute.xlu0 %1217
  %1219 = vrot.lane.b32.xlu0 %v1175, 127
  %v1220 = vpop.permute.xlu0 %1219
  %1221 = vrot.lane.b32.xlu0 %v1176, 127
  %v1222 = vpop.permute.xlu0 %1221
  %1223 = vrot.lane.b32.xlu0 %v1177, 127
  %v1224 = vpop.permute.xlu0 %1223
  %1225 = vrot.lane.b32.xlu0 %v1178, 127
  %v1226 = vpop.permute.xlu0 %1225
  %v1243 = vmul.f32 %v1163, %v1196
  %v1244 = vmul.f32 %v1164, %v1198
  %v1245 = vmul.f32 %v1165, %v1200
  %v1246 = vmul.f32 %v1166, %v1202
  %v1247 = vmul.f32 %v1167, %v1204
  %v1248 = vmul.f32 %v1168, %v1206
  %v1249 = vmul.f32 %v1169, %v1208
  %v1250 = vmul.f32 %v1170, %v1210
  %v1251 = vmul.f32 %v1171, %v1212
  %v1252 = vmul.f32 %v1172, %v1214
  %v1253 = vmul.f32 %v1173, %v1216
  %v1254 = vmul.f32 %v1174, %v1218
  %v1255 = vmul.f32 %v1175, %v1220
  %v1256 = vmul.f32 %v1176, %v1222
  %v1257 = vmul.f32 %v1177, %v1224
  %v1258 = vmul.f32 %v1178, %v1226
  %v1259 = vsub.f32 %v79, %v73
  %v1260 = vsub.f32 %v80, %v74
  %v1261 = vadd.f32 %v1259, 1.0
  %v1262 = vadd.f32 %v1260, 1.0
  %v1265 = vrot.slane %v1261, 1
  %v1266 = vrot.slane %v1262, 1
  %v1269 = vmul.f32 %v1261, %v1265
  %v1270 = vmul.f32 %v1262, %v1266
  %1272 = vset.pattern.permute.xlu0 0
  %1273 = vperm.xlu0 %1272, %v1243
  %v1274 = vpop.permute.xlu0 %1273
  %1277 = vset.pattern.permute.xlu0 0
  %1278 = vperm.xlu0 %1277, %v1244
  %v1279 = vpop.permute.xlu0 %1278
  %1282 = vset.pattern.permute.xlu0 0
  %1283 = vperm.xlu0 %1282, %v1245
  %v1284 = vpop.permute.xlu0 %1283
  %1287 = vset.pattern.permute.xlu0 0
  %1288 = vperm.xlu0 %1287, %v1246
  %v1289 = vpop.permute.xlu0 %1288
  %1292 = vset.pattern.permute.xlu0 0
  %1293 = vperm.xlu0 %1292, %v1247
  %v1294 = vpop.permute.xlu0 %1293
  %1297 = vset.pattern.permute.xlu0 0
  %1298 = vperm.xlu0 %1297, %v1248
  %v1299 = vpop.permute.xlu0 %1298
  %1302 = vset.pattern.permute.xlu0 0
  %1303 = vperm.xlu0 %1302, %v1249
  %v1304 = vpop.permute.xlu0 %1303
  %1307 = vset.pattern.permute.xlu0 0
  %1308 = vperm.xlu0 %1307, %v1250
  %v1309 = vpop.permute.xlu0 %1308
  %1312 = vset.pattern.permute.xlu0 0
  %1313 = vperm.xlu0 %1312, %v1251
  %v1314 = vpop.permute.xlu0 %1313
  %1317 = vset.pattern.permute.xlu0 0
  %1318 = vperm.xlu0 %1317, %v1252
  %v1319 = vpop.permute.xlu0 %1318
  %1322 = vset.pattern.permute.xlu0 0
  %1323 = vperm.xlu0 %1322, %v1253
  %v1324 = vpop.permute.xlu0 %1323
  %1327 = vset.pattern.permute.xlu0 0
  %1328 = vperm.xlu0 %1327, %v1254
  %v1329 = vpop.permute.xlu0 %1328
  %1332 = vset.pattern.permute.xlu0 0
  %1333 = vperm.xlu0 %1332, %v1255
  %v1334 = vpop.permute.xlu0 %1333
  %1337 = vset.pattern.permute.xlu0 0
  %1338 = vperm.xlu0 %1337, %v1256
  %v1339 = vpop.permute.xlu0 %1338
  %1342 = vset.pattern.permute.xlu0 0
  %1343 = vperm.xlu0 %1342, %v1257
  %v1344 = vpop.permute.xlu0 %1343
  %1347 = vset.pattern.permute.xlu0 0
  %1348 = vperm.xlu0 %1347, %v1258
  %v1349 = vpop.permute.xlu0 %1348
  %v1351 = vlaneseq
  %v1352 = vshrl.u32 %v1351, 7
  %v1353 = vsub.s32 0, %v1352
  %v1354 = vrot.slane %v1269, %v1353
  %v1355 = vlaneseq
  %v1356 = vshrl.u32 %v1355, 7
  %v1357 = vsub.s32 0, %v1356
  %v1358 = vrot.slane %v1270, %v1357
  %v1359 = vadd.f32 %v1274, %v1354
  %v1360 = vadd.f32 %v1279, %v1354
  %v1361 = vadd.f32 %v1284, %v1354
  %v1362 = vadd.f32 %v1289, %v1354
  %v1363 = vadd.f32 %v1294, %v1354
  %v1364 = vadd.f32 %v1299, %v1354
  %v1365 = vadd.f32 %v1304, %v1354
  %v1366 = vadd.f32 %v1309, %v1354
  %v1367 = vadd.f32 %v1314, %v1358
  %v1368 = vadd.f32 %v1319, %v1358
  %v1369 = vadd.f32 %v1324, %v1358
  %v1370 = vadd.f32 %v1329, %v1358
  %v1371 = vadd.f32 %v1334, %v1358
  %v1372 = vadd.f32 %v1339, %v1358
  %v1373 = vadd.f32 %v1344, %v1358
  %v1374 = vadd.f32 %v1349, %v1358
  %v1375 = vsub.f32 %v1359, %v1131
  %v1376 = vsub.f32 %v1360, %v1132
  %v1377 = vsub.f32 %v1361, %v1133
  %v1378 = vsub.f32 %v1362, %v1134
  %v1379 = vsub.f32 %v1363, %v1135
  %v1380 = vsub.f32 %v1364, %v1136
  %v1381 = vsub.f32 %v1365, %v1137
  %v1382 = vsub.f32 %v1366, %v1138
  %v1383 = vsub.f32 %v1367, %v1139
  %v1384 = vsub.f32 %v1368, %v1140
  %v1385 = vsub.f32 %v1369, %v1141
  %v1386 = vsub.f32 %v1370, %v1142
  %v1387 = vsub.f32 %v1371, %v1143
  %v1388 = vsub.f32 %v1372, %v1144
  %v1389 = vsub.f32 %v1373, %v1145
  %v1390 = vsub.f32 %v1374, %v1146
  %v1391 = vlaneseq
  %v1392 = vshrl.u32 %v1391, 7
  %v1393 = vadd.s32 %v1392, 8
  %v1394 = vadd.s32 %v1392, 16
  %v1395 = vadd.s32 %v1392, 24
  %v1396 = vadd.s32 %v1392, 32
  %v1397 = vadd.s32 %v1392, 40
  %v1398 = vadd.s32 %v1392, 48
  %v1399 = vadd.s32 %v1392, 56
  %v1400 = vlaneseq
  %v1401 = vand.u32 %v1400, 127
  %v1402 = vmul.f32 %v1375, 0.7
  %v1403 = vmul.f32 %v1376, 0.7
  %v1404 = vmul.f32 %v1377, 0.7
  %v1405 = vmul.f32 %v1378, 0.7
  %v1406 = vmul.f32 %v1379, 0.7
  %v1407 = vmul.f32 %v1380, 0.7
  %v1408 = vmul.f32 %v1381, 0.7
  %v1409 = vmul.f32 %v1382, 0.7
  %v1410 = vmul.f32 %v1383, 0.7
  %v1411 = vmul.f32 %v1384, 0.7
  %v1412 = vmul.f32 %v1385, 0.7
  %v1413 = vmul.f32 %v1386, 0.7
  %v1414 = vmul.f32 %v1387, 0.7
  %v1415 = vmul.f32 %v1388, 0.7
  %v1416 = vmul.f32 %v1389, 0.7
  %v1417 = vmul.f32 %v1390, 0.7
  %vm1418 = vcmp.gt.f32.partialorder %v1131, %v1402
  %vm1419 = vcmp.gt.f32.partialorder %v1132, %v1403
  %vm1420 = vcmp.gt.f32.partialorder %v1133, %v1404
  %vm1421 = vcmp.gt.f32.partialorder %v1134, %v1405
  %vm1422 = vcmp.gt.f32.partialorder %v1135, %v1406
  %vm1423 = vcmp.gt.f32.partialorder %v1136, %v1407
  %vm1424 = vcmp.gt.f32.partialorder %v1137, %v1408
  %vm1425 = vcmp.gt.f32.partialorder %v1138, %v1409
  %vm1426 = vcmp.gt.f32.partialorder %v1139, %v1410
  %vm1427 = vcmp.gt.f32.partialorder %v1140, %v1411
  %vm1428 = vcmp.gt.f32.partialorder %v1141, %v1412
  %vm1429 = vcmp.gt.f32.partialorder %v1142, %v1413
  %vm1430 = vcmp.gt.f32.partialorder %v1143, %v1414
  %vm1431 = vcmp.gt.f32.partialorder %v1144, %v1415
  %vm1432 = vcmp.gt.f32.partialorder %v1145, %v1416
  %vm1433 = vcmp.gt.f32.partialorder %v1146, %v1417
  %vm1434 = vcmp.gt.s32.totalorder %v1401, %v1392
  %vm1435 = vcmp.gt.s32.totalorder %v1401, %v1393
  %vm1436 = vcmp.gt.s32.totalorder %v1401, %v1394
  %vm1437 = vcmp.gt.s32.totalorder %v1401, %v1395
  %vm1438 = vcmp.gt.s32.totalorder %v1401, %v1396
  %vm1439 = vcmp.gt.s32.totalorder %v1401, %v1397
  %vm1440 = vcmp.gt.s32.totalorder %v1401, %v1398
  %vm1441 = vcmp.gt.s32.totalorder %v1401, %v1399
  %v1442 = vsel %vm1434, 1, 0
  %v1443 = vsel %vm1435, 1, 0
  %v1444 = vsel %vm1436, 1, 0
  %v1445 = vsel %vm1437, 1, 0
  %v1446 = vsel %vm1438, 1, 0
  %v1447 = vsel %vm1439, 1, 0
  %v1448 = vsel %vm1440, 1, 0
  %v1449 = vsel %vm1441, 1, 0
  %vm1450 = vcmp.eq.s32.totalorder %v1442, 1
  %vm1451 = vcmp.eq.s32.totalorder %v1443, 1
  %vm1452 = vcmp.eq.s32.totalorder %v1444, 1
  %vm1453 = vcmp.eq.s32.totalorder %v1445, 1
  %vm1454 = vcmp.eq.s32.totalorder %v1446, 1
  %vm1455 = vcmp.eq.s32.totalorder %v1447, 1
  %vm1456 = vcmp.eq.s32.totalorder %v1448, 1
  %vm1457 = vcmp.eq.s32.totalorder %v1449, 1
  %vm1458 = vmand %vm1418, %vm1450
  %vm1459 = vmand %vm1419, %vm1451
  %vm1460 = vmand %vm1420, %vm1452
  %vm1461 = vmand %vm1421, %vm1453
  %vm1462 = vmand %vm1422, %vm1454
  %vm1463 = vmand %vm1423, %vm1455
  %vm1464 = vmand %vm1424, %vm1456
  %vm1465 = vmand %vm1425, %vm1457
  %vm1466 = vmand %vm1426, %vm1450
  %vm1467 = vmand %vm1427, %vm1451
  %vm1468 = vmand %vm1428, %vm1452
  %vm1469 = vmand %vm1429, %vm1453
  %vm1470 = vmand %vm1430, %vm1454
  %vm1471 = vmand %vm1431, %vm1455
  %vm1472 = vmand %vm1432, %vm1456
  %vm1473 = vmand %vm1433, %vm1457
  %v1474 = vsel %vm1458, 1.0, 0.0
  %v1475 = vsel %vm1459, 1.0, 0.0
  %v1476 = vsel %vm1460, 1.0, 0.0
  %v1477 = vsel %vm1461, 1.0, 0.0
  %v1478 = vsel %vm1462, 1.0, 0.0
  %v1479 = vsel %vm1463, 1.0, 0.0
  %v1480 = vsel %vm1464, 1.0, 0.0
  %v1481 = vsel %vm1465, 1.0, 0.0
  %v1482 = vsel %vm1466, 1.0, 0.0
  %v1483 = vsel %vm1467, 1.0, 0.0
  %v1484 = vsel %vm1468, 1.0, 0.0
  %v1485 = vsel %vm1469, 1.0, 0.0
  %v1486 = vsel %vm1470, 1.0, 0.0
  %v1487 = vsel %vm1471, 1.0, 0.0
  %v1488 = vsel %vm1472, 1.0, 0.0
  %v1489 = vsel %vm1473, 1.0, 0.0
  %vm1490 = vcmask 523264
  %1491 = vst.msk [vmem:[#allocation2] sm:$0xff] %vm1490, %v1474
  %1492 = vst.msk [vmem:[#allocation2 + $0x8] sm:$0xff] %vm1490, %v1475
  %1493 = vst.msk [vmem:[#allocation2 + $0x10] sm:$0xff] %vm1490, %v1476
  %1494 = vst.msk [vmem:[#allocation2 + $0x18] sm:$0xff] %vm1490, %v1477
  %1495 = vst.msk [vmem:[#allocation2 + $0x20] sm:$0xff] %vm1490, %v1478
  %1496 = vst.msk [vmem:[#allocation2 + $0x28] sm:$0xff] %vm1490, %v1479
  %1497 = vst.msk [vmem:[#allocation2 + $0x30] sm:$0xff] %vm1490, %v1480
  %1498 = vst.msk [vmem:[#allocation2 + $0x38] sm:$0xff] %vm1490, %v1481
  %1499 = vst.msk [vmem:[#allocation2 + $0x40] sm:$0xff] %vm1490, %v1482
  %1500 = vst.msk [vmem:[#allocation2 + $0x48] sm:$0xff] %vm1490, %v1483
  %1501 = vst.msk [vmem:[#allocation2 + $0x50] sm:$0xff] %vm1490, %v1484
  %1502 = vst.msk [vmem:[#allocation2 + $0x58] sm:$0xff] %vm1490, %v1485
  %1503 = vst.msk [vmem:[#allocation2 + $0x60] sm:$0xff] %vm1490, %v1486
  %1504 = vst.msk [vmem:[#allocation2 + $0x68] sm:$0xff] %vm1490, %v1487
  %1505 = vst.msk [vmem:[#allocation2 + $0x70] sm:$0xff] %vm1490, %v1488
  %1506 = vst.msk [vmem:[#allocation2 + $0x78] sm:$0xff] %vm1490, %v1489
  %v1507 = vld [vmem:[#allocation2] sm:$0x1]
  %v1508 = vld [vmem:[#allocation2 + $0x40] sm:$0x1]
  %v1509 = vsub.f32 1.0, %v1507
  %v1510 = vsub.f32 1.0, %v1508
  %v1511 = vld [vmem:[#allocation2 + $0x1] sm:$0x1]
  %v1512 = vld [vmem:[#allocation2 + $0x41] sm:$0x1]
  %1514 = vset.pattern.permute.xlu0 1
  %1515 = vperm.xlu0 %1514, %v1509
  %v1516 = vpop.permute.xlu0 %1515
  %1519 = vset.pattern.permute.xlu0 1
  %1520 = vperm.xlu0 %1519, %v1510
  %v1521 = vpop.permute.xlu0 %1520
  %v1523 = vmul.f32 %v1511, %v1516
  %v1524 = vmul.f32 %v1512, %v1521
  %v1525 = vsub.f32 1.0, %v1523
  %v1526 = vsub.f32 1.0, %v1524
  %v1527 = vmul.f32 %v1509, %v1525
  %v1528 = vmul.f32 %v1510, %v1526
  %v1529 = vld [vmem:[#allocation2 + $0x2] sm:$0x1]
  %v1530 = vld [vmem:[#allocation2 + $0x42] sm:$0x1]
  %1532 = vset.pattern.permute.xlu0 2
  %1533 = vperm.xlu0 %1532, %v1527
  %v1534 = vpop.permute.xlu0 %1533
  %1537 = vset.pattern.permute.xlu0 2
  %1538 = vperm.xlu0 %1537, %v1528
  %v1539 = vpop.permute.xlu0 %1538
  %v1541 = vmul.f32 %v1529, %v1534
  %v1542 = vmul.f32 %v1530, %v1539
  %v1543 = vsub.f32 1.0, %v1541
  %v1544 = vsub.f32 1.0, %v1542
  %v1545 = vmul.f32 %v1527, %v1543
  %v1546 = vmul.f32 %v1528, %v1544
  %v1547 = vld [vmem:[#allocation2 + $0x3] sm:$0x1]
  %v1548 = vld [vmem:[#allocation2 + $0x43] sm:$0x1]
  %1550 = vset.pattern.permute.xlu0 3
  %1551 = vperm.xlu0 %1550, %v1545
  %v1552 = vpop.permute.xlu0 %1551
  %1555 = vset.pattern.permute.xlu0 3
  %1556 = vperm.xlu0 %1555, %v1546
  %v1557 = vpop.permute.xlu0 %1556
  %v1559 = vmul.f32 %v1547, %v1552
  %v1560 = vmul.f32 %v1548, %v1557
  %v1561 = vsub.f32 1.0, %v1559
  %v1562 = vsub.f32 1.0, %v1560
  %v1563 = vmul.f32 %v1545, %v1561
  %v1564 = vmul.f32 %v1546, %v1562
  %v1565 = vld [vmem:[#allocation2 + $0x4] sm:$0x1]
  %v1566 = vld [vmem:[#allocation2 + $0x44] sm:$0x1]
  %1568 = vset.pattern.permute.xlu0 4
  %1569 = vperm.xlu0 %1568, %v1563
  %v1570 = vpop.permute.xlu0 %1569
  %1573 = vset.pattern.permute.xlu0 4
  %1574 = vperm.xlu0 %1573, %v1564
  %v1575 = vpop.permute.xlu0 %1574
  %v1577 = vmul.f32 %v1565, %v1570
  %v1578 = vmul.f32 %v1566, %v1575
  %v1579 = vsub.f32 1.0, %v1577
  %v1580 = vsub.f32 1.0, %v1578
  %v1581 = vmul.f32 %v1563, %v1579
  %v1582 = vmul.f32 %v1564, %v1580
  %v1583 = vld [vmem:[#allocation2 + $0x5] sm:$0x1]
  %v1584 = vld [vmem:[#allocation2 + $0x45] sm:$0x1]
  %1586 = vset.pattern.permute.xlu0 5
  %1587 = vperm.xlu0 %1586, %v1581
  %v1588 = vpop.permute.xlu0 %1587
  %1591 = vset.pattern.permute.xlu0 5
  %1592 = vperm.xlu0 %1591, %v1582
  %v1593 = vpop.permute.xlu0 %1592
  %v1595 = vmul.f32 %v1583, %v1588
  %v1596 = vmul.f32 %v1584, %v1593
  %v1597 = vsub.f32 1.0, %v1595
  %v1598 = vsub.f32 1.0, %v1596
  %v1599 = vmul.f32 %v1581, %v1597
  %v1600 = vmul.f32 %v1582, %v1598
  %v1601 = vld [vmem:[#allocation2 + $0x6] sm:$0x1]
  %v1602 = vld [vmem:[#allocation2 + $0x46] sm:$0x1]
  %1604 = vset.pattern.permute.xlu0 6
  %1605 = vperm.xlu0 %1604, %v1599
  %v1606 = vpop.permute.xlu0 %1605
  %1609 = vset.pattern.permute.xlu0 6
  %1610 = vperm.xlu0 %1609, %v1600
  %v1611 = vpop.permute.xlu0 %1610
  %v1613 = vmul.f32 %v1601, %v1606
  %v1614 = vmul.f32 %v1602, %v1611
  %v1615 = vsub.f32 1.0, %v1613
  %v1616 = vsub.f32 1.0, %v1614
  %v1617 = vmul.f32 %v1599, %v1615
  %v1618 = vmul.f32 %v1600, %v1616
  %v1619 = vld [vmem:[#allocation2 + $0x7] sm:$0x1]
  %v1620 = vld [vmem:[#allocation2 + $0x47] sm:$0x1]
  %1622 = vset.pattern.permute.xlu0 7
  %1623 = vperm.xlu0 %1622, %v1617
  %v1624 = vpop.permute.xlu0 %1623
  %1627 = vset.pattern.permute.xlu0 7
  %1628 = vperm.xlu0 %1627, %v1618
  %v1629 = vpop.permute.xlu0 %1628
  %v1631 = vmul.f32 %v1619, %v1624
  %v1632 = vmul.f32 %v1620, %v1629
  %v1633 = vsub.f32 1.0, %v1631
  %v1634 = vsub.f32 1.0, %v1632
  %v1635 = vmul.f32 %v1617, %v1633
  %v1636 = vmul.f32 %v1618, %v1634
  %v1637 = vld [vmem:[#allocation2 + $0x8] sm:$0x1]
  %v1638 = vld [vmem:[#allocation2 + $0x48] sm:$0x1]
  %1640 = vset.pattern.permute.xlu0 8
  %1641 = vperm.xlu0 %1640, %v1635
  %v1642 = vpop.permute.xlu0 %1641
  %1645 = vset.pattern.permute.xlu0 8
  %1646 = vperm.xlu0 %1645, %v1636
  %v1647 = vpop.permute.xlu0 %1646
  %v1649 = vmul.f32 %v1637, %v1642
  %v1650 = vmul.f32 %v1638, %v1647
  %v1651 = vsub.f32 1.0, %v1649
  %v1652 = vsub.f32 1.0, %v1650
  %v1653 = vmul.f32 %v1635, %v1651
  %v1654 = vmul.f32 %v1636, %v1652
  %v1655 = vld [vmem:[#allocation2 + $0x9] sm:$0x1]
  %v1656 = vld [vmem:[#allocation2 + $0x49] sm:$0x1]
  %1658 = vset.pattern.permute.xlu0 9
  %1659 = vperm.xlu0 %1658, %v1653
  %v1660 = vpop.permute.xlu0 %1659
  %1663 = vset.pattern.permute.xlu0 9
  %1664 = vperm.xlu0 %1663, %v1654
  %v1665 = vpop.permute.xlu0 %1664
  %v1667 = vmul.f32 %v1655, %v1660
  %v1668 = vmul.f32 %v1656, %v1665
  %v1669 = vsub.f32 1.0, %v1667
  %v1670 = vsub.f32 1.0, %v1668
  %v1671 = vmul.f32 %v1653, %v1669
  %v1672 = vmul.f32 %v1654, %v1670
  %v1673 = vld [vmem:[#allocation2 + $0xa] sm:$0x1]
  %v1674 = vld [vmem:[#allocation2 + $0x4a] sm:$0x1]
  %1676 = vset.pattern.permute.xlu0 10
  %1677 = vperm.xlu0 %1676, %v1671
  %v1678 = vpop.permute.xlu0 %1677
  %1681 = vset.pattern.permute.xlu0 10
  %1682 = vperm.xlu0 %1681, %v1672
  %v1683 = vpop.permute.xlu0 %1682
  %v1685 = vmul.f32 %v1673, %v1678
  %v1686 = vmul.f32 %v1674, %v1683
  %v1687 = vsub.f32 1.0, %v1685
  %v1688 = vsub.f32 1.0, %v1686
  %v1689 = vmul.f32 %v1671, %v1687
  %v1690 = vmul.f32 %v1672, %v1688
  %v1691 = vld [vmem:[#allocation2 + $0xb] sm:$0x1]
  %v1692 = vld [vmem:[#allocation2 + $0x4b] sm:$0x1]
  %1694 = vset.pattern.permute.xlu0 11
  %1695 = vperm.xlu0 %1694, %v1689
  %v1696 = vpop.permute.xlu0 %1695
  %1699 = vset.pattern.permute.xlu0 11
  %1700 = vperm.xlu0 %1699, %v1690
  %v1701 = vpop.permute.xlu0 %1700
  %v1703 = vmul.f32 %v1691, %v1696
  %v1704 = vmul.f32 %v1692, %v1701
  %v1705 = vsub.f32 1.0, %v1703
  %v1706 = vsub.f32 1.0, %v1704
  %v1707 = vmul.f32 %v1689, %v1705
  %v1708 = vmul.f32 %v1690, %v1706
  %v1709 = vld [vmem:[#allocation2 + $0xc] sm:$0x1]
  %v1710 = vld [vmem:[#allocation2 + $0x4c] sm:$0x1]
  %1712 = vset.pattern.permute.xlu0 12
  %1713 = vperm.xlu0 %1712, %v1707
  %v1714 = vpop.permute.xlu0 %1713
  %1717 = vset.pattern.permute.xlu0 12
  %1718 = vperm.xlu0 %1717, %v1708
  %v1719 = vpop.permute.xlu0 %1718
  %v1721 = vmul.f32 %v1709, %v1714
  %v1722 = vmul.f32 %v1710, %v1719
  %v1723 = vsub.f32 1.0, %v1721
  %v1724 = vsub.f32 1.0, %v1722
  %v1725 = vmul.f32 %v1707, %v1723
  %v1726 = vmul.f32 %v1708, %v1724
  %v1727 = vld [vmem:[#allocation2 + $0xd] sm:$0x1]
  %v1728 = vld [vmem:[#allocation2 + $0x4d] sm:$0x1]
  %1730 = vset.pattern.permute.xlu0 13
  %1731 = vperm.xlu0 %1730, %v1725
  %v1732 = vpop.permute.xlu0 %1731
  %1735 = vset.pattern.permute.xlu0 13
  %1736 = vperm.xlu0 %1735, %v1726
  %v1737 = vpop.permute.xlu0 %1736
  %v1739 = vmul.f32 %v1727, %v1732
  %v1740 = vmul.f32 %v1728, %v1737
  %v1741 = vsub.f32 1.0, %v1739
  %v1742 = vsub.f32 1.0, %v1740
  %v1743 = vmul.f32 %v1725, %v1741
  %v1744 = vmul.f32 %v1726, %v1742
  %v1745 = vld [vmem:[#allocation2 + $0xe] sm:$0x1]
  %v1746 = vld [vmem:[#allocation2 + $0x4e] sm:$0x1]
  %1748 = vset.pattern.permute.xlu0 14
  %1749 = vperm.xlu0 %1748, %v1743
  %v1750 = vpop.permute.xlu0 %1749
  %1753 = vset.pattern.permute.xlu0 14
  %1754 = vperm.xlu0 %1753, %v1744
  %v1755 = vpop.permute.xlu0 %1754
  %v1757 = vmul.f32 %v1745, %v1750
  %v1758 = vmul.f32 %v1746, %v1755
  %v1759 = vsub.f32 1.0, %v1757
  %v1760 = vsub.f32 1.0, %v1758
  %v1761 = vmul.f32 %v1743, %v1759
  %v1762 = vmul.f32 %v1744, %v1760
  %v1763 = vld [vmem:[#allocation2 + $0xf] sm:$0x1]
  %v1764 = vld [vmem:[#allocation2 + $0x4f] sm:$0x1]
  %1766 = vset.pattern.permute.xlu0 15
  %1767 = vperm.xlu0 %1766, %v1761
  %v1768 = vpop.permute.xlu0 %1767
  %1771 = vset.pattern.permute.xlu0 15
  %1772 = vperm.xlu0 %1771, %v1762
  %v1773 = vpop.permute.xlu0 %1772
  %v1775 = vmul.f32 %v1763, %v1768
  %v1776 = vmul.f32 %v1764, %v1773
  %v1777 = vsub.f32 1.0, %v1775
  %v1778 = vsub.f32 1.0, %v1776
  %v1779 = vmul.f32 %v1761, %v1777
  %v1780 = vmul.f32 %v1762, %v1778
  %v1781 = vld [vmem:[#allocation2 + $0x10] sm:$0x1]
  %v1782 = vld [vmem:[#allocation2 + $0x50] sm:$0x1]
  %1784 = vset.pattern.permute.xlu0 16
  %1785 = vperm.xlu0 %1784, %v1779
  %v1786 = vpop.permute.xlu0 %1785
  %1789 = vset.pattern.permute.xlu0 16
  %1790 = vperm.xlu0 %1789, %v1780
  %v1791 = vpop.permute.xlu0 %1790
  %v1793 = vmul.f32 %v1781, %v1786
  %v1794 = vmul.f32 %v1782, %v1791
  %v1795 = vsub.f32 1.0, %v1793
  %v1796 = vsub.f32 1.0, %v1794
  %v1797 = vmul.f32 %v1779, %v1795
  %v1798 = vmul.f32 %v1780, %v1796
  %v1799 = vld [vmem:[#allocation2 + $0x11] sm:$0x1]
  %v1800 = vld [vmem:[#allocation2 + $0x51] sm:$0x1]
  %1802 = vset.pattern.permute.xlu0 17
  %1803 = vperm.xlu0 %1802, %v1797
  %v1804 = vpop.permute.xlu0 %1803
  %1807 = vset.pattern.permute.xlu0 17
  %1808 = vperm.xlu0 %1807, %v1798
  %v1809 = vpop.permute.xlu0 %1808
  %v1811 = vmul.f32 %v1799, %v1804
  %v1812 = vmul.f32 %v1800, %v1809
  %v1813 = vsub.f32 1.0, %v1811
  %v1814 = vsub.f32 1.0, %v1812
  %v1815 = vmul.f32 %v1797, %v1813
  %v1816 = vmul.f32 %v1798, %v1814
  %v1817 = vld [vmem:[#allocation2 + $0x12] sm:$0x1]
  %v1818 = vld [vmem:[#allocation2 + $0x52] sm:$0x1]
  %1820 = vset.pattern.permute.xlu0 18
  %1821 = vperm.xlu0 %1820, %v1815
  %v1822 = vpop.permute.xlu0 %1821
  %1825 = vset.pattern.permute.xlu0 18
  %1826 = vperm.xlu0 %1825, %v1816
  %v1827 = vpop.permute.xlu0 %1826
  %v1829 = vmul.f32 %v1817, %v1822
  %v1830 = vmul.f32 %v1818, %v1827
  %v1831 = vsub.f32 1.0, %v1829
  %v1832 = vsub.f32 1.0, %v1830
  %v1833 = vmul.f32 %v1815, %v1831
  %v1834 = vmul.f32 %v1816, %v1832
  %v1835 = vld [vmem:[#allocation2 + $0x13] sm:$0x1]
  %v1836 = vld [vmem:[#allocation2 + $0x53] sm:$0x1]
  %1838 = vset.pattern.permute.xlu0 19
  %1839 = vperm.xlu0 %1838, %v1833
  %v1840 = vpop.permute.xlu0 %1839
  %1843 = vset.pattern.permute.xlu0 19
  %1844 = vperm.xlu0 %1843, %v1834
  %v1845 = vpop.permute.xlu0 %1844
  %v1847 = vmul.f32 %v1835, %v1840
  %v1848 = vmul.f32 %v1836, %v1845
  %v1849 = vsub.f32 1.0, %v1847
  %v1850 = vsub.f32 1.0, %v1848
  %v1851 = vmul.f32 %v1833, %v1849
  %v1852 = vmul.f32 %v1834, %v1850
  %v1853 = vld [vmem:[#allocation2 + $0x14] sm:$0x1]
  %v1854 = vld [vmem:[#allocation2 + $0x54] sm:$0x1]
  %1856 = vset.pattern.permute.xlu0 20
  %1857 = vperm.xlu0 %1856, %v1851
  %v1858 = vpop.permute.xlu0 %1857
  %1861 = vset.pattern.permute.xlu0 20
  %1862 = vperm.xlu0 %1861, %v1852
  %v1863 = vpop.permute.xlu0 %1862
  %v1865 = vmul.f32 %v1853, %v1858
  %v1866 = vmul.f32 %v1854, %v1863
  %v1867 = vsub.f32 1.0, %v1865
  %v1868 = vsub.f32 1.0, %v1866
  %v1869 = vmul.f32 %v1851, %v1867
  %v1870 = vmul.f32 %v1852, %v1868
  %v1871 = vld [vmem:[#allocation2 + $0x15] sm:$0x1]
  %v1872 = vld [vmem:[#allocation2 + $0x55] sm:$0x1]
  %1874 = vset.pattern.permute.xlu0 21
  %1875 = vperm.xlu0 %1874, %v1869
  %v1876 = vpop.permute.xlu0 %1875
  %1879 = vset.pattern.permute.xlu0 21
  %1880 = vperm.xlu0 %1879, %v1870
  %v1881 = vpop.permute.xlu0 %1880
  %v1883 = vmul.f32 %v1871, %v1876
  %v1884 = vmul.f32 %v1872, %v1881
  %v1885 = vsub.f32 1.0, %v1883
  %v1886 = vsub.f32 1.0, %v1884
  %v1887 = vmul.f32 %v1869, %v1885
  %v1888 = vmul.f32 %v1870, %v1886
  %v1889 = vld [vmem:[#allocation2 + $0x16] sm:$0x1]
  %v1890 = vld [vmem:[#allocation2 + $0x56] sm:$0x1]
  %1892 = vset.pattern.permute.xlu0 22
  %1893 = vperm.xlu0 %1892, %v1887
  %v1894 = vpop.permute.xlu0 %1893
  %1897 = vset.pattern.permute.xlu0 22
  %1898 = vperm.xlu0 %1897, %v1888
  %v1899 = vpop.permute.xlu0 %1898
  %v1901 = vmul.f32 %v1889, %v1894
  %v1902 = vmul.f32 %v1890, %v1899
  %v1903 = vsub.f32 1.0, %v1901
  %v1904 = vsub.f32 1.0, %v1902
  %v1905 = vmul.f32 %v1887, %v1903
  %v1906 = vmul.f32 %v1888, %v1904
  %v1907 = vld [vmem:[#allocation2 + $0x17] sm:$0x1]
  %v1908 = vld [vmem:[#allocation2 + $0x57] sm:$0x1]
  %1910 = vset.pattern.permute.xlu0 23
  %1911 = vperm.xlu0 %1910, %v1905
  %v1912 = vpop.permute.xlu0 %1911
  %1915 = vset.pattern.permute.xlu0 23
  %1916 = vperm.xlu0 %1915, %v1906
  %v1917 = vpop.permute.xlu0 %1916
  %v1919 = vmul.f32 %v1907, %v1912
  %v1920 = vmul.f32 %v1908, %v1917
  %v1921 = vsub.f32 1.0, %v1919
  %v1922 = vsub.f32 1.0, %v1920
  %v1923 = vmul.f32 %v1905, %v1921
  %v1924 = vmul.f32 %v1906, %v1922
  %v1925 = vld [vmem:[#allocation2 + $0x18] sm:$0x1]
  %v1926 = vld [vmem:[#allocation2 + $0x58] sm:$0x1]
  %1928 = vset.pattern.permute.xlu0 24
  %1929 = vperm.xlu0 %1928, %v1923
  %v1930 = vpop.permute.xlu0 %1929
  %1933 = vset.pattern.permute.xlu0 24
  %1934 = vperm.xlu0 %1933, %v1924
  %v1935 = vpop.permute.xlu0 %1934
  %v1937 = vmul.f32 %v1925, %v1930
  %v1938 = vmul.f32 %v1926, %v1935
  %v1939 = vsub.f32 1.0, %v1937
  %v1940 = vsub.f32 1.0, %v1938
  %v1941 = vmul.f32 %v1923, %v1939
  %v1942 = vmul.f32 %v1924, %v1940
  %v1943 = vld [vmem:[#allocation2 + $0x19] sm:$0x1]
  %v1944 = vld [vmem:[#allocation2 + $0x59] sm:$0x1]
  %1946 = vset.pattern.permute.xlu0 25
  %1947 = vperm.xlu0 %1946, %v1941
  %v1948 = vpop.permute.xlu0 %1947
  %1951 = vset.pattern.permute.xlu0 25
  %1952 = vperm.xlu0 %1951, %v1942
  %v1953 = vpop.permute.xlu0 %1952
  %v1955 = vmul.f32 %v1943, %v1948
  %v1956 = vmul.f32 %v1944, %v1953
  %v1957 = vsub.f32 1.0, %v1955
  %v1958 = vsub.f32 1.0, %v1956
  %v1959 = vmul.f32 %v1941, %v1957
  %v1960 = vmul.f32 %v1942, %v1958
  %v1961 = vld [vmem:[#allocation2 + $0x1a] sm:$0x1]
  %v1962 = vld [vmem:[#allocation2 + $0x5a] sm:$0x1]
  %1964 = vset.pattern.permute.xlu0 26
  %1965 = vperm.xlu0 %1964, %v1959
  %v1966 = vpop.permute.xlu0 %1965
  %1969 = vset.pattern.permute.xlu0 26
  %1970 = vperm.xlu0 %1969, %v1960
  %v1971 = vpop.permute.xlu0 %1970
  %v1973 = vmul.f32 %v1961, %v1966
  %v1974 = vmul.f32 %v1962, %v1971
  %v1975 = vsub.f32 1.0, %v1973
  %v1976 = vsub.f32 1.0, %v1974
  %v1977 = vmul.f32 %v1959, %v1975
  %v1978 = vmul.f32 %v1960, %v1976
  %v1979 = vld [vmem:[#allocation2 + $0x1b] sm:$0x1]
  %v1980 = vld [vmem:[#allocation2 + $0x5b] sm:$0x1]
  %1982 = vset.pattern.permute.xlu0 27
  %1983 = vperm.xlu0 %1982, %v1977
  %v1984 = vpop.permute.xlu0 %1983
  %1987 = vset.pattern.permute.xlu0 27
  %1988 = vperm.xlu0 %1987, %v1978
  %v1989 = vpop.permute.xlu0 %1988
  %v1991 = vmul.f32 %v1979, %v1984
  %v1992 = vmul.f32 %v1980, %v1989
  %v1993 = vsub.f32 1.0, %v1991
  %v1994 = vsub.f32 1.0, %v1992
  %v1995 = vmul.f32 %v1977, %v1993
  %v1996 = vmul.f32 %v1978, %v1994
  %v1997 = vld [vmem:[#allocation2 + $0x1c] sm:$0x1]
  %v1998 = vld [vmem:[#allocation2 + $0x5c] sm:$0x1]
  %2000 = vset.pattern.permute.xlu0 28
  %2001 = vperm.xlu0 %2000, %v1995
  %v2002 = vpop.permute.xlu0 %2001
  %2005 = vset.pattern.permute.xlu0 28
  %2006 = vperm.xlu0 %2005, %v1996
  %v2007 = vpop.permute.xlu0 %2006
  %v2009 = vmul.f32 %v1997, %v2002
  %v2010 = vmul.f32 %v1998, %v2007
  %v2011 = vsub.f32 1.0, %v2009
  %v2012 = vsub.f32 1.0, %v2010
  %v2013 = vmul.f32 %v1995, %v2011
  %v2014 = vmul.f32 %v1996, %v2012
  %v2015 = vld [vmem:[#allocation2 + $0x1d] sm:$0x1]
  %v2016 = vld [vmem:[#allocation2 + $0x5d] sm:$0x1]
  %2018 = vset.pattern.permute.xlu0 29
  %2019 = vperm.xlu0 %2018, %v2013
  %v2020 = vpop.permute.xlu0 %2019
  %2023 = vset.pattern.permute.xlu0 29
  %2024 = vperm.xlu0 %2023, %v2014
  %v2025 = vpop.permute.xlu0 %2024
  %v2027 = vmul.f32 %v2015, %v2020
  %v2028 = vmul.f32 %v2016, %v2025
  %v2029 = vsub.f32 1.0, %v2027
  %v2030 = vsub.f32 1.0, %v2028
  %v2031 = vmul.f32 %v2013, %v2029
  %v2032 = vmul.f32 %v2014, %v2030
  %v2033 = vld [vmem:[#allocation2 + $0x1e] sm:$0x1]
  %v2034 = vld [vmem:[#allocation2 + $0x5e] sm:$0x1]
  %2036 = vset.pattern.permute.xlu0 30
  %2037 = vperm.xlu0 %2036, %v2031
  %v2038 = vpop.permute.xlu0 %2037
  %2041 = vset.pattern.permute.xlu0 30
  %2042 = vperm.xlu0 %2041, %v2032
  %v2043 = vpop.permute.xlu0 %2042
  %v2045 = vmul.f32 %v2033, %v2038
  %v2046 = vmul.f32 %v2034, %v2043
  %v2047 = vsub.f32 1.0, %v2045
  %v2048 = vsub.f32 1.0, %v2046
  %v2049 = vmul.f32 %v2031, %v2047
  %v2050 = vmul.f32 %v2032, %v2048
  %v2051 = vld [vmem:[#allocation2 + $0x1f] sm:$0x1]
  %v2052 = vld [vmem:[#allocation2 + $0x5f] sm:$0x1]
  %2054 = vset.pattern.permute.xlu0 31
  %2055 = vperm.xlu0 %2054, %v2049
  %v2056 = vpop.permute.xlu0 %2055
  %2059 = vset.pattern.permute.xlu0 31
  %2060 = vperm.xlu0 %2059, %v2050
  %v2061 = vpop.permute.xlu0 %2060
  %v2063 = vmul.f32 %v2051, %v2056
  %v2064 = vmul.f32 %v2052, %v2061
  %v2065 = vsub.f32 1.0, %v2063
  %v2066 = vsub.f32 1.0, %v2064
  %v2067 = vmul.f32 %v2049, %v2065
  %v2068 = vmul.f32 %v2050, %v2066
  %v2069 = vld [vmem:[#allocation2 + $0x20] sm:$0x1]
  %v2070 = vld [vmem:[#allocation2 + $0x60] sm:$0x1]
  %2072 = vset.pattern.permute.xlu0 32
  %2073 = vperm.xlu0 %2072, %v2067
  %v2074 = vpop.permute.xlu0 %2073
  %2077 = vset.pattern.permute.xlu0 32
  %2078 = vperm.xlu0 %2077, %v2068
  %v2079 = vpop.permute.xlu0 %2078
  %v2081 = vmul.f32 %v2069, %v2074
  %v2082 = vmul.f32 %v2070, %v2079
  %v2083 = vsub.f32 1.0, %v2081
  %v2084 = vsub.f32 1.0, %v2082
  %v2085 = vmul.f32 %v2067, %v2083
  %v2086 = vmul.f32 %v2068, %v2084
  %v2087 = vld [vmem:[#allocation2 + $0x21] sm:$0x1]
  %v2088 = vld [vmem:[#allocation2 + $0x61] sm:$0x1]
  %2090 = vset.pattern.permute.xlu0 33
  %2091 = vperm.xlu0 %2090, %v2085
  %v2092 = vpop.permute.xlu0 %2091
  %2095 = vset.pattern.permute.xlu0 33
  %2096 = vperm.xlu0 %2095, %v2086
  %v2097 = vpop.permute.xlu0 %2096
  %v2099 = vmul.f32 %v2087, %v2092
  %v2100 = vmul.f32 %v2088, %v2097
  %v2101 = vsub.f32 1.0, %v2099
  %v2102 = vsub.f32 1.0, %v2100
  %v2103 = vmul.f32 %v2085, %v2101
  %v2104 = vmul.f32 %v2086, %v2102
  %v2105 = vld [vmem:[#allocation2 + $0x22] sm:$0x1]
  %v2106 = vld [vmem:[#allocation2 + $0x62] sm:$0x1]
  %2108 = vset.pattern.permute.xlu0 34
  %2109 = vperm.xlu0 %2108, %v2103
  %v2110 = vpop.permute.xlu0 %2109
  %2113 = vset.pattern.permute.xlu0 34
  %2114 = vperm.xlu0 %2113, %v2104
  %v2115 = vpop.permute.xlu0 %2114
  %v2117 = vmul.f32 %v2105, %v2110
  %v2118 = vmul.f32 %v2106, %v2115
  %v2119 = vsub.f32 1.0, %v2117
  %v2120 = vsub.f32 1.0, %v2118
  %v2121 = vmul.f32 %v2103, %v2119
  %v2122 = vmul.f32 %v2104, %v2120
  %v2123 = vld [vmem:[#allocation2 + $0x23] sm:$0x1]
  %v2124 = vld [vmem:[#allocation2 + $0x63] sm:$0x1]
  %2126 = vset.pattern.permute.xlu0 35
  %2127 = vperm.xlu0 %2126, %v2121
  %v2128 = vpop.permute.xlu0 %2127
  %2131 = vset.pattern.permute.xlu0 35
  %2132 = vperm.xlu0 %2131, %v2122
  %v2133 = vpop.permute.xlu0 %2132
  %v2135 = vmul.f32 %v2123, %v2128
  %v2136 = vmul.f32 %v2124, %v2133
  %v2137 = vsub.f32 1.0, %v2135
  %v2138 = vsub.f32 1.0, %v2136
  %v2139 = vmul.f32 %v2121, %v2137
  %v2140 = vmul.f32 %v2122, %v2138
  %v2141 = vld [vmem:[#allocation2 + $0x24] sm:$0x1]
  %v2142 = vld [vmem:[#allocation2 + $0x64] sm:$0x1]
  %2144 = vset.pattern.permute.xlu0 36
  %2145 = vperm.xlu0 %2144, %v2139
  %v2146 = vpop.permute.xlu0 %2145
  %2149 = vset.pattern.permute.xlu0 36
  %2150 = vperm.xlu0 %2149, %v2140
  %v2151 = vpop.permute.xlu0 %2150
  %v2153 = vmul.f32 %v2141, %v2146
  %v2154 = vmul.f32 %v2142, %v2151
  %v2155 = vsub.f32 1.0, %v2153
  %v2156 = vsub.f32 1.0, %v2154
  %v2157 = vmul.f32 %v2139, %v2155
  %v2158 = vmul.f32 %v2140, %v2156
  %v2159 = vld [vmem:[#allocation2 + $0x25] sm:$0x1]
  %v2160 = vld [vmem:[#allocation2 + $0x65] sm:$0x1]
  %2162 = vset.pattern.permute.xlu0 37
  %2163 = vperm.xlu0 %2162, %v2157
  %v2164 = vpop.permute.xlu0 %2163
  %2167 = vset.pattern.permute.xlu0 37
  %2168 = vperm.xlu0 %2167, %v2158
  %v2169 = vpop.permute.xlu0 %2168
  %v2171 = vmul.f32 %v2159, %v2164
  %v2172 = vmul.f32 %v2160, %v2169
  %v2173 = vsub.f32 1.0, %v2171
  %v2174 = vsub.f32 1.0, %v2172
  %v2175 = vmul.f32 %v2157, %v2173
  %v2176 = vmul.f32 %v2158, %v2174
  %v2177 = vld [vmem:[#allocation2 + $0x26] sm:$0x1]
  %v2178 = vld [vmem:[#allocation2 + $0x66] sm:$0x1]
  %2180 = vset.pattern.permute.xlu0 38
  %2181 = vperm.xlu0 %2180, %v2175
  %v2182 = vpop.permute.xlu0 %2181
  %2185 = vset.pattern.permute.xlu0 38
  %2186 = vperm.xlu0 %2185, %v2176
  %v2187 = vpop.permute.xlu0 %2186
  %v2189 = vmul.f32 %v2177, %v2182
  %v2190 = vmul.f32 %v2178, %v2187
  %v2191 = vsub.f32 1.0, %v2189
  %v2192 = vsub.f32 1.0, %v2190
  %v2193 = vmul.f32 %v2175, %v2191
  %v2194 = vmul.f32 %v2176, %v2192
  %v2195 = vld [vmem:[#allocation2 + $0x27] sm:$0x1]
  %v2196 = vld [vmem:[#allocation2 + $0x67] sm:$0x1]
  %2198 = vset.pattern.permute.xlu0 39
  %2199 = vperm.xlu0 %2198, %v2193
  %v2200 = vpop.permute.xlu0 %2199
  %2203 = vset.pattern.permute.xlu0 39
  %2204 = vperm.xlu0 %2203, %v2194
  %v2205 = vpop.permute.xlu0 %2204
  %v2207 = vmul.f32 %v2195, %v2200
  %v2208 = vmul.f32 %v2196, %v2205
  %v2209 = vsub.f32 1.0, %v2207
  %v2210 = vsub.f32 1.0, %v2208
  %v2211 = vmul.f32 %v2193, %v2209
  %v2212 = vmul.f32 %v2194, %v2210
  %v2213 = vld [vmem:[#allocation2 + $0x28] sm:$0x1]
  %v2214 = vld [vmem:[#allocation2 + $0x68] sm:$0x1]
  %2216 = vset.pattern.permute.xlu0 40
  %2217 = vperm.xlu0 %2216, %v2211
  %v2218 = vpop.permute.xlu0 %2217
  %2221 = vset.pattern.permute.xlu0 40
  %2222 = vperm.xlu0 %2221, %v2212
  %v2223 = vpop.permute.xlu0 %2222
  %v2225 = vmul.f32 %v2213, %v2218
  %v2226 = vmul.f32 %v2214, %v2223
  %v2227 = vsub.f32 1.0, %v2225
  %v2228 = vsub.f32 1.0, %v2226
  %v2229 = vmul.f32 %v2211, %v2227
  %v2230 = vmul.f32 %v2212, %v2228
  %v2231 = vld [vmem:[#allocation2 + $0x29] sm:$0x1]
  %v2232 = vld [vmem:[#allocation2 + $0x69] sm:$0x1]
  %2234 = vset.pattern.permute.xlu0 41
  %2235 = vperm.xlu0 %2234, %v2229
  %v2236 = vpop.permute.xlu0 %2235
  %2239 = vset.pattern.permute.xlu0 41
  %2240 = vperm.xlu0 %2239, %v2230
  %v2241 = vpop.permute.xlu0 %2240
  %v2243 = vmul.f32 %v2231, %v2236
  %v2244 = vmul.f32 %v2232, %v2241
  %v2245 = vsub.f32 1.0, %v2243
  %v2246 = vsub.f32 1.0, %v2244
  %v2247 = vmul.f32 %v2229, %v2245
  %v2248 = vmul.f32 %v2230, %v2246
  %v2249 = vld [vmem:[#allocation2 + $0x2a] sm:$0x1]
  %v2250 = vld [vmem:[#allocation2 + $0x6a] sm:$0x1]
  %2252 = vset.pattern.permute.xlu0 42
  %2253 = vperm.xlu0 %2252, %v2247
  %v2254 = vpop.permute.xlu0 %2253
  %2257 = vset.pattern.permute.xlu0 42
  %2258 = vperm.xlu0 %2257, %v2248
  %v2259 = vpop.permute.xlu0 %2258
  %v2261 = vmul.f32 %v2249, %v2254
  %v2262 = vmul.f32 %v2250, %v2259
  %v2263 = vsub.f32 1.0, %v2261
  %v2264 = vsub.f32 1.0, %v2262
  %v2265 = vmul.f32 %v2247, %v2263
  %v2266 = vmul.f32 %v2248, %v2264
  %v2267 = vld [vmem:[#allocation2 + $0x2b] sm:$0x1]
  %v2268 = vld [vmem:[#allocation2 + $0x6b] sm:$0x1]
  %2270 = vset.pattern.permute.xlu0 43
  %2271 = vperm.xlu0 %2270, %v2265
  %v2272 = vpop.permute.xlu0 %2271
  %2275 = vset.pattern.permute.xlu0 43
  %2276 = vperm.xlu0 %2275, %v2266
  %v2277 = vpop.permute.xlu0 %2276
  %v2279 = vmul.f32 %v2267, %v2272
  %v2280 = vmul.f32 %v2268, %v2277
  %v2281 = vsub.f32 1.0, %v2279
  %v2282 = vsub.f32 1.0, %v2280
  %v2283 = vmul.f32 %v2265, %v2281
  %v2284 = vmul.f32 %v2266, %v2282
  %v2285 = vld [vmem:[#allocation2 + $0x2c] sm:$0x1]
  %v2286 = vld [vmem:[#allocation2 + $0x6c] sm:$0x1]
  %2288 = vset.pattern.permute.xlu0 44
  %2289 = vperm.xlu0 %2288, %v2283
  %v2290 = vpop.permute.xlu0 %2289
  %2293 = vset.pattern.permute.xlu0 44
  %2294 = vperm.xlu0 %2293, %v2284
  %v2295 = vpop.permute.xlu0 %2294
  %v2297 = vmul.f32 %v2285, %v2290
  %v2298 = vmul.f32 %v2286, %v2295
  %v2299 = vsub.f32 1.0, %v2297
  %v2300 = vsub.f32 1.0, %v2298
  %v2301 = vmul.f32 %v2283, %v2299
  %v2302 = vmul.f32 %v2284, %v2300
  %v2303 = vld [vmem:[#allocation2 + $0x2d] sm:$0x1]
  %v2304 = vld [vmem:[#allocation2 + $0x6d] sm:$0x1]
  %2306 = vset.pattern.permute.xlu0 45
  %2307 = vperm.xlu0 %2306, %v2301
  %v2308 = vpop.permute.xlu0 %2307
  %2311 = vset.pattern.permute.xlu0 45
  %2312 = vperm.xlu0 %2311, %v2302
  %v2313 = vpop.permute.xlu0 %2312
  %v2315 = vmul.f32 %v2303, %v2308
  %v2316 = vmul.f32 %v2304, %v2313
  %v2317 = vsub.f32 1.0, %v2315
  %v2318 = vsub.f32 1.0, %v2316
  %v2319 = vmul.f32 %v2301, %v2317
  %v2320 = vmul.f32 %v2302, %v2318
  %v2321 = vld [vmem:[#allocation2 + $0x2e] sm:$0x1]
  %v2322 = vld [vmem:[#allocation2 + $0x6e] sm:$0x1]
  %2324 = vset.pattern.permute.xlu0 46
  %2325 = vperm.xlu0 %2324, %v2319
  %v2326 = vpop.permute.xlu0 %2325
  %2329 = vset.pattern.permute.xlu0 46
  %2330 = vperm.xlu0 %2329, %v2320
  %v2331 = vpop.permute.xlu0 %2330
  %v2333 = vmul.f32 %v2321, %v2326
  %v2334 = vmul.f32 %v2322, %v2331
  %v2335 = vsub.f32 1.0, %v2333
  %v2336 = vsub.f32 1.0, %v2334
  %v2337 = vmul.f32 %v2319, %v2335
  %v2338 = vmul.f32 %v2320, %v2336
  %v2339 = vld [vmem:[#allocation2 + $0x2f] sm:$0x1]
  %v2340 = vld [vmem:[#allocation2 + $0x6f] sm:$0x1]
  %2342 = vset.pattern.permute.xlu0 47
  %2343 = vperm.xlu0 %2342, %v2337
  %v2344 = vpop.permute.xlu0 %2343
  %2347 = vset.pattern.permute.xlu0 47
  %2348 = vperm.xlu0 %2347, %v2338
  %v2349 = vpop.permute.xlu0 %2348
  %v2351 = vmul.f32 %v2339, %v2344
  %v2352 = vmul.f32 %v2340, %v2349
  %v2353 = vsub.f32 1.0, %v2351
  %v2354 = vsub.f32 1.0, %v2352
  %v2355 = vmul.f32 %v2337, %v2353
  %v2356 = vmul.f32 %v2338, %v2354
  %v2357 = vld [vmem:[#allocation2 + $0x30] sm:$0x1]
  %v2358 = vld [vmem:[#allocation2 + $0x70] sm:$0x1]
  %2360 = vset.pattern.permute.xlu0 48
  %2361 = vperm.xlu0 %2360, %v2355
  %v2362 = vpop.permute.xlu0 %2361
  %2365 = vset.pattern.permute.xlu0 48
  %2366 = vperm.xlu0 %2365, %v2356
  %v2367 = vpop.permute.xlu0 %2366
  %v2369 = vmul.f32 %v2357, %v2362
  %v2370 = vmul.f32 %v2358, %v2367
  %v2371 = vsub.f32 1.0, %v2369
  %v2372 = vsub.f32 1.0, %v2370
  %v2373 = vmul.f32 %v2355, %v2371
  %v2374 = vmul.f32 %v2356, %v2372
  %v2375 = vld [vmem:[#allocation2 + $0x31] sm:$0x1]
  %v2376 = vld [vmem:[#allocation2 + $0x71] sm:$0x1]
  %2378 = vset.pattern.permute.xlu0 49
  %2379 = vperm.xlu0 %2378, %v2373
  %v2380 = vpop.permute.xlu0 %2379
  %2383 = vset.pattern.permute.xlu0 49
  %2384 = vperm.xlu0 %2383, %v2374
  %v2385 = vpop.permute.xlu0 %2384
  %v2387 = vmul.f32 %v2375, %v2380
  %v2388 = vmul.f32 %v2376, %v2385
  %v2389 = vsub.f32 1.0, %v2387
  %v2390 = vsub.f32 1.0, %v2388
  %v2391 = vmul.f32 %v2373, %v2389
  %v2392 = vmul.f32 %v2374, %v2390
  %v2393 = vld [vmem:[#allocation2 + $0x32] sm:$0x1]
  %v2394 = vld [vmem:[#allocation2 + $0x72] sm:$0x1]
  %2396 = vset.pattern.permute.xlu0 50
  %2397 = vperm.xlu0 %2396, %v2391
  %v2398 = vpop.permute.xlu0 %2397
  %2401 = vset.pattern.permute.xlu0 50
  %2402 = vperm.xlu0 %2401, %v2392
  %v2403 = vpop.permute.xlu0 %2402
  %v2405 = vmul.f32 %v2393, %v2398
  %v2406 = vmul.f32 %v2394, %v2403
  %v2407 = vsub.f32 1.0, %v2405
  %v2408 = vsub.f32 1.0, %v2406
  %v2409 = vmul.f32 %v2391, %v2407
  %v2410 = vmul.f32 %v2392, %v2408
  %v2411 = vld [vmem:[#allocation2 + $0x33] sm:$0x1]
  %v2412 = vld [vmem:[#allocation2 + $0x73] sm:$0x1]
  %2414 = vset.pattern.permute.xlu0 51
  %2415 = vperm.xlu0 %2414, %v2409
  %v2416 = vpop.permute.xlu0 %2415
  %2419 = vset.pattern.permute.xlu0 51
  %2420 = vperm.xlu0 %2419, %v2410
  %v2421 = vpop.permute.xlu0 %2420
  %v2423 = vmul.f32 %v2411, %v2416
  %v2424 = vmul.f32 %v2412, %v2421
  %v2425 = vsub.f32 1.0, %v2423
  %v2426 = vsub.f32 1.0, %v2424
  %v2427 = vmul.f32 %v2409, %v2425
  %v2428 = vmul.f32 %v2410, %v2426
  %v2429 = vld [vmem:[#allocation2 + $0x34] sm:$0x1]
  %v2430 = vld [vmem:[#allocation2 + $0x74] sm:$0x1]
  %2432 = vset.pattern.permute.xlu0 52
  %2433 = vperm.xlu0 %2432, %v2427
  %v2434 = vpop.permute.xlu0 %2433
  %2437 = vset.pattern.permute.xlu0 52
  %2438 = vperm.xlu0 %2437, %v2428
  %v2439 = vpop.permute.xlu0 %2438
  %v2441 = vmul.f32 %v2429, %v2434
  %v2442 = vmul.f32 %v2430, %v2439
  %v2443 = vsub.f32 1.0, %v2441
  %v2444 = vsub.f32 1.0, %v2442
  %v2445 = vmul.f32 %v2427, %v2443
  %v2446 = vmul.f32 %v2428, %v2444
  %v2447 = vld [vmem:[#allocation2 + $0x35] sm:$0x1]
  %v2448 = vld [vmem:[#allocation2 + $0x75] sm:$0x1]
  %2450 = vset.pattern.permute.xlu0 53
  %2451 = vperm.xlu0 %2450, %v2445
  %v2452 = vpop.permute.xlu0 %2451
  %2455 = vset.pattern.permute.xlu0 53
  %2456 = vperm.xlu0 %2455, %v2446
  %v2457 = vpop.permute.xlu0 %2456
  %v2459 = vmul.f32 %v2447, %v2452
  %v2460 = vmul.f32 %v2448, %v2457
  %v2461 = vsub.f32 1.0, %v2459
  %v2462 = vsub.f32 1.0, %v2460
  %v2463 = vmul.f32 %v2445, %v2461
  %v2464 = vmul.f32 %v2446, %v2462
  %v2465 = vld [vmem:[#allocation2 + $0x36] sm:$0x1]
  %v2466 = vld [vmem:[#allocation2 + $0x76] sm:$0x1]
  %2468 = vset.pattern.permute.xlu0 54
  %2469 = vperm.xlu0 %2468, %v2463
  %v2470 = vpop.permute.xlu0 %2469
  %2473 = vset.pattern.permute.xlu0 54
  %2474 = vperm.xlu0 %2473, %v2464
  %v2475 = vpop.permute.xlu0 %2474
  %v2477 = vmul.f32 %v2465, %v2470
  %v2478 = vmul.f32 %v2466, %v2475
  %v2479 = vsub.f32 1.0, %v2477
  %v2480 = vsub.f32 1.0, %v2478
  %v2481 = vmul.f32 %v2463, %v2479
  %v2482 = vmul.f32 %v2464, %v2480
  %v2483 = vld [vmem:[#allocation2 + $0x37] sm:$0x1]
  %v2484 = vld [vmem:[#allocation2 + $0x77] sm:$0x1]
  %2486 = vset.pattern.permute.xlu0 55
  %2487 = vperm.xlu0 %2486, %v2481
  %v2488 = vpop.permute.xlu0 %2487
  %2491 = vset.pattern.permute.xlu0 55
  %2492 = vperm.xlu0 %2491, %v2482
  %v2493 = vpop.permute.xlu0 %2492
  %v2495 = vmul.f32 %v2483, %v2488
  %v2496 = vmul.f32 %v2484, %v2493
  %v2497 = vsub.f32 1.0, %v2495
  %v2498 = vsub.f32 1.0, %v2496
  %v2499 = vmul.f32 %v2481, %v2497
  %v2500 = vmul.f32 %v2482, %v2498
  %v2501 = vld [vmem:[#allocation2 + $0x38] sm:$0x1]
  %v2502 = vld [vmem:[#allocation2 + $0x78] sm:$0x1]
  %2504 = vset.pattern.permute.xlu0 56
  %2505 = vperm.xlu0 %2504, %v2499
  %v2506 = vpop.permute.xlu0 %2505
  %2509 = vset.pattern.permute.xlu0 56
  %2510 = vperm.xlu0 %2509, %v2500
  %v2511 = vpop.permute.xlu0 %2510
  %v2513 = vmul.f32 %v2501, %v2506
  %v2514 = vmul.f32 %v2502, %v2511
  %v2515 = vsub.f32 1.0, %v2513
  %v2516 = vsub.f32 1.0, %v2514
  %v2517 = vmul.f32 %v2499, %v2515
  %v2518 = vmul.f32 %v2500, %v2516
  %v2519 = vld [vmem:[#allocation2 + $0x39] sm:$0x1]
  %v2520 = vld [vmem:[#allocation2 + $0x79] sm:$0x1]
  %2522 = vset.pattern.permute.xlu0 57
  %2523 = vperm.xlu0 %2522, %v2517
  %v2524 = vpop.permute.xlu0 %2523
  %2527 = vset.pattern.permute.xlu0 57
  %2528 = vperm.xlu0 %2527, %v2518
  %v2529 = vpop.permute.xlu0 %2528
  %v2531 = vmul.f32 %v2519, %v2524
  %v2532 = vmul.f32 %v2520, %v2529
  %v2533 = vsub.f32 1.0, %v2531
  %v2534 = vsub.f32 1.0, %v2532
  %v2535 = vmul.f32 %v2517, %v2533
  %v2536 = vmul.f32 %v2518, %v2534
  %v2537 = vld [vmem:[#allocation2 + $0x3a] sm:$0x1]
  %v2538 = vld [vmem:[#allocation2 + $0x7a] sm:$0x1]
  %2540 = vset.pattern.permute.xlu0 58
  %2541 = vperm.xlu0 %2540, %v2535
  %v2542 = vpop.permute.xlu0 %2541
  %2545 = vset.pattern.permute.xlu0 58
  %2546 = vperm.xlu0 %2545, %v2536
  %v2547 = vpop.permute.xlu0 %2546
  %v2549 = vmul.f32 %v2537, %v2542
  %v2550 = vmul.f32 %v2538, %v2547
  %v2551 = vsub.f32 1.0, %v2549
  %v2552 = vsub.f32 1.0, %v2550
  %v2553 = vmul.f32 %v2535, %v2551
  %v2554 = vmul.f32 %v2536, %v2552
  %v2555 = vld [vmem:[#allocation2 + $0x3b] sm:$0x1]
  %v2556 = vld [vmem:[#allocation2 + $0x7b] sm:$0x1]
  %2558 = vset.pattern.permute.xlu0 59
  %2559 = vperm.xlu0 %2558, %v2553
  %v2560 = vpop.permute.xlu0 %2559
  %2563 = vset.pattern.permute.xlu0 59
  %2564 = vperm.xlu0 %2563, %v2554
  %v2565 = vpop.permute.xlu0 %2564
  %v2567 = vmul.f32 %v2555, %v2560
  %v2568 = vmul.f32 %v2556, %v2565
  %v2569 = vsub.f32 1.0, %v2567
  %v2570 = vsub.f32 1.0, %v2568
  %v2571 = vmul.f32 %v2553, %v2569
  %v2572 = vmul.f32 %v2554, %v2570
  %v2573 = vld [vmem:[#allocation2 + $0x3c] sm:$0x1]
  %v2574 = vld [vmem:[#allocation2 + $0x7c] sm:$0x1]
  %2576 = vset.pattern.permute.xlu0 60
  %2577 = vperm.xlu0 %2576, %v2571
  %v2578 = vpop.permute.xlu0 %2577
  %2581 = vset.pattern.permute.xlu0 60
  %2582 = vperm.xlu0 %2581, %v2572
  %v2583 = vpop.permute.xlu0 %2582
  %v2585 = vmul.f32 %v2573, %v2578
  %v2586 = vmul.f32 %v2574, %v2583
  %v2587 = vsub.f32 1.0, %v2585
  %v2588 = vsub.f32 1.0, %v2586
  %v2589 = vmul.f32 %v2571, %v2587
  %v2590 = vmul.f32 %v2572, %v2588
  %v2591 = vld [vmem:[#allocation2 + $0x3d] sm:$0x1]
  %v2592 = vld [vmem:[#allocation2 + $0x7d] sm:$0x1]
  %2594 = vset.pattern.permute.xlu0 61
  %2595 = vperm.xlu0 %2594, %v2589
  %v2596 = vpop.permute.xlu0 %2595
  %2599 = vset.pattern.permute.xlu0 61
  %2600 = vperm.xlu0 %2599, %v2590
  %v2601 = vpop.permute.xlu0 %2600
  %v2603 = vmul.f32 %v2591, %v2596
  %v2604 = vmul.f32 %v2592, %v2601
  %v2605 = vsub.f32 1.0, %v2603
  %v2606 = vsub.f32 1.0, %v2604
  %v2607 = vmul.f32 %v2589, %v2605
  %v2608 = vmul.f32 %v2590, %v2606
  %v2609 = vld [vmem:[#allocation2 + $0x3e] sm:$0x1]
  %v2610 = vld [vmem:[#allocation2 + $0x7e] sm:$0x1]
  %2612 = vset.pattern.permute.xlu0 62
  %2613 = vperm.xlu0 %2612, %v2607
  %v2614 = vpop.permute.xlu0 %2613
  %2617 = vset.pattern.permute.xlu0 62
  %2618 = vperm.xlu0 %2617, %v2608
  %v2619 = vpop.permute.xlu0 %2618
  %v2621 = vmul.f32 %v2609, %v2614
  %v2622 = vmul.f32 %v2610, %v2619
  %v2623 = vsub.f32 1.0, %v2621
  %v2624 = vsub.f32 1.0, %v2622
  %v2625 = vmul.f32 %v2607, %v2623
  %v2626 = vmul.f32 %v2608, %v2624
  %v2627 = vld [vmem:[#allocation2 + $0x3f] sm:$0x1]
  %v2628 = vld [vmem:[#allocation2 + $0x7f] sm:$0x1]
  %2630 = vset.pattern.permute.xlu0 63
  %2631 = vperm.xlu0 %2630, %v2625
  %v2632 = vpop.permute.xlu0 %2631
  %2635 = vset.pattern.permute.xlu0 63
  %2636 = vperm.xlu0 %2635, %v2626
  %v2637 = vpop.permute.xlu0 %2636
  %v2639 = vmul.f32 %v2627, %v2632
  %v2640 = vmul.f32 %v2628, %v2637
  %v2641 = vsub.f32 1.0, %v2639
  %v2642 = vsub.f32 1.0, %v2640
  %v2643 = vmul.f32 %v2625, %v2641
  %v2644 = vmul.f32 %v2626, %v2642
  %2645 = vst.msk [vmem:[%s5] sm:$0x1] %vm81, %v2643
  %2646 = vst.msk [vmem:[%s5 + $0x1] sm:$0x1] %vm81, %v2644
  // Predicated region
  $region18: #{proposal_forward.1} parent=0 // pred_check
    _
  $region19: #{proposal_forward.1} parent=0 // pred_check_branch
    %2648 = sbr.rel (0) target = $region21
  $region20: #{proposal_forward.1} parent=0 // pred_region
    _
  $region21: #{proposal_forward.1} parent=0 // pred_fallthru
    _
  // Predicated region
  $region22: #{proposal_forward.1} parent=0 // pred_check
    _
  $region23: #{proposal_forward.1} parent=0 // pred_check_branch
    %2650 = sbr.rel (0) target = $region25
  $region24: #{proposal_forward.1} parent=0 // pred_region
    _
  $region25: #{proposal_forward.1} parent=0 // pred_fallthru
    _
  // Predicated region
  $region26: #{proposal_forward.1} parent=0 // pred_check
    _
  $region27: #{proposal_forward.1} parent=0 // pred_check_branch
    %2652 = sbr.rel (0) target = $region29
  $region28: #{proposal_forward.1} parent=0 // pred_region
    _
  $region29: #{proposal_forward.1} parent=0 // pred_fallthru
    _
  // Predicated region
  $region30: #{proposal_forward.1} parent=0 // pred_check
    _
  $region31: #{proposal_forward.1} parent=0 // pred_check_branch
    %2654 = sbr.rel (0) target = $region33
  $region32: #{proposal_forward.1} parent=0 // pred_region
    _
  $region33: #{proposal_forward.1} parent=0 // pred_fallthru
    _

</llo_original>
